<compile_context>
chip_gen: v6e
topology: v6e:2x2x1
jax: 0.10.0
libtpu: 0.0.40
codegen_flags: <defaults>
</compile_context>

<pallas_src>
import jax
import jax.numpy as jnp
from jax.experimental import pallas as pl
from jax.experimental.pallas import tpu as pltpu


def _cca_kernel(gamma_ref, x_ref, wqkv_ref, bqkv_ref, out_ref):
    x = x_ref[0]                        # [H, W, C]  f32
    H, W, C = x.shape
    n_out = wqkv_ref.shape[1]
    Cq = (n_out - C) // 2
    gamma = gamma_ref[0, 0]

    # Fused Q/K/V projection: 1x1 conv == per-pixel matmul over channels.
    # bf16 operands, f32 accumulation, f32 bias add.
    x_flat = x.reshape(H * W, C).astype(jnp.bfloat16)
    qkv = jnp.dot(x_flat, wqkv_ref[...],
                  preferred_element_type=jnp.float32) + bqkv_ref[...]   # [H*W, C+2Cq]
    v = qkv[:, :C].reshape(H, W, C)              # lane-aligned slice
    q = qkv[:, C:C + Cq].reshape(H, W, Cq)
    k = qkv[:, C + Cq:].reshape(H, W, Cq)

    # Column-branch views: swap the two spatial (non-lane) dims in VMEM.
    qt = pltpu.einshape("hwc->whc", q)   # [W, H, Cq]
    kt = pltpu.einshape("hwc->whc", k)   # [W, H, Cq]
    vt = pltpu.einshape("hwc->whc", v)   # [W, H, C]

    qb, kb = q.astype(jnp.bfloat16), k.astype(jnp.bfloat16)
    qtb, ktb = qt.astype(jnp.bfloat16), kt.astype(jnp.bfloat16)

    # Row-branch energy (attention along W) and column-branch energy (along H).
    eW = jnp.einsum('hwc,hvc->hwv', qb, kb, preferred_element_type=jnp.float32)    # [H, W, W]
    eH = jnp.einsum('whc,wgc->whg', qtb, ktb, preferred_element_type=jnp.float32)  # [W, H, H]

    # Self-attention mask on the column branch (the INF() term).  A large
    # negative constant avoids -inf propagation while still giving exp() == 0.
    r = jax.lax.broadcasted_iota(jnp.int32, (H, H), 0)
    c = jax.lax.broadcasted_iota(jnp.int32, (H, H), 1)
    eH = jnp.where((r == c)[None, :, :], jnp.float32(-1e30), eH)

    # Joint softmax over the concatenated (H + W) axis without materializing
    # the concat: shared max & denominator; normalization deferred.
    mW = jnp.max(eW, axis=-1)              # [H, W]
    mH = jnp.max(eH, axis=-1)              # [W, H]
    m_hw = jnp.maximum(mW, mH.T)           # [H, W]
    pW = jnp.exp(eW - m_hw[:, :, None])    # [H, W, W]
    pH = jnp.exp(eH - m_hw.T[:, :, None])  # [W, H, H]
    den = jnp.sum(pW, axis=-1) + jnp.sum(pH, axis=-1).T    # [H, W]
    inv = pl.reciprocal(den, approx=True)                  # [H, W]  (EUP slot)

    # Un-normalized attention-weighted values (normalization deferred).
    oW = jnp.einsum('hwv,hvc->hwc', pW.astype(jnp.bfloat16), v.astype(jnp.bfloat16),
                    preferred_element_type=jnp.float32)    # [H, W, C]
    oH = jnp.einsum('whg,wgc->whc', pH.astype(jnp.bfloat16), vt.astype(jnp.bfloat16),
                    preferred_element_type=jnp.float32)    # [W, H, C]

    att = (oW + pltpu.einshape("whc->hwc", oH)) * inv[:, :, None]
    out_ref[0] = gamma * att + x           # both branches + residual, fused


def criss_cross_attention(x_nchw, wq, bq, wk, bk, wv, bv, gamma):
    """x_nchw: [B, C, H, W]; wq/wk: [Cq, C]; wv: [C, C]; returns [B, C, H, W]."""
    B, C, H, W = x_nchw.shape
    Cq = wq.shape[0]
    n_out = C + 2 * Cq

    x = jnp.transpose(x_nchw, (0, 2, 3, 1)).astype(jnp.float32)   # [B, H, W, C]

    # Fused, transposed 1x1-conv weights, ordered [Wv | Wq | Wk] (see kernel).
    wqkv = jnp.concatenate([wv.T, wq.T, wk.T], axis=1).astype(jnp.bfloat16)   # [C, C+2Cq]
    bqkv = jnp.concatenate([bv, bq, bk]).reshape(1, -1).astype(jnp.float32)   # [1, C+2Cq]
    gamma2 = jnp.asarray(gamma, jnp.float32).reshape(1, 1)

    # Rough per-step VMEM working set (bytes) for the scoped-VMEM limit.
    workset = 4 * (8 * H * W * C + 3 * H * W * W + 3 * W * H * H + 4 * H * W * n_out)
    vmem_limit = int(min(max(2 * workset, 16 * 1024 * 1024), 48 * 1024 * 1024))

    # TODO(synk): for production CCNet shapes (H,W ~ 97, C ~ 512) add spatial
    # tiling (two-pass: per-pixel max/denominator, then apply) — the joint
    # softmax couples the row and column branches per pixel, so a single-pass
    # H-tile would need the full-column k/v and does not fit v7x VMEM.

    out = pl.pallas_call(
        _cca_kernel,
        out_shape=jax.ShapeDtypeStruct((B, H, W, C), jnp.float32),
        grid=(B,),
        in_specs=[
            pl.BlockSpec(memory_space=pltpu.MemorySpace.SMEM),       # gamma scalar
            pl.BlockSpec((1, H, W, C), lambda b: (b, 0, 0, 0)),      # x (NHWC)
            pl.BlockSpec((C, n_out), lambda b: (0, 0)),              # fused [Wv|Wq|Wk]^T
            pl.BlockSpec((1, n_out), lambda b: (0, 0)),              # fused bias
        ],
        out_specs=pl.BlockSpec((1, H, W, C), lambda b: (b, 0, 0, 0)),
        compiler_params=pltpu.CompilerParams(
            dimension_semantics=("parallel",),
            vmem_limit_bytes=vmem_limit,
        ),
    )(gamma2, x, wqkv, bqkv)

    return jnp.transpose(out, (0, 3, 1, 2))   # NCHW


def criss_cross_attention_ref(x, wq, bq, wk, bk, wv, bv, gamma):
    """Pure-JAX transcription of the PyTorch forward (NCHW), for verification."""
    B, C, H, W = x.shape

    def conv1x1(inp, w, b):
        return jnp.einsum('bchw,oc->bohw', inp, w) + b[None, :, None, None]

    q = conv1x1(x, wq, bq); k = conv1x1(x, wk, bk); v = conv1x1(x, wv, bv)
    Cq = q.shape[1]
    query_H = q.transpose(0, 3, 1, 2).reshape(B * W, Cq, H).transpose(0, 2, 1)
    query_W = q.transpose(0, 2, 1, 3).reshape(B * H, Cq, W).transpose(0, 2, 1)
    key_H = k.transpose(0, 3, 1, 2).reshape(B * W, Cq, H)
    key_W = k.transpose(0, 2, 1, 3).reshape(B * H, Cq, W)
    value_H = v.transpose(0, 3, 1, 2).reshape(B * W, C, H)
    value_W = v.transpose(0, 2, 1, 3).reshape(B * H, C, W)
    inf_mask = jnp.where(jnp.eye(H, dtype=bool), -jnp.inf, 0.0)[None, :, :]
    energy_H = (jnp.matmul(query_H, key_H) + inf_mask).reshape(B, W, H, H).transpose(0, 2, 1, 3)
    energy_W = jnp.matmul(query_W, key_W).reshape(B, H, W, W)
    concate = jax.nn.softmax(jnp.concatenate([energy_H, energy_W], axis=3), axis=3)
    att_H = concate[:, :, :, :H].transpose(0, 2, 1, 3).reshape(B * W, H, H)
    att_W = concate[:, :, :, H:].reshape(B * H, W, W)
    out_H = jnp.matmul(value_H, att_H.transpose(0, 2, 1)).reshape(B, W, C, H).transpose(0, 2, 3, 1)
    out_W = jnp.matmul(value_W, att_W.transpose(0, 2, 1)).reshape(B, H, C, W).transpose(0, 2, 1, 3)
    return gamma * (out_H + out_W) + x


if __name__ == "__main__":
    key = jax.random.PRNGKey(0)
    B, C, H, W = 2, 64, 16, 8          # in_channels must be >= 8 (Cq = C // 8)
    Cq = C // 8
    k0, k1, k2, k3, k4, k5, k6 = jax.random.split(key, 7)
    x = jax.random.normal(k0, (B, C, H, W), dtype=jnp.float32)
    wq = 0.1 * jax.random.normal(k1, (Cq, C), dtype=jnp.float32)   # ConvQuery weight (1x1)
    bq = 0.1 * jax.random.normal(k2, (Cq,), dtype=jnp.float32)
    wk = 0.1 * jax.random.normal(k3, (Cq, C), dtype=jnp.float32)   # ConvKey weight (1x1)
    bk = 0.1 * jax.random.normal(k4, (Cq,), dtype=jnp.float32)
    wv = 0.1 * jax.random.normal(k5, (C, C), dtype=jnp.float32)    # ConvValue weight (1x1)
    bv = 0.1 * jax.random.normal(k6, (C,), dtype=jnp.float32)
    # nn.Parameter(torch.zeros(1)) in __init__; use a deterministic nonzero
    # value so the attention path is actually exercised.
    gamma = jnp.float32(0.7)

    out = criss_cross_attention(x, wq, bq, wk, bk, wv, bv, gamma)
    out = jax.block_until_ready(out)

    ref = criss_cross_attention_ref(x, wq, bq, wk, bk, wv, bv, gamma)
    assert out.shape == x.shape
    # Slightly looser tolerance than pure-f32 because matmul operands run in
    # bf16 (f32 accumulation, f32 softmax) and the reciprocal is the EUP approx.
    assert jnp.allclose(out, ref, rtol=3e-2, atol=3e-2), float(jnp.max(jnp.abs(out - ref)))
    print("KERNEL_OK")
</pallas_src>

<mosaic_0001>
module attributes {stable_mosaic.version = 11 : i64} {
  func.func @_cca_kernel(%arg0: i32, %arg1: memref<1x1xf32, #tpu.memory_space<smem>>, %arg2: memref<1x16x8x64xf32, #tpu.memory_space<vmem>>, %arg3: memref<64x80xbf16, #tpu.memory_space<vmem>>, %arg4: memref<1x80xf32, #tpu.memory_space<vmem>>, %arg5: memref<1x16x8x64xf32, #tpu.memory_space<vmem>>) attributes {dimension_semantics = [#tpu.dimension_semantics<parallel>], iteration_bounds = array<i64: 2>, scalar_prefetch = 0 : i64, scratch_operands = 0 : i64, tpu.core_type = #tpu.core_type<tc>, window_params = [{transform_indices = @transform_0, window_bounds = array<i64: 1, 1>}, {transform_indices = @transform_1, window_bounds = array<i64: 1, 16, 8, 64>}, {pipeline_mode = #tpu.pipeline_mode<synchronous>, transform_indices = @transform_2, window_bounds = array<i64: 64, 80>}, {pipeline_mode = #tpu.pipeline_mode<synchronous>, transform_indices = @transform_3, window_bounds = array<i64: 1, 80>}, {transform_indices = @transform_4, window_bounds = array<i64: 1, 16, 8, 64>}]} {
    %c0 = arith.constant 0 : index
    %c0_0 = arith.constant 0 : index
    %c0_1 = arith.constant 0 : index
    %c0_2 = arith.constant 0 : index
    %0 = vector.load %arg2[%c0, %c0_0, %c0_1, %c0_2] : memref<1x16x8x64xf32, #tpu.memory_space<vmem>>, vector<1x16x8x64xf32>
    %1 = vector.shape_cast %0 : vector<1x16x8x64xf32> to vector<16x8x64xf32>
    %c0_3 = arith.constant 0 : index
    %c0_4 = arith.constant 0 : index
    %2 = memref.load %arg1[%c0_3, %c0_4] : memref<1x1xf32, #tpu.memory_space<smem>>
    %3 = vector.shape_cast %1 : vector<16x8x64xf32> to vector<128x64xf32>
    %4 = arith.truncf %3 : vector<128x64xf32> to vector<128x64xbf16>
    %c0_5 = arith.constant 0 : index
    %c0_6 = arith.constant 0 : index
    %5 = vector.load %arg3[%c0_5, %c0_6] : memref<64x80xbf16, #tpu.memory_space<vmem>>, vector<64x80xbf16>
    %cst = arith.constant dense<0.000000e+00> : vector<128x80xf32>
    %6 = tpu.matmul %4, %5, %cst {dimension_numbers = #tpu.dot_dimension_numbers<[1], [0], [0], [1], [0, 0, 1, 1], [], []>} : vector<128x64xbf16>, vector<64x80xbf16>, vector<128x80xf32> -> vector<128x80xf32>
    %c0_7 = arith.constant 0 : index
    %c0_8 = arith.constant 0 : index
    %7 = vector.load %arg4[%c0_7, %c0_8] : memref<1x80xf32, #tpu.memory_space<vmem>>, vector<1x80xf32>
    %8 = vector.broadcast %7 : vector<1x80xf32> to vector<128x80xf32>
    %9 = arith.addf %6, %8 : vector<128x80xf32>
    %10 = vector.extract_strided_slice %9 {offsets = [0, 0], sizes = [128, 64], strides = [1, 1]} : vector<128x80xf32> to vector<128x64xf32>
    %11 = vector.shape_cast %10 : vector<128x64xf32> to vector<16x8x64xf32>
    %12 = vector.extract_strided_slice %9 {offsets = [0, 64], sizes = [128, 8], strides = [1, 1]} : vector<128x80xf32> to vector<128x8xf32>
    %13 = vector.shape_cast %12 : vector<128x8xf32> to vector<16x8x8xf32>
    %14 = vector.extract_strided_slice %9 {offsets = [0, 72], sizes = [128, 8], strides = [1, 1]} : vector<128x80xf32> to vector<128x8xf32>
    %15 = vector.shape_cast %14 : vector<128x8xf32> to vector<16x8x8xf32>
    %16 = tpu.transpose %13, [1, 0, 2] : vector<16x8x8xf32> -> vector<8x16x8xf32>
    %17 = tpu.transpose %15, [1, 0, 2] : vector<16x8x8xf32> -> vector<8x16x8xf32>
    %18 = tpu.transpose %11, [1, 0, 2] : vector<16x8x64xf32> -> vector<8x16x64xf32>
    %19 = arith.truncf %13 : vector<16x8x8xf32> to vector<16x8x8xbf16>
    %20 = arith.truncf %15 : vector<16x8x8xf32> to vector<16x8x8xbf16>
    %21 = arith.truncf %16 : vector<8x16x8xf32> to vector<8x16x8xbf16>
    %22 = arith.truncf %17 : vector<8x16x8xf32> to vector<8x16x8xbf16>
    "tpu.trace_start"() <{level = 10 : i32, message = "hwc,hvc->hwv"}> : () -> ()
    %cst_9 = arith.constant dense<0.000000e+00> : vector<16x8x8xf32>
    %23 = tpu.matmul %19, %20, %cst_9 {dimension_numbers = #tpu.dot_dimension_numbers<[2], [2], [1], [1], [0, 0, 0, 1, 1, 1], [0], [0]>} : vector<16x8x8xbf16>, vector<16x8x8xbf16>, vector<16x8x8xf32> -> vector<16x8x8xf32>
    "tpu.trace_stop"() : () -> ()
    "tpu.trace_start"() <{level = 10 : i32, message = "whc,wgc->whg"}> : () -> ()
    %cst_10 = arith.constant dense<0.000000e+00> : vector<8x16x16xf32>
    %24 = tpu.matmul %21, %22, %cst_10 {dimension_numbers = #tpu.dot_dimension_numbers<[2], [2], [1], [1], [0, 0, 0, 1, 1, 1], [0], [0]>} : vector<8x16x8xbf16>, vector<8x16x8xbf16>, vector<8x16x16xf32> -> vector<8x16x16xf32>
    "tpu.trace_stop"() : () -> ()
    %25 = tpu.iota {dimensions = array<i32: 0>} : vector<16x16xi32>
    %26 = tpu.iota {dimensions = array<i32: 1>} : vector<16x16xi32>
    %27 = arith.cmpi eq, %25, %26 : vector<16x16xi32>
    %28 = vector.shape_cast %27 : vector<16x16xi1> to vector<1x16x16xi1>
    %cst_11 = arith.constant -1.000000e+30 : f32
    %29 = vector.shape_cast %28 : vector<1x16x16xi1> to vector<1x16x16xi1>
    %30 = vector.broadcast %29 : vector<1x16x16xi1> to vector<8x16x16xi1>
    %31 = vector.broadcast %cst_11 : f32 to vector<8x16x16xf32>
    %32 = arith.select %30, %31, %24 : vector<8x16x16xi1>, vector<8x16x16xf32>
    %cst_12 = arith.constant dense<0xFF800000> : vector<16x8xf32>
    %33 = vector.multi_reduction <maximumf>, %23, %cst_12 [2] : vector<16x8x8xf32> to vector<16x8xf32>
    %cst_13 = arith.constant dense<0xFF800000> : vector<8x16xf32>
    %34 = vector.multi_reduction <maximumf>, %32, %cst_13 [2] : vector<8x16x16xf32> to vector<8x16xf32>
    %35 = tpu.transpose %34, [1, 0] : vector<8x16xf32> -> vector<16x8xf32>
    %36 = arith.maximumf %33, %35 : vector<16x8xf32>
    %37 = vector.shape_cast %36 : vector<16x8xf32> to vector<16x8x1xf32>
    %38 = vector.broadcast %37 : vector<16x8x1xf32> to vector<16x8x8xf32>
    %39 = arith.subf %23, %38 : vector<16x8x8xf32>
    %40 = math.exp %39 : vector<16x8x8xf32>
    %41 = tpu.transpose %36, [1, 0] : vector<16x8xf32> -> vector<8x16xf32>
    %42 = vector.shape_cast %41 : vector<8x16xf32> to vector<8x16x1xf32>
    %43 = vector.broadcast %42 : vector<8x16x1xf32> to vector<8x16x16xf32>
    %44 = arith.subf %32, %43 : vector<8x16x16xf32>
    %45 = math.exp %44 : vector<8x16x16xf32>
    %cst_14 = arith.constant dense<0.000000e+00> : vector<16x8xf32>
    %46 = vector.multi_reduction <add>, %40, %cst_14 [2] : vector<16x8x8xf32> to vector<16x8xf32>
    %cst_15 = arith.constant dense<0.000000e+00> : vector<8x16xf32>
    %47 = vector.multi_reduction <add>, %45, %cst_15 [2] : vector<8x16x16xf32> to vector<8x16xf32>
    %48 = tpu.transpose %47, [1, 0] : vector<8x16xf32> -> vector<16x8xf32>
    %49 = arith.addf %46, %48 : vector<16x8xf32>
    %50 = tpu.reciprocal %49 {approx = true} : vector<16x8xf32> -> vector<16x8xf32>
    %51 = arith.truncf %40 : vector<16x8x8xf32> to vector<16x8x8xbf16>
    %52 = arith.truncf %11 : vector<16x8x64xf32> to vector<16x8x64xbf16>
    "tpu.trace_start"() <{level = 10 : i32, message = "hwv,hvc->hwc"}> : () -> ()
    %cst_16 = arith.constant dense<0.000000e+00> : vector<16x8x64xf32>
    %53 = tpu.matmul %51, %52, %cst_16 {dimension_numbers = #tpu.dot_dimension_numbers<[2], [1], [1], [2], [0, 0, 0, 1, 1, 2], [0], [0]>} : vector<16x8x8xbf16>, vector<16x8x64xbf16>, vector<16x8x64xf32> -> vector<16x8x64xf32>
    "tpu.trace_stop"() : () -> ()
    %54 = arith.truncf %45 : vector<8x16x16xf32> to vector<8x16x16xbf16>
    %55 = arith.truncf %18 : vector<8x16x64xf32> to vector<8x16x64xbf16>
    "tpu.trace_start"() <{level = 10 : i32, message = "whg,wgc->whc"}> : () -> ()
    %cst_17 = arith.constant dense<0.000000e+00> : vector<8x16x64xf32>
    %56 = tpu.matmul %54, %55, %cst_17 {dimension_numbers = #tpu.dot_dimension_numbers<[2], [1], [1], [2], [0, 0, 0, 1, 1, 2], [0], [0]>} : vector<8x16x16xbf16>, vector<8x16x64xbf16>, vector<8x16x64xf32> -> vector<8x16x64xf32>
    "tpu.trace_stop"() : () -> ()
    %57 = tpu.transpose %56, [1, 0, 2] : vector<8x16x64xf32> -> vector<16x8x64xf32>
    %58 = arith.addf %53, %57 : vector<16x8x64xf32>
    %59 = vector.shape_cast %50 : vector<16x8xf32> to vector<16x8x1xf32>
    %60 = vector.broadcast %59 : vector<16x8x1xf32> to vector<16x8x64xf32>
    %61 = arith.mulf %58, %60 : vector<16x8x64xf32>
    %62 = vector.broadcast %2 : f32 to vector<16x8x64xf32>
    %63 = arith.mulf %62, %61 : vector<16x8x64xf32>
    %64 = arith.addf %63, %1 : vector<16x8x64xf32>
    %c0_18 = arith.constant 0 : index
    %c0_19 = arith.constant 0 : index
    %c0_20 = arith.constant 0 : index
    %c0_21 = arith.constant 0 : index
    %65 = vector.load %arg5[%c0_18, %c0_19, %c0_20, %c0_21] : memref<1x16x8x64xf32, #tpu.memory_space<vmem>>, vector<1x16x8x64xf32>
    %66 = vector.shape_cast %65 : vector<1x16x8x64xf32> to vector<16x8x64xf32>
    %67 = vector.shape_cast %64 : vector<16x8x64xf32> to vector<1x16x8x64xf32>
    tpu.vector_store %arg5[%c0_18, %c0_19, %c0_20, %c0_21], %67 {strides = array<i32>} : memref<1x16x8x64xf32, #tpu.memory_space<vmem>>, vector<1x16x8x64xf32>,
    return
  }
  func.func @transform_0(%arg0: i32) -> (i32, i32) {
    %c0_i32 = arith.constant 0 : i32
    %c0_i32_0 = arith.constant 0 : i32
    %c0_i32_1 = arith.constant 0 : i32
    return %c0_i32, %c0_i32_0 : i32, i32
  }
  func.func @transform_1(%arg0: i32) -> (i32, i32, i32, i32) {
    %c0_i32 = arith.constant 0 : i32
    %c0_i32_0 = arith.constant 0 : i32
    %c0_i32_1 = arith.constant 0 : i32
    %c0_i32_2 = arith.constant 0 : i32
    return %arg0, %c0_i32, %c0_i32_0, %c0_i32_1 : i32, i32, i32, i32
  }
  func.func @transform_2(%arg0: i32) -> (i32, i32) {
    %c0_i32 = arith.constant 0 : i32
    %c0_i32_0 = arith.constant 0 : i32
    %c0_i32_1 = arith.constant 0 : i32
    return %c0_i32, %c0_i32_0 : i32, i32
  }
  func.func @transform_3(%arg0: i32) -> (i32, i32) {
    %c0_i32 = arith.constant 0 : i32
    %c0_i32_0 = arith.constant 0 : i32
    %c0_i32_1 = arith.constant 0 : i32
    return %c0_i32, %c0_i32_0 : i32, i32
  }
  func.func @transform_4(%arg0: i32) -> (i32, i32, i32, i32) {
    %c0_i32 = arith.constant 0 : i32
    %c0_i32_0 = arith.constant 0 : i32
    %c0_i32_1 = arith.constant 0 : i32
    %c0_i32_2 = arith.constant 0 : i32
    return %arg0, %c0_i32, %c0_i32_0, %c0_i32_1 : i32, i32, i32, i32
  }
}

</mosaic_0001>

<llo_original>
// kernel: tpu_custom_call.1
$region0: #{tpu_custom_call.1}
  #allocation0 [shape = 'u32[]', space=smem, size = 0x4, offset = 0x4, fixed_abs, tag = 'smem constant byte address 0x4 - core index']
  #allocation1 [shape = 'u32[144,128]{1,0:T(1,128)}', space=vmem, size = 0x12000, scoped, tag = 'internal scratch']
  #allocation2 [shape = 'f32[1,1]{1,0:T(1,128)S(6)}', space=smem, size = 0x200, scoped, tag = 'scoped memory for tpu_custom_call.1']
  %s0 = inlined_call_operand.<no memory space> [shape: f32[1,1], index: 0, kind: input, shape index: {}]
  %s1 = inlined_call_operand.hbm [shape: f32[2,16,8,64], index: 1, kind: input, shape index: {}]
  %s2 = inlined_call_operand.hbm [shape: bf16[64,80], index: 2, kind: input, shape index: {}]
  %s3 = inlined_call_operand.vmem [shape: f32[1,80], index: 3, kind: input, shape index: {}]
  %s4 = inlined_call_operand.hbm [shape: f32[2,16,8,64], index: 4, kind: output, shape index: {}]
  %s5 = sld [smem:[#allocation0]]
  $region57: #{tpu_custom_call.1} parent=0
    _
  %s7 = ssub.s32 1, %s5
  %s8 = scalar_select 0, %s7, %s5
  %9 = sst [smem:[#allocation2]] %s0
  $region1: #{tpu_custom_call.1} parent=0
    #allocation3 [shape = 'u8[131072]{0}', space=vmem, size = 0x20000, scoped, tag = 'input window, operand 1']
    #allocation4 [shape = 's32[2]{0}', space=sflag, size = 0x8, scoped, tag = 'scoped memory for tpu_custom_call.1']
    #allocation5 [shape = 's32[2]{0}', space=sflag, size = 0x8, scoped, tag = 'scoped memory for tpu_custom_call.1']
    #allocation6 [shape = 'u8[16384]{0}', space=vmem, size = 0x4000, scoped, tag = 'input window, operand 2, single buffered']
    #allocation7 [shape = 's32[1]{0}', space=sflag, size = 0x4, scoped, tag = 'scoped memory for tpu_custom_call.1']
    #allocation8 [shape = 'u8[131072]{0}', space=vmem, size = 0x20000, scoped, tag = 'output window, operand 0']
    %10 = vsyncpa [#allocation4], 0
    %s11 = scalar_lea.sflag [#allocation4], 1
    %12 = vsyncpa %s11, 0
    %13 = vsyncpa [#allocation7], 0
    %14 = vsyncpa [#allocation5], 0
    %s15 = scalar_lea.sflag [#allocation5], 1
    %16 = vsyncpa %s15, 0
    loop: start=0, step=1, limit=4
    $region2: #{tpu_custom_call.1} parent=1 // loop_pre_header
      _
    $region3: #{tpu_custom_call.1} parent=1 // loop_header
      %s18 = sphi 0, %s22
      %p19 = scmp.ge.s32.totalorder %s18, 4
      %s26 = sphi 0, %s26
      %s28 = sphi 0, %s26
      %s29 = sphi 0, %s28
      %s43 = sphi 0, %s29
      %s49 = sphi 0, %s51
      %s52 = sphi 0, %s49
      %s53 = sphi 0, %s52
      %s69 = sphi 0, %s53
      %s73 = sphi 0, %s73
      %s75 = sphi 0, %s73
      %s76 = sphi 0, %s75
      %s90 = sphi 0, %s76
      %s94 = sphi 0, %s94
      %s96 = sphi 0, %s94
      %s97 = sphi 0, %s96
      %s111 = sphi 0, %s97
      %s117 = sphi 0, %s119
      %s120 = sphi 0, %s117
      %s121 = sphi 0, %s120
      %s137 = sphi 0, %s121
    $region4: #{tpu_custom_call.1} parent=1 // loop_header_branch
      %21 = sbr.rel (%p19) target = $region8
    $region5: #{tpu_custom_call.1} parent=1 // loop_body
      %s23 = ssub.s32 %s18, 1
      %s24 = ssub.s32 %s18, 2
      %s25 = sadd.s32 %s18, 1
      %s27 = sadd.s32 %s26, 1
      %p30 = scmp.eq.s32.totalorder %s18, 1
      %p31 = scmp.ne.s32.totalorder %s26, %s28
      %p32 = scmp.eq.s32.totalorder %s18, 0
      %p33 = por %p31, %p32
      %p34 = scmp.ne.s32.totalorder %s26, %s28
      %p35 = scmp.eq.s32.totalorder %s23, 1
      %p36 = por %p34, %p35
      %p37 = scmp.ne.s32.totalorder %s28, %s29
      %p38 = scmp.eq.s32.totalorder %s23, 0
      %p39 = por %p37, %p38
      %p40 = scmp.ne.s32.totalorder %s28, %s29
      %p41 = scmp.eq.s32.totalorder %s24, 1
      %p42 = por %p40, %p41
      %p44 = scmp.ne.s32.totalorder %s29, %s43
      %p45 = scmp.eq.s32.totalorder %s24, 0
      %p46 = por %p44, %p45
      %s47 = ssub.s32 %s18, %s25
      %p48 = scmp.eq.s32.totalorder %s47, 0
      %s50 = sadd.s32 %s49, 1
      %s51 = scalar_select %p48, %s49, %s50
      %p54 = pneg %p48
      %p55 = scmp.eq.s32.totalorder %s18, 1
      %p56 = por %p54, %p55
      %p57 = scmp.ne.s32.totalorder %s49, %s52
      %p58 = scmp.eq.s32.totalorder %s18, 0
      %p59 = por %p57, %p58
      %p60 = scmp.ne.s32.totalorder %s49, %s52
      %p61 = scmp.eq.s32.totalorder %s23, 1
      %p62 = por %p60, %p61
      %p63 = scmp.ne.s32.totalorder %s52, %s53
      %p64 = scmp.eq.s32.totalorder %s23, 0
      %p65 = por %p63, %p64
      %p66 = scmp.ne.s32.totalorder %s52, %s53
      %p67 = scmp.eq.s32.totalorder %s24, 1
      %p68 = por %p66, %p67
      %p70 = scmp.ne.s32.totalorder %s53, %s69
      %p71 = scmp.eq.s32.totalorder %s24, 0
      %p72 = por %p70, %p71
      %s74 = sadd.s32 %s73, 1
      %p77 = scmp.eq.s32.totalorder %s18, 1
      %p78 = scmp.ne.s32.totalorder %s73, %s75
      %p79 = scmp.eq.s32.totalorder %s18, 0
      %p80 = por %p78, %p79
      %p81 = scmp.ne.s32.totalorder %s73, %s75
      %p82 = scmp.eq.s32.totalorder %s23, 1
      %p83 = por %p81, %p82
      %p84 = scmp.ne.s32.totalorder %s75, %s76
      %p85 = scmp.eq.s32.totalorder %s23, 0
      %p86 = por %p84, %p85
      %p87 = scmp.ne.s32.totalorder %s75, %s76
      %p88 = scmp.eq.s32.totalorder %s24, 1
      %p89 = por %p87, %p88
      %p91 = scmp.ne.s32.totalorder %s76, %s90
      %p92 = scmp.eq.s32.totalorder %s24, 0
      %p93 = por %p91, %p92
      %s95 = sadd.s32 %s94, 1
      %p98 = scmp.eq.s32.totalorder %s18, 1
      %p99 = scmp.ne.s32.totalorder %s94, %s96
      %p100 = scmp.eq.s32.totalorder %s18, 0
      %p101 = por %p99, %p100
      %p102 = scmp.ne.s32.totalorder %s94, %s96
      %p103 = scmp.eq.s32.totalorder %s23, 1
      %p104 = por %p102, %p103
      %p105 = scmp.ne.s32.totalorder %s96, %s97
      %p106 = scmp.eq.s32.totalorder %s23, 0
      %p107 = por %p105, %p106
      %p108 = scmp.ne.s32.totalorder %s96, %s97
      %p109 = scmp.eq.s32.totalorder %s24, 1
      %p110 = por %p108, %p109
      %p112 = scmp.ne.s32.totalorder %s97, %s111
      %p113 = scmp.eq.s32.totalorder %s24, 0
      %p114 = por %p112, %p113
      %s115 = ssub.s32 %s18, %s25
      %p116 = scmp.eq.s32.totalorder %s115, 0
      %s118 = sadd.s32 %s117, 1
      %s119 = scalar_select %p116, %s117, %s118
      %p122 = pneg %p116
      %p123 = scmp.eq.s32.totalorder %s18, 1
      %p124 = por %p122, %p123
      %p125 = scmp.ne.s32.totalorder %s117, %s120
      %p126 = scmp.eq.s32.totalorder %s18, 0
      %p127 = por %p125, %p126
      %p128 = scmp.ne.s32.totalorder %s117, %s120
      %p129 = scmp.eq.s32.totalorder %s23, 1
      %p130 = por %p128, %p129
      %p131 = scmp.ne.s32.totalorder %s120, %s121
      %p132 = scmp.eq.s32.totalorder %s23, 0
      %p133 = por %p131, %p132
      %p134 = scmp.ne.s32.totalorder %s120, %s121
      %p135 = scmp.eq.s32.totalorder %s24, 1
      %p136 = por %p134, %p135
      %p138 = scmp.ne.s32.totalorder %s121, %s137
      %p139 = scmp.eq.s32.totalorder %s24, 0
      %p140 = por %p138, %p139
      %p141 = scmp.le.s32.totalorder 1, %s18
      %p142 = scmp.lt.s32.totalorder %s18, 3
      %p143 = pnand %p141, %p142
      %p144 = pneg %p143
      // Predicated region
      $region9: #{tpu_custom_call.1} parent=5 // pred_check
        _
      $region10: #{tpu_custom_call.1} parent=5 // pred_check_branch
        %146 = sbr.rel (%p143) target = $region12
      $region11: #{tpu_custom_call.1} parent=5 // pred_region
        %s147 = ssub.s32 %s18, 1
        // Predicated region
        $region13: #{tpu_custom_call.1} parent=11 // pred_check
          %p148 = pneg %p39
        $region14: #{tpu_custom_call.1} parent=11 // pred_check_branch
          %150 = sbr.rel (%p148) target = $region16
        $region15: #{tpu_custom_call.1} parent=11 // pred_region
          _
        $region16: #{tpu_custom_call.1} parent=11 // pred_fallthru
          _
        // Predicated region
        $region17: #{tpu_custom_call.1} parent=11 // pred_check
          %p151 = pneg %p86
        $region18: #{tpu_custom_call.1} parent=11 // pred_check_branch
          %153 = sbr.rel (%p151) target = $region20
        $region19: #{tpu_custom_call.1} parent=11 // pred_region
          %s155 = ssub.s32 512, 512
          %156 = vsyncadd [#allocation7], %s155
          %s157 = sshll.u32 [#allocation6], 4
          %s158 = int_to_ptr.vmem [resolvable:$true] %s157
          %163 = dma.hbm_to_vmem [thread:$0]  %s2, 512, %s158, [#allocation7], 64, 64, 4
        $region20: #{tpu_custom_call.1} parent=11 // pred_fallthru
          _
        // Predicated region
        $region21: #{tpu_custom_call.1} parent=11 // pred_check
          %p164 = pneg %p107
        $region22: #{tpu_custom_call.1} parent=11 // pred_check_branch
          %166 = sbr.rel (%p164) target = $region24
        $region23: #{tpu_custom_call.1} parent=11 // pred_region
          _
        $region24: #{tpu_custom_call.1} parent=11 // pred_fallthru
          _
      $region12: #{tpu_custom_call.1} parent=5 // pred_fallthru
        _
      %p167 = scmp.lt.s32.totalorder %s18, 2
      // Predicated region
      $region25: #{tpu_custom_call.1} parent=5 // pred_check
        %p168 = pneg %p167
      $region26: #{tpu_custom_call.1} parent=5 // pred_check_branch
        %170 = sbr.rel (%p168) target = $region28
      $region27: #{tpu_custom_call.1} parent=5 // pred_region
        // Predicated region
        $region29: #{tpu_custom_call.1} parent=27 // pred_check
          %p171 = pneg %p59
        $region30: #{tpu_custom_call.1} parent=27 // pred_check_branch
          %173 = sbr.rel (%p171) target = $region32
        $region31: #{tpu_custom_call.1} parent=27 // pred_region
          %s174 = sand.u32 %s49, 1
          %s175 = scalar_lea.sflag [#allocation4], %s174
          %s176 = sand.u32 %s49, 1
          %s177 = smul.addr %s176, 128
          %s178 = scalar_lea.vmem [#allocation3], %s177
          %s180 = ssub.s32 2048, 2048
          %181 = vsyncadd %s175, %s180
          %s182 = smul.addr %s18, 16
          %s183 = smul.addr %s182, 128
          %s184 = scalar_lea.hbm %s1, %s183
          %s185 = sshll.u32 %s178, 4
          %s186 = int_to_ptr.vmem [resolvable:$true] %s185
          %191 = dma.hbm_to_vmem [thread:$0]  %s184, 2048, %s186, %s175, 128, 128, 8
        $region32: #{tpu_custom_call.1} parent=27 // pred_fallthru
          _
      $region28: #{tpu_custom_call.1} parent=5 // pred_fallthru
        _
      %p192 = scmp.le.s32.totalorder 1, %s18
      %p193 = scmp.lt.s32.totalorder %s18, 3
      %p194 = pnand %p192, %p193
      %p195 = pneg %p194
      // Predicated region
      $region33: #{tpu_custom_call.1} parent=5 // pred_check
        _
      $region34: #{tpu_custom_call.1} parent=5 // pred_check_branch
        %197 = sbr.rel (%p194) target = $region36
      $region35: #{tpu_custom_call.1} parent=5 // pred_region
        %s198 = ssub.s32 %s18, 1
        %s199 = sand.u32 %s52, 1
        %s200 = scalar_lea.sflag [#allocation4], %s199
        %s201 = sand.u32 %s52, 1
        %s202 = smul.addr %s201, 128
        %s203 = scalar_lea.vmem [#allocation3], %s202
        // Predicated region
        $region37: #{tpu_custom_call.1} parent=35 // pred_check
          %p204 = pneg %p65
        $region38: #{tpu_custom_call.1} parent=35 // pred_check_branch
          %206 = sbr.rel (%p204) target = $region40
        $region39: #{tpu_custom_call.1} parent=35 // pred_region
          %207 = dma.done %s200, 2048
        $region40: #{tpu_custom_call.1} parent=35 // pred_fallthru
          _
        // Predicated region
        $region41: #{tpu_custom_call.1} parent=35 // pred_check
          %p208 = pneg %p86
        $region42: #{tpu_custom_call.1} parent=35 // pred_check_branch
          %210 = sbr.rel (%p208) target = $region44
        $region43: #{tpu_custom_call.1} parent=35 // pred_region
          %211 = dma.done [#allocation7], 512
        $region44: #{tpu_custom_call.1} parent=35 // pred_fallthru
          _
        %p212 = pneg %p39
        %p213 = pneg %p36
        %s214 = sand.u32 %s52, 1
        %s215 = scalar_lea.sflag [#allocation4], %s214
        %s216 = sand.u32 %s52, 1
        %s217 = smul.addr %s216, 128
        %s218 = scalar_lea.vmem [#allocation3], %s217
        %p219 = pneg %p65
        %p220 = pneg %p62
        %p221 = pneg %p86
        %p222 = pneg %p83
        %p223 = pneg %p107
        %p224 = pneg %p104
        %p225 = pneg %p133
        %p226 = pneg %p130
        %s227 = sand.u32 %s120, 1
        %s228 = scalar_lea.sflag [#allocation5], %s227
        %s229 = sand.u32 %s120, 1
        %s230 = smul.addr %s229, 128
        %s231 = scalar_lea.vmem [#allocation8], %s230
        %v233 = vld [vmem:[%s203] sm:$0xff]
        %v234 = vld [vmem:[%s203 + $0x8] sm:$0xff]
        %v235 = vld [vmem:[%s203 + $0x10] sm:$0xff]
        %v236 = vld [vmem:[%s203 + $0x18] sm:$0xff]
        %v237 = vld [vmem:[%s203 + $0x20] sm:$0xff]
        %v238 = vld [vmem:[%s203 + $0x28] sm:$0xff]
        %v239 = vld [vmem:[%s203 + $0x30] sm:$0xff]
        %v240 = vld [vmem:[%s203 + $0x38] sm:$0xff]
        %v241 = vld [vmem:[%s203 + $0x40] sm:$0xff]
        %v242 = vld [vmem:[%s203 + $0x48] sm:$0xff]
        %v243 = vld [vmem:[%s203 + $0x50] sm:$0xff]
        %v244 = vld [vmem:[%s203 + $0x58] sm:$0xff]
        %v245 = vld [vmem:[%s203 + $0x60] sm:$0xff]
        %v246 = vld [vmem:[%s203 + $0x68] sm:$0xff]
        %v247 = vld [vmem:[%s203 + $0x70] sm:$0xff]
        %v248 = vld [vmem:[%s203 + $0x78] sm:$0xff]
        %s249 = sld [smem:[#allocation2]]
        %v250 = vpack.c.bf16 %v234, %v233
        %v251 = vpack.c.bf16 %v236, %v235
        %v252 = vpack.c.bf16 %v238, %v237
        %v253 = vpack.c.bf16 %v240, %v239
        %v254 = vpack.c.bf16 %v242, %v241
        %v255 = vpack.c.bf16 %v244, %v243
        %v256 = vpack.c.bf16 %v246, %v245
        %v257 = vpack.c.bf16 %v248, %v247
        %v258 = vld [vmem:[#allocation6] sm:$0xf]
        %v259 = vld [vmem:[#allocation6 + $0x4] sm:$0xf]
        %v260 = vld [vmem:[#allocation6 + $0x8] sm:$0xf]
        %v261 = vld [vmem:[#allocation6 + $0xc] sm:$0xf]
        %v262 = vld [vmem:[#allocation6 + $0x10] sm:$0xf]
        %v263 = vld [vmem:[#allocation6 + $0x14] sm:$0xf]
        %v264 = vld [vmem:[#allocation6 + $0x18] sm:$0xf]
        %v265 = vld [vmem:[#allocation6 + $0x1c] sm:$0xf]
        %v266 = vld [vmem:[%s3] sm:$0x1]
        %v268 = vlaneseq
        %v269 = vshrl.u32 %v268, 7
        %v270 = vsub.s32 0, %v269
        %v271 = vrot.slane %v266, %v270
        %v281 = vunpack.c.l.b16 %v258
        %v282 = vunpack.c.l.b16 %v259
        %v283 = vunpack.c.l.b16 %v260
        %v284 = vunpack.c.l.b16 %v261
        %v285 = vunpack.c.l.b16 %v262
        %v286 = vunpack.c.l.b16 %v263
        %v287 = vunpack.c.l.b16 %v264
        %v288 = vunpack.c.l.b16 %v265
        %v289 = vpack.c.b16 %v282, %v281
        %v290 = vpack.c.b16 %v284, %v283
        %v291 = vpack.c.b16 %v286, %v285
        %v292 = vpack.c.b16 %v288, %v287
        %vm297 = vcmask 523264
        %v299 = vsel %vm297, %v250, 0
        %v302 = vsel %vm297, %v251, 0
        %v305 = vsel %vm297, %v252, 0
        %v308 = vsel %vm297, %v253, 0
        %v311 = vsel %vm297, %v254, 0
        %v314 = vsel %vm297, %v255, 0
        %v317 = vsel %vm297, %v256, 0
        %v320 = vsel %vm297, %v257, 0
        %322 = vmatprep.subr.bf16.mxu0 0
        %323 = vmatpush1.bf16.msra.mxu0 0
        %324 = vmatprep.subr.bf16.mxu0 0
        %325 = vmatpush1.bf16.msra.mxu0 0
        %326 = vmatprep.subr.bf16.mxu0 0
        %327 = vmatpush1.bf16.msra.mxu0 0
        %328 = vmatprep.subr.bf16.mxu0 0
        %329 = vmatpush1.bf16.msra.mxu0 0
        %330 = vmatprep.subr.bf16.mxu0 0
        %331 = vmatpush1.bf16.msra.mxu0 %v292
        %332 = vmatprep.subr.bf16.mxu0 0
        %333 = vmatpush1.bf16.msra.mxu0 %v291
        %334 = vmatprep.subr.bf16.mxu0 0
        %335 = vmatpush1.bf16.msra.mxu0 %v290
        %336 = vmatprep.subr.bf16.mxu0 0
        %337 = vmatpush1.bf16.msra.mxu0 %v289
        %338 = vmatprep.subr.bf16.mxu0 0
        %339 = vmatpush2.bf16.msra.mxu0 0
        %340 = vmatprep.subr.bf16.mxu0 0
        %341 = vmatpush2.bf16.msra.mxu0 0
        %342 = vmatprep.subr.bf16.mxu0 0
        %343 = vmatpush2.bf16.msra.mxu0 0
        %344 = vmatprep.subr.bf16.mxu0 0
        %345 = vmatpush2.bf16.msra.mxu0 0
        %346 = vmatprep.subr.bf16.mxu0 0
        %347 = vmatpush2.bf16.msra.mxu0 0
        %348 = vmatprep.subr.bf16.mxu0 0
        %349 = vmatpush2.bf16.msra.mxu0 0
        %350 = vmatprep.subr.bf16.mxu0 0
        %351 = vmatpush2.bf16.msra.mxu0 0
        %352 = vmatprep.subr.bf16.mxu0 0
        %353 = vmatpush2.bf16.msra.mxu0 0
        %354 = vmatprep.mubr.bf16.mxu0 0
        %355 = vmatmul.mubr.bf16.gmra.mxu0 %v299
        %v356 = vpop.f32.mrf.mxu0
        %v357 = vadd.f32 %v271, %v356
        %v358 = vpop.f32.mrf.mxu0
        %v359 = vpop.f32.mrf.mxu0
        %v360 = vadd.f32 %v271, %v359
        %v361 = vpop.f32.mrf.mxu0
        %362 = vmatprep.mubr.bf16.mxu0 0
        %363 = vmatmul.mubr.bf16.gmra.mxu0 %v302
        %v364 = vpop.f32.mrf.mxu0
        %v365 = vadd.f32 %v271, %v364
        %v366 = vpop.f32.mrf.mxu0
        %v367 = vpop.f32.mrf.mxu0
        %v368 = vadd.f32 %v271, %v367
        %v369 = vpop.f32.mrf.mxu0
        %370 = vmatprep.mubr.bf16.mxu0 0
        %371 = vmatmul.mubr.bf16.gmra.mxu0 %v305
        %v372 = vpop.f32.mrf.mxu0
        %v373 = vadd.f32 %v271, %v372
        %v374 = vpop.f32.mrf.mxu0
        %v375 = vpop.f32.mrf.mxu0
        %v376 = vadd.f32 %v271, %v375
        %v377 = vpop.f32.mrf.mxu0
        %378 = vmatprep.mubr.bf16.mxu0 0
        %379 = vmatmul.mubr.bf16.gmra.mxu0 %v308
        %v380 = vpop.f32.mrf.mxu0
        %v381 = vadd.f32 %v271, %v380
        %v382 = vpop.f32.mrf.mxu0
        %v383 = vpop.f32.mrf.mxu0
        %v384 = vadd.f32 %v271, %v383
        %v385 = vpop.f32.mrf.mxu0
        %386 = vmatprep.mubr.bf16.mxu0 0
        %387 = vmatmul.mubr.bf16.gmra.mxu0 %v311
        %v388 = vpop.f32.mrf.mxu0
        %v389 = vadd.f32 %v271, %v388
        %v390 = vpop.f32.mrf.mxu0
        %v391 = vpop.f32.mrf.mxu0
        %v392 = vadd.f32 %v271, %v391
        %v393 = vpop.f32.mrf.mxu0
        %394 = vmatprep.mubr.bf16.mxu0 0
        %395 = vmatmul.mubr.bf16.gmra.mxu0 %v314
        %v396 = vpop.f32.mrf.mxu0
        %v397 = vadd.f32 %v271, %v396
        %v398 = vpop.f32.mrf.mxu0
        %v399 = vpop.f32.mrf.mxu0
        %v400 = vadd.f32 %v271, %v399
        %v401 = vpop.f32.mrf.mxu0
        %402 = vmatprep.mubr.bf16.mxu0 0
        %403 = vmatmul.mubr.bf16.gmra.mxu0 %v317
        %v404 = vpop.f32.mrf.mxu0
        %v405 = vadd.f32 %v271, %v404
        %v406 = vpop.f32.mrf.mxu0
        %v407 = vpop.f32.mrf.mxu0
        %v408 = vadd.f32 %v271, %v407
        %v409 = vpop.f32.mrf.mxu0
        %410 = vmatprep.mubr.bf16.mxu0 0
        %411 = vmatmul.mubr.bf16.gmra.mxu0 %v320
        %v412 = vpop.f32.mrf.mxu0
        %v413 = vadd.f32 %v271, %v412
        %v414 = vpop.f32.mrf.mxu0
        %v415 = vpop.f32.mrf.mxu0
        %v416 = vadd.f32 %v271, %v415
        %v417 = vpop.f32.mrf.mxu0
        %418 = vdwg.mxu0
        %435 = vrot.lane.b32.xlu0 %v357, 64
        %v436 = vpop.permute.xlu0 %435
        %437 = vrot.lane.b32.xlu0 %v360, 64
        %v438 = vpop.permute.xlu0 %437
        %439 = vrot.lane.b32.xlu0 %v365, 64
        %v440 = vpop.permute.xlu0 %439
        %441 = vrot.lane.b32.xlu0 %v368, 64
        %v442 = vpop.permute.xlu0 %441
        %443 = vrot.lane.b32.xlu0 %v373, 64
        %v444 = vpop.permute.xlu0 %443
        %445 = vrot.lane.b32.xlu0 %v376, 64
        %v446 = vpop.permute.xlu0 %445
        %447 = vrot.lane.b32.xlu0 %v381, 64
        %v448 = vpop.permute.xlu0 %447
        %449 = vrot.lane.b32.xlu0 %v384, 64
        %v450 = vpop.permute.xlu0 %449
        %451 = vrot.lane.b32.xlu0 %v389, 64
        %v452 = vpop.permute.xlu0 %451
        %453 = vrot.lane.b32.xlu0 %v392, 64
        %v454 = vpop.permute.xlu0 %453
        %455 = vrot.lane.b32.xlu0 %v397, 64
        %v456 = vpop.permute.xlu0 %455
        %457 = vrot.lane.b32.xlu0 %v400, 64
        %v458 = vpop.permute.xlu0 %457
        %459 = vrot.lane.b32.xlu0 %v405, 64
        %v460 = vpop.permute.xlu0 %459
        %461 = vrot.lane.b32.xlu0 %v408, 64
        %v462 = vpop.permute.xlu0 %461
        %463 = vrot.lane.b32.xlu0 %v413, 64
        %v464 = vpop.permute.xlu0 %463
        %465 = vrot.lane.b32.xlu0 %v416, 64
        %v466 = vpop.permute.xlu0 %465
        %v483 = vcombine.low %v436, %v440
        %v484 = vcombine.high %v436, %v440
        %v486 = vunpack.c.l.s4 1983009808
        %v487 = vunpack.c.0.s8 %v486
        %v488 = vlaneseq
        %v489 = vshrl.u32 %v488, 7
        %v490 = vsub.s32 %v487, %v489
        %v491 = vrot.slane %v483, %v490
        %v493 = vunpack.c.l.s4 1983009808
        %v494 = vunpack.c.0.s8 %v493
        %v495 = vlaneseq
        %v496 = vshrl.u32 %v495, 7
        %v497 = vsub.s32 %v494, %v496
        %v498 = vrot.slane %v484, %v497
        %v499 = vcombine.low %v438, %v442
        %v500 = vcombine.high %v438, %v442
        %v502 = vunpack.c.l.s4 1983009808
        %v503 = vunpack.c.0.s8 %v502
        %v504 = vlaneseq
        %v505 = vshrl.u32 %v504, 7
        %v506 = vsub.s32 %v503, %v505
        %v507 = vrot.slane %v499, %v506
        %v509 = vunpack.c.l.s4 1983009808
        %v510 = vunpack.c.0.s8 %v509
        %v511 = vlaneseq
        %v512 = vshrl.u32 %v511, 7
        %v513 = vsub.s32 %v510, %v512
        %v514 = vrot.slane %v500, %v513
        %v515 = vcombine.low %v444, %v448
        %v516 = vcombine.high %v444, %v448
        %v518 = vunpack.c.l.s4 1983009808
        %v519 = vunpack.c.0.s8 %v518
        %v520 = vlaneseq
        %v521 = vshrl.u32 %v520, 7
        %v522 = vsub.s32 %v519, %v521
        %v523 = vrot.slane %v515, %v522
        %v525 = vunpack.c.l.s4 1983009808
        %v526 = vunpack.c.0.s8 %v525
        %v527 = vlaneseq
        %v528 = vshrl.u32 %v527, 7
        %v529 = vsub.s32 %v526, %v528
        %v530 = vrot.slane %v516, %v529
        %v531 = vcombine.low %v446, %v450
        %v532 = vcombine.high %v446, %v450
        %v534 = vunpack.c.l.s4 1983009808
        %v535 = vunpack.c.0.s8 %v534
        %v536 = vlaneseq
        %v537 = vshrl.u32 %v536, 7
        %v538 = vsub.s32 %v535, %v537
        %v539 = vrot.slane %v531, %v538
        %v541 = vunpack.c.l.s4 1983009808
        %v542 = vunpack.c.0.s8 %v541
        %v543 = vlaneseq
        %v544 = vshrl.u32 %v543, 7
        %v545 = vsub.s32 %v542, %v544
        %v546 = vrot.slane %v532, %v545
        %v547 = vcombine.low %v491, %v507
        %v548 = vcombine.high %v491, %v507
        %v550 = vunpack.c.l.s4 1934713408
        %v551 = vunpack.c.0.s8 %v550
        %v552 = vlaneseq
        %v553 = vshrl.u32 %v552, 7
        %v554 = vsub.s32 %v551, %v553
        %v555 = vrot.slane %v547, %v554
        %v557 = vunpack.c.l.s4 1934713408
        %v558 = vunpack.c.0.s8 %v557
        %v559 = vlaneseq
        %v560 = vshrl.u32 %v559, 7
        %v561 = vsub.s32 %v558, %v560
        %v562 = vrot.slane %v548, %v561
        %v563 = vcombine.low %v498, %v514
        %v564 = vcombine.high %v498, %v514
        %v566 = vunpack.c.l.s4 1934713408
        %v567 = vunpack.c.0.s8 %v566
        %v568 = vlaneseq
        %v569 = vshrl.u32 %v568, 7
        %v570 = vsub.s32 %v567, %v569
        %v571 = vrot.slane %v563, %v570
        %v573 = vunpack.c.l.s4 1934713408
        %v574 = vunpack.c.0.s8 %v573
        %v575 = vlaneseq
        %v576 = vshrl.u32 %v575, 7
        %v577 = vsub.s32 %v574, %v576
        %v578 = vrot.slane %v564, %v577
        %v579 = vcombine.low %v523, %v539
        %v580 = vcombine.high %v523, %v539
        %v582 = vunpack.c.l.s4 1934713408
        %v583 = vunpack.c.0.s8 %v582
        %v584 = vlaneseq
        %v585 = vshrl.u32 %v584, 7
        %v586 = vsub.s32 %v583, %v585
        %v587 = vrot.slane %v579, %v586
        %v589 = vunpack.c.l.s4 1934713408
        %v590 = vunpack.c.0.s8 %v589
        %v591 = vlaneseq
        %v592 = vshrl.u32 %v591, 7
        %v593 = vsub.s32 %v590, %v592
        %v594 = vrot.slane %v580, %v593
        %v595 = vcombine.low %v530, %v546
        %v596 = vcombine.high %v530, %v546
        %v598 = vunpack.c.l.s4 1934713408
        %v599 = vunpack.c.0.s8 %v598
        %v600 = vlaneseq
        %v601 = vshrl.u32 %v600, 7
        %v602 = vsub.s32 %v599, %v601
        %v603 = vrot.slane %v595, %v602
        %v605 = vunpack.c.l.s4 1934713408
        %v606 = vunpack.c.0.s8 %v605
        %v607 = vlaneseq
        %v608 = vshrl.u32 %v607, 7
        %v609 = vsub.s32 %v606, %v608
        %v610 = vrot.slane %v596, %v609
        %v611 = vcombine.low %v555, %v587
        %v612 = vcombine.high %v555, %v587
        %v613 = vcombine.low %v562, %v594
        %v614 = vcombine.high %v562, %v594
        %v615 = vcombine.low %v571, %v603
        %v616 = vcombine.high %v571, %v603
        %v617 = vcombine.low %v578, %v610
        %v618 = vcombine.high %v578, %v610
        %v619 = vcombine.low %v452, %v456
        %v620 = vcombine.high %v452, %v456
        %v622 = vunpack.c.l.s4 1983009808
        %v623 = vunpack.c.0.s8 %v622
        %v624 = vlaneseq
        %v625 = vshrl.u32 %v624, 7
        %v626 = vsub.s32 %v623, %v625
        %v627 = vrot.slane %v619, %v626
        %v629 = vunpack.c.l.s4 1983009808
        %v630 = vunpack.c.0.s8 %v629
        %v631 = vlaneseq
        %v632 = vshrl.u32 %v631, 7
        %v633 = vsub.s32 %v630, %v632
        %v634 = vrot.slane %v620, %v633
        %v635 = vcombine.low %v454, %v458
        %v636 = vcombine.high %v454, %v458
        %v638 = vunpack.c.l.s4 1983009808
        %v639 = vunpack.c.0.s8 %v638
        %v640 = vlaneseq
        %v641 = vshrl.u32 %v640, 7
        %v642 = vsub.s32 %v639, %v641
        %v643 = vrot.slane %v635, %v642
        %v645 = vunpack.c.l.s4 1983009808
        %v646 = vunpack.c.0.s8 %v645
        %v647 = vlaneseq
        %v648 = vshrl.u32 %v647, 7
        %v649 = vsub.s32 %v646, %v648
        %v650 = vrot.slane %v636, %v649
        %v651 = vcombine.low %v460, %v464
        %v652 = vcombine.high %v460, %v464
        %v654 = vunpack.c.l.s4 1983009808
        %v655 = vunpack.c.0.s8 %v654
        %v656 = vlaneseq
        %v657 = vshrl.u32 %v656, 7
        %v658 = vsub.s32 %v655, %v657
        %v659 = vrot.slane %v651, %v658
        %v661 = vunpack.c.l.s4 1983009808
        %v662 = vunpack.c.0.s8 %v661
        %v663 = vlaneseq
        %v664 = vshrl.u32 %v663, 7
        %v665 = vsub.s32 %v662, %v664
        %v666 = vrot.slane %v652, %v665
        %v667 = vcombine.low %v462, %v466
        %v668 = vcombine.high %v462, %v466
        %v670 = vunpack.c.l.s4 1983009808
        %v671 = vunpack.c.0.s8 %v670
        %v672 = vlaneseq
        %v673 = vshrl.u32 %v672, 7
        %v674 = vsub.s32 %v671, %v673
        %v675 = vrot.slane %v667, %v674
        %v677 = vunpack.c.l.s4 1983009808
        %v678 = vunpack.c.0.s8 %v677
        %v679 = vlaneseq
        %v680 = vshrl.u32 %v679, 7
        %v681 = vsub.s32 %v678, %v680
        %v682 = vrot.slane %v668, %v681
        %v683 = vcombine.low %v627, %v643
        %v684 = vcombine.high %v627, %v643
        %v686 = vunpack.c.l.s4 1934713408
        %v687 = vunpack.c.0.s8 %v686
        %v688 = vlaneseq
        %v689 = vshrl.u32 %v688, 7
        %v690 = vsub.s32 %v687, %v689
        %v691 = vrot.slane %v683, %v690
        %v693 = vunpack.c.l.s4 1934713408
        %v694 = vunpack.c.0.s8 %v693
        %v695 = vlaneseq
        %v696 = vshrl.u32 %v695, 7
        %v697 = vsub.s32 %v694, %v696
        %v698 = vrot.slane %v684, %v697
        %v699 = vcombine.low %v634, %v650
        %v700 = vcombine.high %v634, %v650
        %v702 = vunpack.c.l.s4 1934713408
        %v703 = vunpack.c.0.s8 %v702
        %v704 = vlaneseq
        %v705 = vshrl.u32 %v704, 7
        %v706 = vsub.s32 %v703, %v705
        %v707 = vrot.slane %v699, %v706
        %v709 = vunpack.c.l.s4 1934713408
        %v710 = vunpack.c.0.s8 %v709
        %v711 = vlaneseq
        %v712 = vshrl.u32 %v711, 7
        %v713 = vsub.s32 %v710, %v712
        %v714 = vrot.slane %v700, %v713
        %v715 = vcombine.low %v659, %v675
        %v716 = vcombine.high %v659, %v675
        %v718 = vunpack.c.l.s4 1934713408
        %v719 = vunpack.c.0.s8 %v718
        %v720 = vlaneseq
        %v721 = vshrl.u32 %v720, 7
        %v722 = vsub.s32 %v719, %v721
        %v723 = vrot.slane %v715, %v722
        %v725 = vunpack.c.l.s4 1934713408
        %v726 = vunpack.c.0.s8 %v725
        %v727 = vlaneseq
        %v728 = vshrl.u32 %v727, 7
        %v729 = vsub.s32 %v726, %v728
        %v730 = vrot.slane %v716, %v729
        %v731 = vcombine.low %v666, %v682
        %v732 = vcombine.high %v666, %v682
        %v734 = vunpack.c.l.s4 1934713408
        %v735 = vunpack.c.0.s8 %v734
        %v736 = vlaneseq
        %v737 = vshrl.u32 %v736, 7
        %v738 = vsub.s32 %v735, %v737
        %v739 = vrot.slane %v731, %v738
        %v741 = vunpack.c.l.s4 1934713408
        %v742 = vunpack.c.0.s8 %v741
        %v743 = vlaneseq
        %v744 = vshrl.u32 %v743, 7
        %v745 = vsub.s32 %v742, %v744
        %v746 = vrot.slane %v732, %v745
        %v747 = vcombine.low %v691, %v723
        %v748 = vcombine.high %v691, %v723
        %v749 = vcombine.low %v698, %v730
        %v750 = vcombine.high %v698, %v730
        %v751 = vcombine.low %v707, %v739
        %v752 = vcombine.high %v707, %v739
        %v753 = vcombine.low %v714, %v746
        %v754 = vcombine.high %v714, %v746
        %755 = vrot.lane.b32.xlu0 %v357, 56
        %v756 = vpop.permute.xlu0 %755
        %757 = vrot.lane.b32.xlu0 %v360, 56
        %v758 = vpop.permute.xlu0 %757
        %759 = vrot.lane.b32.xlu0 %v365, 56
        %v760 = vpop.permute.xlu0 %759
        %761 = vrot.lane.b32.xlu0 %v368, 56
        %v762 = vpop.permute.xlu0 %761
        %763 = vrot.lane.b32.xlu0 %v373, 56
        %v764 = vpop.permute.xlu0 %763
        %765 = vrot.lane.b32.xlu0 %v376, 56
        %v766 = vpop.permute.xlu0 %765
        %767 = vrot.lane.b32.xlu0 %v381, 56
        %v768 = vpop.permute.xlu0 %767
        %769 = vrot.lane.b32.xlu0 %v384, 56
        %v770 = vpop.permute.xlu0 %769
        %771 = vrot.lane.b32.xlu0 %v389, 56
        %v772 = vpop.permute.xlu0 %771
        %773 = vrot.lane.b32.xlu0 %v392, 56
        %v774 = vpop.permute.xlu0 %773
        %775 = vrot.lane.b32.xlu0 %v397, 56
        %v776 = vpop.permute.xlu0 %775
        %777 = vrot.lane.b32.xlu0 %v400, 56
        %v778 = vpop.permute.xlu0 %777
        %779 = vrot.lane.b32.xlu0 %v405, 56
        %v780 = vpop.permute.xlu0 %779
        %781 = vrot.lane.b32.xlu0 %v408, 56
        %v782 = vpop.permute.xlu0 %781
        %783 = vrot.lane.b32.xlu0 %v413, 56
        %v784 = vpop.permute.xlu0 %783
        %785 = vrot.lane.b32.xlu0 %v416, 56
        %v786 = vpop.permute.xlu0 %785
        %v803 = vcombine.low %v756, %v760
        %v804 = vcombine.high %v756, %v760
        %v806 = vunpack.c.l.s4 1983009808
        %v807 = vunpack.c.0.s8 %v806
        %v808 = vlaneseq
        %v809 = vshrl.u32 %v808, 7
        %v810 = vsub.s32 %v807, %v809
        %v811 = vrot.slane %v803, %v810
        %v813 = vunpack.c.l.s4 1983009808
        %v814 = vunpack.c.0.s8 %v813
        %v815 = vlaneseq
        %v816 = vshrl.u32 %v815, 7
        %v817 = vsub.s32 %v814, %v816
        %v818 = vrot.slane %v804, %v817
        %v819 = vcombine.low %v758, %v762
        %v820 = vcombine.high %v758, %v762
        %v822 = vunpack.c.l.s4 1983009808
        %v823 = vunpack.c.0.s8 %v822
        %v824 = vlaneseq
        %v825 = vshrl.u32 %v824, 7
        %v826 = vsub.s32 %v823, %v825
        %v827 = vrot.slane %v819, %v826
        %v829 = vunpack.c.l.s4 1983009808
        %v830 = vunpack.c.0.s8 %v829
        %v831 = vlaneseq
        %v832 = vshrl.u32 %v831, 7
        %v833 = vsub.s32 %v830, %v832
        %v834 = vrot.slane %v820, %v833
        %v835 = vcombine.low %v764, %v768
        %v836 = vcombine.high %v764, %v768
        %v838 = vunpack.c.l.s4 1983009808
        %v839 = vunpack.c.0.s8 %v838
        %v840 = vlaneseq
        %v841 = vshrl.u32 %v840, 7
        %v842 = vsub.s32 %v839, %v841
        %v843 = vrot.slane %v835, %v842
        %v845 = vunpack.c.l.s4 1983009808
        %v846 = vunpack.c.0.s8 %v845
        %v847 = vlaneseq
        %v848 = vshrl.u32 %v847, 7
        %v849 = vsub.s32 %v846, %v848
        %v850 = vrot.slane %v836, %v849
        %v851 = vcombine.low %v766, %v770
        %v852 = vcombine.high %v766, %v770
        %v854 = vunpack.c.l.s4 1983009808
        %v855 = vunpack.c.0.s8 %v854
        %v856 = vlaneseq
        %v857 = vshrl.u32 %v856, 7
        %v858 = vsub.s32 %v855, %v857
        %v859 = vrot.slane %v851, %v858
        %v861 = vunpack.c.l.s4 1983009808
        %v862 = vunpack.c.0.s8 %v861
        %v863 = vlaneseq
        %v864 = vshrl.u32 %v863, 7
        %v865 = vsub.s32 %v862, %v864
        %v866 = vrot.slane %v852, %v865
        %v867 = vcombine.low %v811, %v827
        %v868 = vcombine.high %v811, %v827
        %v870 = vunpack.c.l.s4 1934713408
        %v871 = vunpack.c.0.s8 %v870
        %v872 = vlaneseq
        %v873 = vshrl.u32 %v872, 7
        %v874 = vsub.s32 %v871, %v873
        %v875 = vrot.slane %v867, %v874
        %v877 = vunpack.c.l.s4 1934713408
        %v878 = vunpack.c.0.s8 %v877
        %v879 = vlaneseq
        %v880 = vshrl.u32 %v879, 7
        %v881 = vsub.s32 %v878, %v880
        %v882 = vrot.slane %v868, %v881
        %v883 = vcombine.low %v818, %v834
        %v884 = vcombine.high %v818, %v834
        %v886 = vunpack.c.l.s4 1934713408
        %v887 = vunpack.c.0.s8 %v886
        %v888 = vlaneseq
        %v889 = vshrl.u32 %v888, 7
        %v890 = vsub.s32 %v887, %v889
        %v891 = vrot.slane %v883, %v890
        %v893 = vunpack.c.l.s4 1934713408
        %v894 = vunpack.c.0.s8 %v893
        %v895 = vlaneseq
        %v896 = vshrl.u32 %v895, 7
        %v897 = vsub.s32 %v894, %v896
        %v898 = vrot.slane %v884, %v897
        %v899 = vcombine.low %v843, %v859
        %v900 = vcombine.high %v843, %v859
        %v902 = vunpack.c.l.s4 1934713408
        %v903 = vunpack.c.0.s8 %v902
        %v904 = vlaneseq
        %v905 = vshrl.u32 %v904, 7
        %v906 = vsub.s32 %v903, %v905
        %v907 = vrot.slane %v899, %v906
        %v909 = vunpack.c.l.s4 1934713408
        %v910 = vunpack.c.0.s8 %v909
        %v911 = vlaneseq
        %v912 = vshrl.u32 %v911, 7
        %v913 = vsub.s32 %v910, %v912
        %v914 = vrot.slane %v900, %v913
        %v915 = vcombine.low %v850, %v866
        %v916 = vcombine.high %v850, %v866
        %v918 = vunpack.c.l.s4 1934713408
        %v919 = vunpack.c.0.s8 %v918
        %v920 = vlaneseq
        %v921 = vshrl.u32 %v920, 7
        %v922 = vsub.s32 %v919, %v921
        %v923 = vrot.slane %v915, %v922
        %v925 = vunpack.c.l.s4 1934713408
        %v926 = vunpack.c.0.s8 %v925
        %v927 = vlaneseq
        %v928 = vshrl.u32 %v927, 7
        %v929 = vsub.s32 %v926, %v928
        %v930 = vrot.slane %v916, %v929
        %v931 = vcombine.low %v875, %v907
        %v932 = vcombine.high %v875, %v907
        %v933 = vcombine.low %v882, %v914
        %v934 = vcombine.high %v882, %v914
        %v935 = vcombine.low %v891, %v923
        %v936 = vcombine.high %v891, %v923
        %v937 = vcombine.low %v898, %v930
        %v938 = vcombine.high %v898, %v930
        %v939 = vcombine.low %v772, %v776
        %v940 = vcombine.high %v772, %v776
        %v942 = vunpack.c.l.s4 1983009808
        %v943 = vunpack.c.0.s8 %v942
        %v944 = vlaneseq
        %v945 = vshrl.u32 %v944, 7
        %v946 = vsub.s32 %v943, %v945
        %v947 = vrot.slane %v939, %v946
        %v949 = vunpack.c.l.s4 1983009808
        %v950 = vunpack.c.0.s8 %v949
        %v951 = vlaneseq
        %v952 = vshrl.u32 %v951, 7
        %v953 = vsub.s32 %v950, %v952
        %v954 = vrot.slane %v940, %v953
        %v955 = vcombine.low %v774, %v778
        %v956 = vcombine.high %v774, %v778
        %v958 = vunpack.c.l.s4 1983009808
        %v959 = vunpack.c.0.s8 %v958
        %v960 = vlaneseq
        %v961 = vshrl.u32 %v960, 7
        %v962 = vsub.s32 %v959, %v961
        %v963 = vrot.slane %v955, %v962
        %v965 = vunpack.c.l.s4 1983009808
        %v966 = vunpack.c.0.s8 %v965
        %v967 = vlaneseq
        %v968 = vshrl.u32 %v967, 7
        %v969 = vsub.s32 %v966, %v968
        %v970 = vrot.slane %v956, %v969
        %v971 = vcombine.low %v780, %v784
        %v972 = vcombine.high %v780, %v784
        %v974 = vunpack.c.l.s4 1983009808
        %v975 = vunpack.c.0.s8 %v974
        %v976 = vlaneseq
        %v977 = vshrl.u32 %v976, 7
        %v978 = vsub.s32 %v975, %v977
        %v979 = vrot.slane %v971, %v978
        %v981 = vunpack.c.l.s4 1983009808
        %v982 = vunpack.c.0.s8 %v981
        %v983 = vlaneseq
        %v984 = vshrl.u32 %v983, 7
        %v985 = vsub.s32 %v982, %v984
        %v986 = vrot.slane %v972, %v985
        %v987 = vcombine.low %v782, %v786
        %v988 = vcombine.high %v782, %v786
        %v990 = vunpack.c.l.s4 1983009808
        %v991 = vunpack.c.0.s8 %v990
        %v992 = vlaneseq
        %v993 = vshrl.u32 %v992, 7
        %v994 = vsub.s32 %v991, %v993
        %v995 = vrot.slane %v987, %v994
        %v997 = vunpack.c.l.s4 1983009808
        %v998 = vunpack.c.0.s8 %v997
        %v999 = vlaneseq
        %v1000 = vshrl.u32 %v999, 7
        %v1001 = vsub.s32 %v998, %v1000
        %v1002 = vrot.slane %v988, %v1001
        %v1003 = vcombine.low %v947, %v963
        %v1004 = vcombine.high %v947, %v963
        %v1006 = vunpack.c.l.s4 1934713408
        %v1007 = vunpack.c.0.s8 %v1006
        %v1008 = vlaneseq
        %v1009 = vshrl.u32 %v1008, 7
        %v1010 = vsub.s32 %v1007, %v1009
        %v1011 = vrot.slane %v1003, %v1010
        %v1013 = vunpack.c.l.s4 1934713408
        %v1014 = vunpack.c.0.s8 %v1013
        %v1015 = vlaneseq
        %v1016 = vshrl.u32 %v1015, 7
        %v1017 = vsub.s32 %v1014, %v1016
        %v1018 = vrot.slane %v1004, %v1017
        %v1019 = vcombine.low %v954, %v970
        %v1020 = vcombine.high %v954, %v970
        %v1022 = vunpack.c.l.s4 1934713408
        %v1023 = vunpack.c.0.s8 %v1022
        %v1024 = vlaneseq
        %v1025 = vshrl.u32 %v1024, 7
        %v1026 = vsub.s32 %v1023, %v1025
        %v1027 = vrot.slane %v1019, %v1026
        %v1029 = vunpack.c.l.s4 1934713408
        %v1030 = vunpack.c.0.s8 %v1029
        %v1031 = vlaneseq
        %v1032 = vshrl.u32 %v1031, 7
        %v1033 = vsub.s32 %v1030, %v1032
        %v1034 = vrot.slane %v1020, %v1033
        %v1035 = vcombine.low %v979, %v995
        %v1036 = vcombine.high %v979, %v995
        %v1038 = vunpack.c.l.s4 1934713408
        %v1039 = vunpack.c.0.s8 %v1038
        %v1040 = vlaneseq
        %v1041 = vshrl.u32 %v1040, 7
        %v1042 = vsub.s32 %v1039, %v1041
        %v1043 = vrot.slane %v1035, %v1042
        %v1045 = vunpack.c.l.s4 1934713408
        %v1046 = vunpack.c.0.s8 %v1045
        %v1047 = vlaneseq
        %v1048 = vshrl.u32 %v1047, 7
        %v1049 = vsub.s32 %v1046, %v1048
        %v1050 = vrot.slane %v1036, %v1049
        %v1051 = vcombine.low %v986, %v1002
        %v1052 = vcombine.high %v986, %v1002
        %v1054 = vunpack.c.l.s4 1934713408
        %v1055 = vunpack.c.0.s8 %v1054
        %v1056 = vlaneseq
        %v1057 = vshrl.u32 %v1056, 7
        %v1058 = vsub.s32 %v1055, %v1057
        %v1059 = vrot.slane %v1051, %v1058
        %v1061 = vunpack.c.l.s4 1934713408
        %v1062 = vunpack.c.0.s8 %v1061
        %v1063 = vlaneseq
        %v1064 = vshrl.u32 %v1063, 7
        %v1065 = vsub.s32 %v1062, %v1064
        %v1066 = vrot.slane %v1052, %v1065
        %v1067 = vcombine.low %v1011, %v1043
        %v1068 = vcombine.high %v1011, %v1043
        %v1069 = vcombine.low %v1018, %v1050
        %v1070 = vcombine.high %v1018, %v1050
        %v1071 = vcombine.low %v1027, %v1059
        %v1072 = vcombine.high %v1027, %v1059
        %v1073 = vcombine.low %v1034, %v1066
        %v1074 = vcombine.high %v1034, %v1066
        %v1075 = vcombine.low %v357, %v365
        %v1076 = vcombine.high %v357, %v365
        %v1078 = vunpack.c.l.s4 1983009808
        %v1079 = vunpack.c.0.s8 %v1078
        %v1080 = vlaneseq
        %v1081 = vshrl.u32 %v1080, 7
        %v1082 = vsub.s32 %v1079, %v1081
        %v1083 = vrot.slane %v1075, %v1082
        %v1085 = vunpack.c.l.s4 1983009808
        %v1086 = vunpack.c.0.s8 %v1085
        %v1087 = vlaneseq
        %v1088 = vshrl.u32 %v1087, 7
        %v1089 = vsub.s32 %v1086, %v1088
        %v1090 = vrot.slane %v1076, %v1089
        %v1091 = vcombine.low %v360, %v368
        %v1092 = vcombine.high %v360, %v368
        %v1094 = vunpack.c.l.s4 1983009808
        %v1095 = vunpack.c.0.s8 %v1094
        %v1096 = vlaneseq
        %v1097 = vshrl.u32 %v1096, 7
        %v1098 = vsub.s32 %v1095, %v1097
        %v1099 = vrot.slane %v1091, %v1098
        %v1101 = vunpack.c.l.s4 1983009808
        %v1102 = vunpack.c.0.s8 %v1101
        %v1103 = vlaneseq
        %v1104 = vshrl.u32 %v1103, 7
        %v1105 = vsub.s32 %v1102, %v1104
        %v1106 = vrot.slane %v1092, %v1105
        %v1107 = vcombine.low %v373, %v381
        %v1108 = vcombine.high %v373, %v381
        %v1110 = vunpack.c.l.s4 1983009808
        %v1111 = vunpack.c.0.s8 %v1110
        %v1112 = vlaneseq
        %v1113 = vshrl.u32 %v1112, 7
        %v1114 = vsub.s32 %v1111, %v1113
        %v1115 = vrot.slane %v1107, %v1114
        %v1117 = vunpack.c.l.s4 1983009808
        %v1118 = vunpack.c.0.s8 %v1117
        %v1119 = vlaneseq
        %v1120 = vshrl.u32 %v1119, 7
        %v1121 = vsub.s32 %v1118, %v1120
        %v1122 = vrot.slane %v1108, %v1121
        %v1123 = vcombine.low %v376, %v384
        %v1124 = vcombine.high %v376, %v384
        %v1126 = vunpack.c.l.s4 1983009808
        %v1127 = vunpack.c.0.s8 %v1126
        %v1128 = vlaneseq
        %v1129 = vshrl.u32 %v1128, 7
        %v1130 = vsub.s32 %v1127, %v1129
        %v1131 = vrot.slane %v1123, %v1130
        %v1133 = vunpack.c.l.s4 1983009808
        %v1134 = vunpack.c.0.s8 %v1133
        %v1135 = vlaneseq
        %v1136 = vshrl.u32 %v1135, 7
        %v1137 = vsub.s32 %v1134, %v1136
        %v1138 = vrot.slane %v1124, %v1137
        %v1139 = vcombine.low %v1083, %v1099
        %v1140 = vcombine.high %v1083, %v1099
        %v1142 = vunpack.c.l.s4 1934713408
        %v1143 = vunpack.c.0.s8 %v1142
        %v1144 = vlaneseq
        %v1145 = vshrl.u32 %v1144, 7
        %v1146 = vsub.s32 %v1143, %v1145
        %v1147 = vrot.slane %v1139, %v1146
        %v1149 = vunpack.c.l.s4 1934713408
        %v1150 = vunpack.c.0.s8 %v1149
        %v1151 = vlaneseq
        %v1152 = vshrl.u32 %v1151, 7
        %v1153 = vsub.s32 %v1150, %v1152
        %v1154 = vrot.slane %v1140, %v1153
        %v1155 = vcombine.low %v1090, %v1106
        %v1156 = vcombine.high %v1090, %v1106
        %v1158 = vunpack.c.l.s4 1934713408
        %v1159 = vunpack.c.0.s8 %v1158
        %v1160 = vlaneseq
        %v1161 = vshrl.u32 %v1160, 7
        %v1162 = vsub.s32 %v1159, %v1161
        %v1163 = vrot.slane %v1155, %v1162
        %v1165 = vunpack.c.l.s4 1934713408
        %v1166 = vunpack.c.0.s8 %v1165
        %v1167 = vlaneseq
        %v1168 = vshrl.u32 %v1167, 7
        %v1169 = vsub.s32 %v1166, %v1168
        %v1170 = vrot.slane %v1156, %v1169
        %v1171 = vcombine.low %v1115, %v1131
        %v1172 = vcombine.high %v1115, %v1131
        %v1174 = vunpack.c.l.s4 1934713408
        %v1175 = vunpack.c.0.s8 %v1174
        %v1176 = vlaneseq
        %v1177 = vshrl.u32 %v1176, 7
        %v1178 = vsub.s32 %v1175, %v1177
        %v1179 = vrot.slane %v1171, %v1178
        %v1181 = vunpack.c.l.s4 1934713408
        %v1182 = vunpack.c.0.s8 %v1181
        %v1183 = vlaneseq
        %v1184 = vshrl.u32 %v1183, 7
        %v1185 = vsub.s32 %v1182, %v1184
        %v1186 = vrot.slane %v1172, %v1185
        %v1187 = vcombine.low %v1122, %v1138
        %v1188 = vcombine.high %v1122, %v1138
        %v1190 = vunpack.c.l.s4 1934713408
        %v1191 = vunpack.c.0.s8 %v1190
        %v1192 = vlaneseq
        %v1193 = vshrl.u32 %v1192, 7
        %v1194 = vsub.s32 %v1191, %v1193
        %v1195 = vrot.slane %v1187, %v1194
        %v1197 = vunpack.c.l.s4 1934713408
        %v1198 = vunpack.c.0.s8 %v1197
        %v1199 = vlaneseq
        %v1200 = vshrl.u32 %v1199, 7
        %v1201 = vsub.s32 %v1198, %v1200
        %v1202 = vrot.slane %v1188, %v1201
        %v1203 = vcombine.low %v1147, %v1179
        %v1204 = vcombine.high %v1147, %v1179
        %v1205 = vcombine.low %v1154, %v1186
        %v1206 = vcombine.high %v1154, %v1186
        %v1207 = vcombine.low %v1163, %v1195
        %v1208 = vcombine.high %v1163, %v1195
        %v1209 = vcombine.low %v1170, %v1202
        %v1210 = vcombine.high %v1170, %v1202
        %v1211 = vcombine.low %v389, %v397
        %v1212 = vcombine.high %v389, %v397
        %v1214 = vunpack.c.l.s4 1983009808
        %v1215 = vunpack.c.0.s8 %v1214
        %v1216 = vlaneseq
        %v1217 = vshrl.u32 %v1216, 7
        %v1218 = vsub.s32 %v1215, %v1217
        %v1219 = vrot.slane %v1211, %v1218
        %v1221 = vunpack.c.l.s4 1983009808
        %v1222 = vunpack.c.0.s8 %v1221
        %v1223 = vlaneseq
        %v1224 = vshrl.u32 %v1223, 7
        %v1225 = vsub.s32 %v1222, %v1224
        %v1226 = vrot.slane %v1212, %v1225
        %v1227 = vcombine.low %v392, %v400
        %v1228 = vcombine.high %v392, %v400
        %v1230 = vunpack.c.l.s4 1983009808
        %v1231 = vunpack.c.0.s8 %v1230
        %v1232 = vlaneseq
        %v1233 = vshrl.u32 %v1232, 7
        %v1234 = vsub.s32 %v1231, %v1233
        %v1235 = vrot.slane %v1227, %v1234
        %v1237 = vunpack.c.l.s4 1983009808
        %v1238 = vunpack.c.0.s8 %v1237
        %v1239 = vlaneseq
        %v1240 = vshrl.u32 %v1239, 7
        %v1241 = vsub.s32 %v1238, %v1240
        %v1242 = vrot.slane %v1228, %v1241
        %v1243 = vcombine.low %v405, %v413
        %v1244 = vcombine.high %v405, %v413
        %v1246 = vunpack.c.l.s4 1983009808
        %v1247 = vunpack.c.0.s8 %v1246
        %v1248 = vlaneseq
        %v1249 = vshrl.u32 %v1248, 7
        %v1250 = vsub.s32 %v1247, %v1249
        %v1251 = vrot.slane %v1243, %v1250
        %v1253 = vunpack.c.l.s4 1983009808
        %v1254 = vunpack.c.0.s8 %v1253
        %v1255 = vlaneseq
        %v1256 = vshrl.u32 %v1255, 7
        %v1257 = vsub.s32 %v1254, %v1256
        %v1258 = vrot.slane %v1244, %v1257
        %v1259 = vcombine.low %v408, %v416
        %v1260 = vcombine.high %v408, %v416
        %v1262 = vunpack.c.l.s4 1983009808
        %v1263 = vunpack.c.0.s8 %v1262
        %v1264 = vlaneseq
        %v1265 = vshrl.u32 %v1264, 7
        %v1266 = vsub.s32 %v1263, %v1265
        %v1267 = vrot.slane %v1259, %v1266
        %v1269 = vunpack.c.l.s4 1983009808
        %v1270 = vunpack.c.0.s8 %v1269
        %v1271 = vlaneseq
        %v1272 = vshrl.u32 %v1271, 7
        %v1273 = vsub.s32 %v1270, %v1272
        %v1274 = vrot.slane %v1260, %v1273
        %v1275 = vcombine.low %v1219, %v1235
        %v1276 = vcombine.high %v1219, %v1235
        %v1278 = vunpack.c.l.s4 1934713408
        %v1279 = vunpack.c.0.s8 %v1278
        %v1280 = vlaneseq
        %v1281 = vshrl.u32 %v1280, 7
        %v1282 = vsub.s32 %v1279, %v1281
        %v1283 = vrot.slane %v1275, %v1282
        %v1285 = vunpack.c.l.s4 1934713408
        %v1286 = vunpack.c.0.s8 %v1285
        %v1287 = vlaneseq
        %v1288 = vshrl.u32 %v1287, 7
        %v1289 = vsub.s32 %v1286, %v1288
        %v1290 = vrot.slane %v1276, %v1289
        %v1291 = vcombine.low %v1226, %v1242
        %v1292 = vcombine.high %v1226, %v1242
        %v1294 = vunpack.c.l.s4 1934713408
        %v1295 = vunpack.c.0.s8 %v1294
        %v1296 = vlaneseq
        %v1297 = vshrl.u32 %v1296, 7
        %v1298 = vsub.s32 %v1295, %v1297
        %v1299 = vrot.slane %v1291, %v1298
        %v1301 = vunpack.c.l.s4 1934713408
        %v1302 = vunpack.c.0.s8 %v1301
        %v1303 = vlaneseq
        %v1304 = vshrl.u32 %v1303, 7
        %v1305 = vsub.s32 %v1302, %v1304
        %v1306 = vrot.slane %v1292, %v1305
        %v1307 = vcombine.low %v1251, %v1267
        %v1308 = vcombine.high %v1251, %v1267
        %v1310 = vunpack.c.l.s4 1934713408
        %v1311 = vunpack.c.0.s8 %v1310
        %v1312 = vlaneseq
        %v1313 = vshrl.u32 %v1312, 7
        %v1314 = vsub.s32 %v1311, %v1313
        %v1315 = vrot.slane %v1307, %v1314
        %v1317 = vunpack.c.l.s4 1934713408
        %v1318 = vunpack.c.0.s8 %v1317
        %v1319 = vlaneseq
        %v1320 = vshrl.u32 %v1319, 7
        %v1321 = vsub.s32 %v1318, %v1320
        %v1322 = vrot.slane %v1308, %v1321
        %v1323 = vcombine.low %v1258, %v1274
        %v1324 = vcombine.high %v1258, %v1274
        %v1326 = vunpack.c.l.s4 1934713408
        %v1327 = vunpack.c.0.s8 %v1326
        %v1328 = vlaneseq
        %v1329 = vshrl.u32 %v1328, 7
        %v1330 = vsub.s32 %v1327, %v1329
        %v1331 = vrot.slane %v1323, %v1330
        %v1333 = vunpack.c.l.s4 1934713408
        %v1334 = vunpack.c.0.s8 %v1333
        %v1335 = vlaneseq
        %v1336 = vshrl.u32 %v1335, 7
        %v1337 = vsub.s32 %v1334, %v1336
        %v1338 = vrot.slane %v1324, %v1337
        %v1339 = vcombine.low %v1283, %v1315
        %v1340 = vcombine.high %v1283, %v1315
        %v1341 = vcombine.low %v1290, %v1322
        %v1342 = vcombine.high %v1290, %v1322
        %v1343 = vcombine.low %v1299, %v1331
        %v1344 = vcombine.high %v1299, %v1331
        %v1345 = vcombine.low %v1306, %v1338
        %v1346 = vcombine.high %v1306, %v1338
        %v1347 = vpack.c.bf16 %v357, %v357
        %v1348 = vpack.c.bf16 %v360, %v360
        %v1349 = vpack.c.bf16 %v365, %v365
        %v1350 = vpack.c.bf16 %v368, %v368
        %v1351 = vpack.c.bf16 %v373, %v373
        %v1352 = vpack.c.bf16 %v376, %v376
        %v1353 = vpack.c.bf16 %v381, %v381
        %v1354 = vpack.c.bf16 %v384, %v384
        %v1355 = vpack.c.bf16 %v389, %v389
        %v1356 = vpack.c.bf16 %v392, %v392
        %v1357 = vpack.c.bf16 %v397, %v397
        %v1358 = vpack.c.bf16 %v400, %v400
        %v1359 = vpack.c.bf16 %v405, %v405
        %v1360 = vpack.c.bf16 %v408, %v408
        %v1361 = vpack.c.bf16 %v413, %v413
        %v1362 = vpack.c.bf16 %v416, %v416
        %v1363 = vpack.c.bf16 %v747, %v611
        %v1364 = vpack.c.bf16 %v748, %v612
        %v1365 = vpack.c.bf16 %v749, %v613
        %v1366 = vpack.c.bf16 %v750, %v614
        %v1367 = vpack.c.bf16 %v751, %v615
        %v1368 = vpack.c.bf16 %v752, %v616
        %v1369 = vpack.c.bf16 %v753, %v617
        %v1370 = vpack.c.bf16 %v754, %v618
        %v1371 = vpack.c.bf16 %v1067, %v931
        %v1372 = vpack.c.bf16 %v1068, %v932
        %v1373 = vpack.c.bf16 %v1069, %v933
        %v1374 = vpack.c.bf16 %v1070, %v934
        %v1375 = vpack.c.bf16 %v1071, %v935
        %v1376 = vpack.c.bf16 %v1072, %v936
        %v1377 = vpack.c.bf16 %v1073, %v937
        %v1378 = vpack.c.bf16 %v1074, %v938
        %1380 = vrot.lane.b32.xlu0 %v1347, 64
        %v1381 = vpop.permute.xlu0 %1380
        %1382 = vrot.lane.b32.xlu0 %v1347, 56
        %v1383 = vpop.permute.xlu0 %1382
        %vm1384 = vcmask 64512
        %v1386 = vsel %vm1384, %v1381, 0
        %v1389 = vsel %vm1384, %v1383, 0
        %1391 = vmatprep.subr.bf16.mxu0 0
        %1392 = vmatpush1.bf16.xpose.msra.mxu0 0
        %1393 = vmatprep.subr.bf16.mxu0 0
        %1394 = vmatpush1.bf16.xpose.msra.mxu0 0
        %1395 = vmatprep.subr.bf16.mxu0 0
        %1396 = vmatpush1.bf16.xpose.msra.mxu0 0
        %1397 = vmatprep.subr.bf16.mxu0 0
        %1398 = vmatpush1.bf16.xpose.msra.mxu0 0
        %1399 = vmatprep.subr.bf16.mxu0 0
        %1400 = vmatpush1.bf16.xpose.msra.mxu0 0
        %1401 = vmatprep.subr.bf16.mxu0 0
        %1402 = vmatpush1.bf16.xpose.msra.mxu0 0
        %1403 = vmatprep.subr.bf16.mxu0 0
        %1404 = vmatpush1.bf16.xpose.msra.mxu0 0
        %1405 = vmatprep.subr.bf16.mxu0 0
        %1406 = vmatpush1.bf16.xpose.msra.mxu0 %v1389
        %1407 = vmatprep.subr.bf16.mxu0 0
        %1408 = vmatpush2.bf16.xpose.msra.mxu0 0
        %1409 = vmatprep.subr.bf16.mxu0 0
        %1410 = vmatpush2.bf16.xpose.msra.mxu0 0
        %1411 = vmatprep.subr.bf16.mxu0 0
        %1412 = vmatpush2.bf16.xpose.msra.mxu0 0
        %1413 = vmatprep.subr.bf16.mxu0 0
        %1414 = vmatpush2.bf16.xpose.msra.mxu0 0
        %1415 = vmatprep.subr.bf16.mxu0 0
        %1416 = vmatpush2.bf16.xpose.msra.mxu0 0
        %1417 = vmatprep.subr.bf16.mxu0 0
        %1418 = vmatpush2.bf16.xpose.msra.mxu0 0
        %1419 = vmatprep.subr.bf16.mxu0 0
        %1420 = vmatpush2.bf16.xpose.msra.mxu0 0
        %1421 = vmatprep.subr.bf16.mxu0 0
        %1422 = vmatpush2.bf16.xpose.msra.mxu0 0
        %1423 = vmatprep.mubr.bf16.mxu0 0
        %1424 = vmatmul.mubr.bf16.gmra.mxu0 %v1386
        %v1425 = vpop.f32.mrf.mxu0
        %v1426 = vadd.f32 0.0, %v1425
        %v1427 = vpop.f32.mrf.mxu0
        %v1428 = vpop.f32.mrf.mxu0
        %v1429 = vpop.f32.mrf.mxu0
        %1430 = vdwg.mxu0
        %1432 = vrot.lane.b32.xlu0 %v1348, 64
        %v1433 = vpop.permute.xlu0 %1432
        %1434 = vrot.lane.b32.xlu0 %v1348, 56
        %v1435 = vpop.permute.xlu0 %1434
        %v1437 = vsel %vm1384, %v1433, 0
        %v1440 = vsel %vm1384, %v1435, 0
        %1442 = vmatprep.subr.bf16.mxu0 0
        %1443 = vmatpush1.bf16.xpose.msra.mxu0 0
        %1444 = vmatprep.subr.bf16.mxu0 0
        %1445 = vmatpush1.bf16.xpose.msra.mxu0 0
        %1446 = vmatprep.subr.bf16.mxu0 0
        %1447 = vmatpush1.bf16.xpose.msra.mxu0 0
        %1448 = vmatprep.subr.bf16.mxu0 0
        %1449 = vmatpush1.bf16.xpose.msra.mxu0 0
        %1450 = vmatprep.subr.bf16.mxu0 0
        %1451 = vmatpush1.bf16.xpose.msra.mxu0 0
        %1452 = vmatprep.subr.bf16.mxu0 0
        %1453 = vmatpush1.bf16.xpose.msra.mxu0 0
        %1454 = vmatprep.subr.bf16.mxu0 0
        %1455 = vmatpush1.bf16.xpose.msra.mxu0 0
        %1456 = vmatprep.subr.bf16.mxu0 0
        %1457 = vmatpush1.bf16.xpose.msra.mxu0 %v1440
        %1458 = vmatprep.subr.bf16.mxu0 0
        %1459 = vmatpush2.bf16.xpose.msra.mxu0 0
        %1460 = vmatprep.subr.bf16.mxu0 0
        %1461 = vmatpush2.bf16.xpose.msra.mxu0 0
        %1462 = vmatprep.subr.bf16.mxu0 0
        %1463 = vmatpush2.bf16.xpose.msra.mxu0 0
        %1464 = vmatprep.subr.bf16.mxu0 0
        %1465 = vmatpush2.bf16.xpose.msra.mxu0 0
        %1466 = vmatprep.subr.bf16.mxu0 0
        %1467 = vmatpush2.bf16.xpose.msra.mxu0 0
        %1468 = vmatprep.subr.bf16.mxu0 0
        %1469 = vmatpush2.bf16.xpose.msra.mxu0 0
        %1470 = vmatprep.subr.bf16.mxu0 0
        %1471 = vmatpush2.bf16.xpose.msra.mxu0 0
        %1472 = vmatprep.subr.bf16.mxu0 0
        %1473 = vmatpush2.bf16.xpose.msra.mxu0 0
        %1474 = vmatprep.mubr.bf16.mxu0 0
        %1475 = vmatmul.mubr.bf16.gmra.mxu0 %v1437
        %v1476 = vpop.f32.mrf.mxu0
        %v1477 = vadd.f32 0.0, %v1476
        %v1478 = vpop.f32.mrf.mxu0
        %v1479 = vpop.f32.mrf.mxu0
        %v1480 = vpop.f32.mrf.mxu0
        %1481 = vdwg.mxu0
        %1483 = vrot.lane.b32.xlu0 %v1349, 64
        %v1484 = vpop.permute.xlu0 %1483
        %1485 = vrot.lane.b32.xlu0 %v1349, 56
        %v1486 = vpop.permute.xlu0 %1485
        %v1488 = vsel %vm1384, %v1484, 0
        %v1491 = vsel %vm1384, %v1486, 0
        %1493 = vmatprep.subr.bf16.mxu0 0
        %1494 = vmatpush1.bf16.xpose.msra.mxu0 0
        %1495 = vmatprep.subr.bf16.mxu0 0
        %1496 = vmatpush1.bf16.xpose.msra.mxu0 0
        %1497 = vmatprep.subr.bf16.mxu0 0
        %1498 = vmatpush1.bf16.xpose.msra.mxu0 0
        %1499 = vmatprep.subr.bf16.mxu0 0
        %1500 = vmatpush1.bf16.xpose.msra.mxu0 0
        %1501 = vmatprep.subr.bf16.mxu0 0
        %1502 = vmatpush1.bf16.xpose.msra.mxu0 0
        %1503 = vmatprep.subr.bf16.mxu0 0
        %1504 = vmatpush1.bf16.xpose.msra.mxu0 0
        %1505 = vmatprep.subr.bf16.mxu0 0
        %1506 = vmatpush1.bf16.xpose.msra.mxu0 0
        %1507 = vmatprep.subr.bf16.mxu0 0
        %1508 = vmatpush1.bf16.xpose.msra.mxu0 %v1491
        %1509 = vmatprep.subr.bf16.mxu0 0
        %1510 = vmatpush2.bf16.xpose.msra.mxu0 0
        %1511 = vmatprep.subr.bf16.mxu0 0
        %1512 = vmatpush2.bf16.xpose.msra.mxu0 0
        %1513 = vmatprep.subr.bf16.mxu0 0
        %1514 = vmatpush2.bf16.xpose.msra.mxu0 0
        %1515 = vmatprep.subr.bf16.mxu0 0
        %1516 = vmatpush2.bf16.xpose.msra.mxu0 0
        %1517 = vmatprep.subr.bf16.mxu0 0
        %1518 = vmatpush2.bf16.xpose.msra.mxu0 0
        %1519 = vmatprep.subr.bf16.mxu0 0
        %1520 = vmatpush2.bf16.xpose.msra.mxu0 0
        %1521 = vmatprep.subr.bf16.mxu0 0
        %1522 = vmatpush2.bf16.xpose.msra.mxu0 0
        %1523 = vmatprep.subr.bf16.mxu0 0
        %1524 = vmatpush2.bf16.xpose.msra.mxu0 0
        %1525 = vmatprep.mubr.bf16.mxu0 0
        %1526 = vmatmul.mubr.bf16.gmra.mxu0 %v1488
        %v1527 = vpop.f32.mrf.mxu0
        %v1528 = vadd.f32 0.0, %v1527
        %v1529 = vpop.f32.mrf.mxu0
        %v1530 = vpop.f32.mrf.mxu0
        %v1531 = vpop.f32.mrf.mxu0
        %1532 = vdwg.mxu0
        %1534 = vrot.lane.b32.xlu0 %v1350, 64
        %v1535 = vpop.permute.xlu0 %1534
        %1536 = vrot.lane.b32.xlu0 %v1350, 56
        %v1537 = vpop.permute.xlu0 %1536
        %v1539 = vsel %vm1384, %v1535, 0
        %v1542 = vsel %vm1384, %v1537, 0
        %1544 = vmatprep.subr.bf16.mxu0 0
        %1545 = vmatpush1.bf16.xpose.msra.mxu0 0
        %1546 = vmatprep.subr.bf16.mxu0 0
        %1547 = vmatpush1.bf16.xpose.msra.mxu0 0
        %1548 = vmatprep.subr.bf16.mxu0 0
        %1549 = vmatpush1.bf16.xpose.msra.mxu0 0
        %1550 = vmatprep.subr.bf16.mxu0 0
        %1551 = vmatpush1.bf16.xpose.msra.mxu0 0
        %1552 = vmatprep.subr.bf16.mxu0 0
        %1553 = vmatpush1.bf16.xpose.msra.mxu0 0
        %1554 = vmatprep.subr.bf16.mxu0 0
        %1555 = vmatpush1.bf16.xpose.msra.mxu0 0
        %1556 = vmatprep.subr.bf16.mxu0 0
        %1557 = vmatpush1.bf16.xpose.msra.mxu0 0
        %1558 = vmatprep.subr.bf16.mxu0 0
        %1559 = vmatpush1.bf16.xpose.msra.mxu0 %v1542
        %1560 = vmatprep.subr.bf16.mxu0 0
        %1561 = vmatpush2.bf16.xpose.msra.mxu0 0
        %1562 = vmatprep.subr.bf16.mxu0 0
        %1563 = vmatpush2.bf16.xpose.msra.mxu0 0
        %1564 = vmatprep.subr.bf16.mxu0 0
        %1565 = vmatpush2.bf16.xpose.msra.mxu0 0
        %1566 = vmatprep.subr.bf16.mxu0 0
        %1567 = vmatpush2.bf16.xpose.msra.mxu0 0
        %1568 = vmatprep.subr.bf16.mxu0 0
        %1569 = vmatpush2.bf16.xpose.msra.mxu0 0
        %1570 = vmatprep.subr.bf16.mxu0 0
        %1571 = vmatpush2.bf16.xpose.msra.mxu0 0
        %1572 = vmatprep.subr.bf16.mxu0 0
        %1573 = vmatpush2.bf16.xpose.msra.mxu0 0
        %1574 = vmatprep.subr.bf16.mxu0 0
        %1575 = vmatpush2.bf16.xpose.msra.mxu0 0
        %1576 = vmatprep.mubr.bf16.mxu0 0
        %1577 = vmatmul.mubr.bf16.gmra.mxu0 %v1539
        %v1578 = vpop.f32.mrf.mxu0
        %v1579 = vadd.f32 0.0, %v1578
        %v1580 = vpop.f32.mrf.mxu0
        %v1581 = vpop.f32.mrf.mxu0
        %v1582 = vpop.f32.mrf.mxu0
        %1583 = vdwg.mxu0
        %1585 = vrot.lane.b32.xlu0 %v1351, 64
        %v1586 = vpop.permute.xlu0 %1585
        %1587 = vrot.lane.b32.xlu0 %v1351, 56
        %v1588 = vpop.permute.xlu0 %1587
        %v1590 = vsel %vm1384, %v1586, 0
        %v1593 = vsel %vm1384, %v1588, 0
        %1595 = vmatprep.subr.bf16.mxu0 0
        %1596 = vmatpush1.bf16.xpose.msra.mxu0 0
        %1597 = vmatprep.subr.bf16.mxu0 0
        %1598 = vmatpush1.bf16.xpose.msra.mxu0 0
        %1599 = vmatprep.subr.bf16.mxu0 0
        %1600 = vmatpush1.bf16.xpose.msra.mxu0 0
        %1601 = vmatprep.subr.bf16.mxu0 0
        %1602 = vmatpush1.bf16.xpose.msra.mxu0 0
        %1603 = vmatprep.subr.bf16.mxu0 0
        %1604 = vmatpush1.bf16.xpose.msra.mxu0 0
        %1605 = vmatprep.subr.bf16.mxu0 0
        %1606 = vmatpush1.bf16.xpose.msra.mxu0 0
        %1607 = vmatprep.subr.bf16.mxu0 0
        %1608 = vmatpush1.bf16.xpose.msra.mxu0 0
        %1609 = vmatprep.subr.bf16.mxu0 0
        %1610 = vmatpush1.bf16.xpose.msra.mxu0 %v1593
        %1611 = vmatprep.subr.bf16.mxu0 0
        %1612 = vmatpush2.bf16.xpose.msra.mxu0 0
        %1613 = vmatprep.subr.bf16.mxu0 0
        %1614 = vmatpush2.bf16.xpose.msra.mxu0 0
        %1615 = vmatprep.subr.bf16.mxu0 0
        %1616 = vmatpush2.bf16.xpose.msra.mxu0 0
        %1617 = vmatprep.subr.bf16.mxu0 0
        %1618 = vmatpush2.bf16.xpose.msra.mxu0 0
        %1619 = vmatprep.subr.bf16.mxu0 0
        %1620 = vmatpush2.bf16.xpose.msra.mxu0 0
        %1621 = vmatprep.subr.bf16.mxu0 0
        %1622 = vmatpush2.bf16.xpose.msra.mxu0 0
        %1623 = vmatprep.subr.bf16.mxu0 0
        %1624 = vmatpush2.bf16.xpose.msra.mxu0 0
        %1625 = vmatprep.subr.bf16.mxu0 0
        %1626 = vmatpush2.bf16.xpose.msra.mxu0 0
        %1627 = vmatprep.mubr.bf16.mxu0 0
        %1628 = vmatmul.mubr.bf16.gmra.mxu0 %v1590
        %v1629 = vpop.f32.mrf.mxu0
        %v1630 = vadd.f32 0.0, %v1629
        %v1631 = vpop.f32.mrf.mxu0
        %v1632 = vpop.f32.mrf.mxu0
        %v1633 = vpop.f32.mrf.mxu0
        %1634 = vdwg.mxu0
        %1636 = vrot.lane.b32.xlu0 %v1352, 64
        %v1637 = vpop.permute.xlu0 %1636
        %1638 = vrot.lane.b32.xlu0 %v1352, 56
        %v1639 = vpop.permute.xlu0 %1638
        %v1641 = vsel %vm1384, %v1637, 0
        %v1644 = vsel %vm1384, %v1639, 0
        %1646 = vmatprep.subr.bf16.mxu0 0
        %1647 = vmatpush1.bf16.xpose.msra.mxu0 0
        %1648 = vmatprep.subr.bf16.mxu0 0
        %1649 = vmatpush1.bf16.xpose.msra.mxu0 0
        %1650 = vmatprep.subr.bf16.mxu0 0
        %1651 = vmatpush1.bf16.xpose.msra.mxu0 0
        %1652 = vmatprep.subr.bf16.mxu0 0
        %1653 = vmatpush1.bf16.xpose.msra.mxu0 0
        %1654 = vmatprep.subr.bf16.mxu0 0
        %1655 = vmatpush1.bf16.xpose.msra.mxu0 0
        %1656 = vmatprep.subr.bf16.mxu0 0
        %1657 = vmatpush1.bf16.xpose.msra.mxu0 0
        %1658 = vmatprep.subr.bf16.mxu0 0
        %1659 = vmatpush1.bf16.xpose.msra.mxu0 0
        %1660 = vmatprep.subr.bf16.mxu0 0
        %1661 = vmatpush1.bf16.xpose.msra.mxu0 %v1644
        %1662 = vmatprep.subr.bf16.mxu0 0
        %1663 = vmatpush2.bf16.xpose.msra.mxu0 0
        %1664 = vmatprep.subr.bf16.mxu0 0
        %1665 = vmatpush2.bf16.xpose.msra.mxu0 0
        %1666 = vmatprep.subr.bf16.mxu0 0
        %1667 = vmatpush2.bf16.xpose.msra.mxu0 0
        %1668 = vmatprep.subr.bf16.mxu0 0
        %1669 = vmatpush2.bf16.xpose.msra.mxu0 0
        %1670 = vmatprep.subr.bf16.mxu0 0
        %1671 = vmatpush2.bf16.xpose.msra.mxu0 0
        %1672 = vmatprep.subr.bf16.mxu0 0
        %1673 = vmatpush2.bf16.xpose.msra.mxu0 0
        %1674 = vmatprep.subr.bf16.mxu0 0
        %1675 = vmatpush2.bf16.xpose.msra.mxu0 0
        %1676 = vmatprep.subr.bf16.mxu0 0
        %1677 = vmatpush2.bf16.xpose.msra.mxu0 0
        %1678 = vmatprep.mubr.bf16.mxu0 0
        %1679 = vmatmul.mubr.bf16.gmra.mxu0 %v1641
        %v1680 = vpop.f32.mrf.mxu0
        %v1681 = vadd.f32 0.0, %v1680
        %v1682 = vpop.f32.mrf.mxu0
        %v1683 = vpop.f32.mrf.mxu0
        %v1684 = vpop.f32.mrf.mxu0
        %1685 = vdwg.mxu0
        %1687 = vrot.lane.b32.xlu0 %v1353, 64
        %v1688 = vpop.permute.xlu0 %1687
        %1689 = vrot.lane.b32.xlu0 %v1353, 56
        %v1690 = vpop.permute.xlu0 %1689
        %v1692 = vsel %vm1384, %v1688, 0
        %v1695 = vsel %vm1384, %v1690, 0
        %1697 = vmatprep.subr.bf16.mxu0 0
        %1698 = vmatpush1.bf16.xpose.msra.mxu0 0
        %1699 = vmatprep.subr.bf16.mxu0 0
        %1700 = vmatpush1.bf16.xpose.msra.mxu0 0
        %1701 = vmatprep.subr.bf16.mxu0 0
        %1702 = vmatpush1.bf16.xpose.msra.mxu0 0
        %1703 = vmatprep.subr.bf16.mxu0 0
        %1704 = vmatpush1.bf16.xpose.msra.mxu0 0
        %1705 = vmatprep.subr.bf16.mxu0 0
        %1706 = vmatpush1.bf16.xpose.msra.mxu0 0
        %1707 = vmatprep.subr.bf16.mxu0 0
        %1708 = vmatpush1.bf16.xpose.msra.mxu0 0
        %1709 = vmatprep.subr.bf16.mxu0 0
        %1710 = vmatpush1.bf16.xpose.msra.mxu0 0
        %1711 = vmatprep.subr.bf16.mxu0 0
        %1712 = vmatpush1.bf16.xpose.msra.mxu0 %v1695
        %1713 = vmatprep.subr.bf16.mxu0 0
        %1714 = vmatpush2.bf16.xpose.msra.mxu0 0
        %1715 = vmatprep.subr.bf16.mxu0 0
        %1716 = vmatpush2.bf16.xpose.msra.mxu0 0
        %1717 = vmatprep.subr.bf16.mxu0 0
        %1718 = vmatpush2.bf16.xpose.msra.mxu0 0
        %1719 = vmatprep.subr.bf16.mxu0 0
        %1720 = vmatpush2.bf16.xpose.msra.mxu0 0
        %1721 = vmatprep.subr.bf16.mxu0 0
        %1722 = vmatpush2.bf16.xpose.msra.mxu0 0
        %1723 = vmatprep.subr.bf16.mxu0 0
        %1724 = vmatpush2.bf16.xpose.msra.mxu0 0
        %1725 = vmatprep.subr.bf16.mxu0 0
        %1726 = vmatpush2.bf16.xpose.msra.mxu0 0
        %1727 = vmatprep.subr.bf16.mxu0 0
        %1728 = vmatpush2.bf16.xpose.msra.mxu0 0
        %1729 = vmatprep.mubr.bf16.mxu0 0
        %1730 = vmatmul.mubr.bf16.gmra.mxu0 %v1692
        %v1731 = vpop.f32.mrf.mxu0
        %v1732 = vadd.f32 0.0, %v1731
        %v1733 = vpop.f32.mrf.mxu0
        %v1734 = vpop.f32.mrf.mxu0
        %v1735 = vpop.f32.mrf.mxu0
        %1736 = vdwg.mxu0
        %1738 = vrot.lane.b32.xlu0 %v1354, 64
        %v1739 = vpop.permute.xlu0 %1738
        %1740 = vrot.lane.b32.xlu0 %v1354, 56
        %v1741 = vpop.permute.xlu0 %1740
        %v1743 = vsel %vm1384, %v1739, 0
        %v1746 = vsel %vm1384, %v1741, 0
        %1748 = vmatprep.subr.bf16.mxu0 0
        %1749 = vmatpush1.bf16.xpose.msra.mxu0 0
        %1750 = vmatprep.subr.bf16.mxu0 0
        %1751 = vmatpush1.bf16.xpose.msra.mxu0 0
        %1752 = vmatprep.subr.bf16.mxu0 0
        %1753 = vmatpush1.bf16.xpose.msra.mxu0 0
        %1754 = vmatprep.subr.bf16.mxu0 0
        %1755 = vmatpush1.bf16.xpose.msra.mxu0 0
        %1756 = vmatprep.subr.bf16.mxu0 0
        %1757 = vmatpush1.bf16.xpose.msra.mxu0 0
        %1758 = vmatprep.subr.bf16.mxu0 0
        %1759 = vmatpush1.bf16.xpose.msra.mxu0 0
        %1760 = vmatprep.subr.bf16.mxu0 0
        %1761 = vmatpush1.bf16.xpose.msra.mxu0 0
        %1762 = vmatprep.subr.bf16.mxu0 0
        %1763 = vmatpush1.bf16.xpose.msra.mxu0 %v1746
        %1764 = vmatprep.subr.bf16.mxu0 0
        %1765 = vmatpush2.bf16.xpose.msra.mxu0 0
        %1766 = vmatprep.subr.bf16.mxu0 0
        %1767 = vmatpush2.bf16.xpose.msra.mxu0 0
        %1768 = vmatprep.subr.bf16.mxu0 0
        %1769 = vmatpush2.bf16.xpose.msra.mxu0 0
        %1770 = vmatprep.subr.bf16.mxu0 0
        %1771 = vmatpush2.bf16.xpose.msra.mxu0 0
        %1772 = vmatprep.subr.bf16.mxu0 0
        %1773 = vmatpush2.bf16.xpose.msra.mxu0 0
        %1774 = vmatprep.subr.bf16.mxu0 0
        %1775 = vmatpush2.bf16.xpose.msra.mxu0 0
        %1776 = vmatprep.subr.bf16.mxu0 0
        %1777 = vmatpush2.bf16.xpose.msra.mxu0 0
        %1778 = vmatprep.subr.bf16.mxu0 0
        %1779 = vmatpush2.bf16.xpose.msra.mxu0 0
        %1780 = vmatprep.mubr.bf16.mxu0 0
        %1781 = vmatmul.mubr.bf16.gmra.mxu0 %v1743
        %v1782 = vpop.f32.mrf.mxu0
        %v1783 = vadd.f32 0.0, %v1782
        %v1784 = vpop.f32.mrf.mxu0
        %v1785 = vpop.f32.mrf.mxu0
        %v1786 = vpop.f32.mrf.mxu0
        %1787 = vdwg.mxu0
        %1789 = vrot.lane.b32.xlu0 %v1355, 64
        %v1790 = vpop.permute.xlu0 %1789
        %1791 = vrot.lane.b32.xlu0 %v1355, 56
        %v1792 = vpop.permute.xlu0 %1791
        %v1794 = vsel %vm1384, %v1790, 0
        %v1797 = vsel %vm1384, %v1792, 0
        %1799 = vmatprep.subr.bf16.mxu0 0
        %1800 = vmatpush1.bf16.xpose.msra.mxu0 0
        %1801 = vmatprep.subr.bf16.mxu0 0
        %1802 = vmatpush1.bf16.xpose.msra.mxu0 0
        %1803 = vmatprep.subr.bf16.mxu0 0
        %1804 = vmatpush1.bf16.xpose.msra.mxu0 0
        %1805 = vmatprep.subr.bf16.mxu0 0
        %1806 = vmatpush1.bf16.xpose.msra.mxu0 0
        %1807 = vmatprep.subr.bf16.mxu0 0
        %1808 = vmatpush1.bf16.xpose.msra.mxu0 0
        %1809 = vmatprep.subr.bf16.mxu0 0
        %1810 = vmatpush1.bf16.xpose.msra.mxu0 0
        %1811 = vmatprep.subr.bf16.mxu0 0
        %1812 = vmatpush1.bf16.xpose.msra.mxu0 0
        %1813 = vmatprep.subr.bf16.mxu0 0
        %1814 = vmatpush1.bf16.xpose.msra.mxu0 %v1797
        %1815 = vmatprep.subr.bf16.mxu0 0
        %1816 = vmatpush2.bf16.xpose.msra.mxu0 0
        %1817 = vmatprep.subr.bf16.mxu0 0
        %1818 = vmatpush2.bf16.xpose.msra.mxu0 0
        %1819 = vmatprep.subr.bf16.mxu0 0
        %1820 = vmatpush2.bf16.xpose.msra.mxu0 0
        %1821 = vmatprep.subr.bf16.mxu0 0
        %1822 = vmatpush2.bf16.xpose.msra.mxu0 0
        %1823 = vmatprep.subr.bf16.mxu0 0
        %1824 = vmatpush2.bf16.xpose.msra.mxu0 0
        %1825 = vmatprep.subr.bf16.mxu0 0
        %1826 = vmatpush2.bf16.xpose.msra.mxu0 0
        %1827 = vmatprep.subr.bf16.mxu0 0
        %1828 = vmatpush2.bf16.xpose.msra.mxu0 0
        %1829 = vmatprep.subr.bf16.mxu0 0
        %1830 = vmatpush2.bf16.xpose.msra.mxu0 0
        %1831 = vmatprep.mubr.bf16.mxu0 0
        %1832 = vmatmul.mubr.bf16.gmra.mxu0 %v1794
        %v1833 = vpop.f32.mrf.mxu0
        %v1834 = vadd.f32 0.0, %v1833
        %v1835 = vpop.f32.mrf.mxu0
        %v1836 = vpop.f32.mrf.mxu0
        %v1837 = vpop.f32.mrf.mxu0
        %1838 = vdwg.mxu0
        %1840 = vrot.lane.b32.xlu0 %v1356, 64
        %v1841 = vpop.permute.xlu0 %1840
        %1842 = vrot.lane.b32.xlu0 %v1356, 56
        %v1843 = vpop.permute.xlu0 %1842
        %v1845 = vsel %vm1384, %v1841, 0
        %v1848 = vsel %vm1384, %v1843, 0
        %1850 = vmatprep.subr.bf16.mxu0 0
        %1851 = vmatpush1.bf16.xpose.msra.mxu0 0
        %1852 = vmatprep.subr.bf16.mxu0 0
        %1853 = vmatpush1.bf16.xpose.msra.mxu0 0
        %1854 = vmatprep.subr.bf16.mxu0 0
        %1855 = vmatpush1.bf16.xpose.msra.mxu0 0
        %1856 = vmatprep.subr.bf16.mxu0 0
        %1857 = vmatpush1.bf16.xpose.msra.mxu0 0
        %1858 = vmatprep.subr.bf16.mxu0 0
        %1859 = vmatpush1.bf16.xpose.msra.mxu0 0
        %1860 = vmatprep.subr.bf16.mxu0 0
        %1861 = vmatpush1.bf16.xpose.msra.mxu0 0
        %1862 = vmatprep.subr.bf16.mxu0 0
        %1863 = vmatpush1.bf16.xpose.msra.mxu0 0
        %1864 = vmatprep.subr.bf16.mxu0 0
        %1865 = vmatpush1.bf16.xpose.msra.mxu0 %v1848
        %1866 = vmatprep.subr.bf16.mxu0 0
        %1867 = vmatpush2.bf16.xpose.msra.mxu0 0
        %1868 = vmatprep.subr.bf16.mxu0 0
        %1869 = vmatpush2.bf16.xpose.msra.mxu0 0
        %1870 = vmatprep.subr.bf16.mxu0 0
        %1871 = vmatpush2.bf16.xpose.msra.mxu0 0
        %1872 = vmatprep.subr.bf16.mxu0 0
        %1873 = vmatpush2.bf16.xpose.msra.mxu0 0
        %1874 = vmatprep.subr.bf16.mxu0 0
        %1875 = vmatpush2.bf16.xpose.msra.mxu0 0
        %1876 = vmatprep.subr.bf16.mxu0 0
        %1877 = vmatpush2.bf16.xpose.msra.mxu0 0
        %1878 = vmatprep.subr.bf16.mxu0 0
        %1879 = vmatpush2.bf16.xpose.msra.mxu0 0
        %1880 = vmatprep.subr.bf16.mxu0 0
        %1881 = vmatpush2.bf16.xpose.msra.mxu0 0
        %1882 = vmatprep.mubr.bf16.mxu0 0
        %1883 = vmatmul.mubr.bf16.gmra.mxu0 %v1845
        %v1884 = vpop.f32.mrf.mxu0
        %v1885 = vadd.f32 0.0, %v1884
        %v1886 = vpop.f32.mrf.mxu0
        %v1887 = vpop.f32.mrf.mxu0
        %v1888 = vpop.f32.mrf.mxu0
        %1889 = vdwg.mxu0
        %1891 = vrot.lane.b32.xlu0 %v1357, 64
        %v1892 = vpop.permute.xlu0 %1891
        %1893 = vrot.lane.b32.xlu0 %v1357, 56
        %v1894 = vpop.permute.xlu0 %1893
        %v1896 = vsel %vm1384, %v1892, 0
        %v1899 = vsel %vm1384, %v1894, 0
        %1901 = vmatprep.subr.bf16.mxu0 0
        %1902 = vmatpush1.bf16.xpose.msra.mxu0 0
        %1903 = vmatprep.subr.bf16.mxu0 0
        %1904 = vmatpush1.bf16.xpose.msra.mxu0 0
        %1905 = vmatprep.subr.bf16.mxu0 0
        %1906 = vmatpush1.bf16.xpose.msra.mxu0 0
        %1907 = vmatprep.subr.bf16.mxu0 0
        %1908 = vmatpush1.bf16.xpose.msra.mxu0 0
        %1909 = vmatprep.subr.bf16.mxu0 0
        %1910 = vmatpush1.bf16.xpose.msra.mxu0 0
        %1911 = vmatprep.subr.bf16.mxu0 0
        %1912 = vmatpush1.bf16.xpose.msra.mxu0 0
        %1913 = vmatprep.subr.bf16.mxu0 0
        %1914 = vmatpush1.bf16.xpose.msra.mxu0 0
        %1915 = vmatprep.subr.bf16.mxu0 0
        %1916 = vmatpush1.bf16.xpose.msra.mxu0 %v1899
        %1917 = vmatprep.subr.bf16.mxu0 0
        %1918 = vmatpush2.bf16.xpose.msra.mxu0 0
        %1919 = vmatprep.subr.bf16.mxu0 0
        %1920 = vmatpush2.bf16.xpose.msra.mxu0 0
        %1921 = vmatprep.subr.bf16.mxu0 0
        %1922 = vmatpush2.bf16.xpose.msra.mxu0 0
        %1923 = vmatprep.subr.bf16.mxu0 0
        %1924 = vmatpush2.bf16.xpose.msra.mxu0 0
        %1925 = vmatprep.subr.bf16.mxu0 0
        %1926 = vmatpush2.bf16.xpose.msra.mxu0 0
        %1927 = vmatprep.subr.bf16.mxu0 0
        %1928 = vmatpush2.bf16.xpose.msra.mxu0 0
        %1929 = vmatprep.subr.bf16.mxu0 0
        %1930 = vmatpush2.bf16.xpose.msra.mxu0 0
        %1931 = vmatprep.subr.bf16.mxu0 0
        %1932 = vmatpush2.bf16.xpose.msra.mxu0 0
        %1933 = vmatprep.mubr.bf16.mxu0 0
        %1934 = vmatmul.mubr.bf16.gmra.mxu0 %v1896
        %v1935 = vpop.f32.mrf.mxu0
        %v1936 = vadd.f32 0.0, %v1935
        %v1937 = vpop.f32.mrf.mxu0
        %v1938 = vpop.f32.mrf.mxu0
        %v1939 = vpop.f32.mrf.mxu0
        %1940 = vdwg.mxu0
        %1942 = vrot.lane.b32.xlu0 %v1358, 64
        %v1943 = vpop.permute.xlu0 %1942
        %1944 = vrot.lane.b32.xlu0 %v1358, 56
        %v1945 = vpop.permute.xlu0 %1944
        %v1947 = vsel %vm1384, %v1943, 0
        %v1950 = vsel %vm1384, %v1945, 0
        %1952 = vmatprep.subr.bf16.mxu0 0
        %1953 = vmatpush1.bf16.xpose.msra.mxu0 0
        %1954 = vmatprep.subr.bf16.mxu0 0
        %1955 = vmatpush1.bf16.xpose.msra.mxu0 0
        %1956 = vmatprep.subr.bf16.mxu0 0
        %1957 = vmatpush1.bf16.xpose.msra.mxu0 0
        %1958 = vmatprep.subr.bf16.mxu0 0
        %1959 = vmatpush1.bf16.xpose.msra.mxu0 0
        %1960 = vmatprep.subr.bf16.mxu0 0
        %1961 = vmatpush1.bf16.xpose.msra.mxu0 0
        %1962 = vmatprep.subr.bf16.mxu0 0
        %1963 = vmatpush1.bf16.xpose.msra.mxu0 0
        %1964 = vmatprep.subr.bf16.mxu0 0
        %1965 = vmatpush1.bf16.xpose.msra.mxu0 0
        %1966 = vmatprep.subr.bf16.mxu0 0
        %1967 = vmatpush1.bf16.xpose.msra.mxu0 %v1950
        %1968 = vmatprep.subr.bf16.mxu0 0
        %1969 = vmatpush2.bf16.xpose.msra.mxu0 0
        %1970 = vmatprep.subr.bf16.mxu0 0
        %1971 = vmatpush2.bf16.xpose.msra.mxu0 0
        %1972 = vmatprep.subr.bf16.mxu0 0
        %1973 = vmatpush2.bf16.xpose.msra.mxu0 0
        %1974 = vmatprep.subr.bf16.mxu0 0
        %1975 = vmatpush2.bf16.xpose.msra.mxu0 0
        %1976 = vmatprep.subr.bf16.mxu0 0
        %1977 = vmatpush2.bf16.xpose.msra.mxu0 0
        %1978 = vmatprep.subr.bf16.mxu0 0
        %1979 = vmatpush2.bf16.xpose.msra.mxu0 0
        %1980 = vmatprep.subr.bf16.mxu0 0
        %1981 = vmatpush2.bf16.xpose.msra.mxu0 0
        %1982 = vmatprep.subr.bf16.mxu0 0
        %1983 = vmatpush2.bf16.xpose.msra.mxu0 0
        %1984 = vmatprep.mubr.bf16.mxu0 0
        %1985 = vmatmul.mubr.bf16.gmra.mxu0 %v1947
        %v1986 = vpop.f32.mrf.mxu0
        %v1987 = vadd.f32 0.0, %v1986
        %v1988 = vpop.f32.mrf.mxu0
        %v1989 = vpop.f32.mrf.mxu0
        %v1990 = vpop.f32.mrf.mxu0
        %1991 = vdwg.mxu0
        %1993 = vrot.lane.b32.xlu0 %v1359, 64
        %v1994 = vpop.permute.xlu0 %1993
        %1995 = vrot.lane.b32.xlu0 %v1359, 56
        %v1996 = vpop.permute.xlu0 %1995
        %v1998 = vsel %vm1384, %v1994, 0
        %v2001 = vsel %vm1384, %v1996, 0
        %2003 = vmatprep.subr.bf16.mxu0 0
        %2004 = vmatpush1.bf16.xpose.msra.mxu0 0
        %2005 = vmatprep.subr.bf16.mxu0 0
        %2006 = vmatpush1.bf16.xpose.msra.mxu0 0
        %2007 = vmatprep.subr.bf16.mxu0 0
        %2008 = vmatpush1.bf16.xpose.msra.mxu0 0
        %2009 = vmatprep.subr.bf16.mxu0 0
        %2010 = vmatpush1.bf16.xpose.msra.mxu0 0
        %2011 = vmatprep.subr.bf16.mxu0 0
        %2012 = vmatpush1.bf16.xpose.msra.mxu0 0
        %2013 = vmatprep.subr.bf16.mxu0 0
        %2014 = vmatpush1.bf16.xpose.msra.mxu0 0
        %2015 = vmatprep.subr.bf16.mxu0 0
        %2016 = vmatpush1.bf16.xpose.msra.mxu0 0
        %2017 = vmatprep.subr.bf16.mxu0 0
        %2018 = vmatpush1.bf16.xpose.msra.mxu0 %v2001
        %2019 = vmatprep.subr.bf16.mxu0 0
        %2020 = vmatpush2.bf16.xpose.msra.mxu0 0
        %2021 = vmatprep.subr.bf16.mxu0 0
        %2022 = vmatpush2.bf16.xpose.msra.mxu0 0
        %2023 = vmatprep.subr.bf16.mxu0 0
        %2024 = vmatpush2.bf16.xpose.msra.mxu0 0
        %2025 = vmatprep.subr.bf16.mxu0 0
        %2026 = vmatpush2.bf16.xpose.msra.mxu0 0
        %2027 = vmatprep.subr.bf16.mxu0 0
        %2028 = vmatpush2.bf16.xpose.msra.mxu0 0
        %2029 = vmatprep.subr.bf16.mxu0 0
        %2030 = vmatpush2.bf16.xpose.msra.mxu0 0
        %2031 = vmatprep.subr.bf16.mxu0 0
        %2032 = vmatpush2.bf16.xpose.msra.mxu0 0
        %2033 = vmatprep.subr.bf16.mxu0 0
        %2034 = vmatpush2.bf16.xpose.msra.mxu0 0
        %2035 = vmatprep.mubr.bf16.mxu0 0
        %2036 = vmatmul.mubr.bf16.gmra.mxu0 %v1998
        %v2037 = vpop.f32.mrf.mxu0
        %v2038 = vadd.f32 0.0, %v2037
        %v2039 = vpop.f32.mrf.mxu0
        %v2040 = vpop.f32.mrf.mxu0
        %v2041 = vpop.f32.mrf.mxu0
        %2042 = vdwg.mxu0
        %2044 = vrot.lane.b32.xlu0 %v1360, 64
        %v2045 = vpop.permute.xlu0 %2044
        %2046 = vrot.lane.b32.xlu0 %v1360, 56
        %v2047 = vpop.permute.xlu0 %2046
        %v2049 = vsel %vm1384, %v2045, 0
        %v2052 = vsel %vm1384, %v2047, 0
        %2054 = vmatprep.subr.bf16.mxu0 0
        %2055 = vmatpush1.bf16.xpose.msra.mxu0 0
        %2056 = vmatprep.subr.bf16.mxu0 0
        %2057 = vmatpush1.bf16.xpose.msra.mxu0 0
        %2058 = vmatprep.subr.bf16.mxu0 0
        %2059 = vmatpush1.bf16.xpose.msra.mxu0 0
        %2060 = vmatprep.subr.bf16.mxu0 0
        %2061 = vmatpush1.bf16.xpose.msra.mxu0 0
        %2062 = vmatprep.subr.bf16.mxu0 0
        %2063 = vmatpush1.bf16.xpose.msra.mxu0 0
        %2064 = vmatprep.subr.bf16.mxu0 0
        %2065 = vmatpush1.bf16.xpose.msra.mxu0 0
        %2066 = vmatprep.subr.bf16.mxu0 0
        %2067 = vmatpush1.bf16.xpose.msra.mxu0 0
        %2068 = vmatprep.subr.bf16.mxu0 0
        %2069 = vmatpush1.bf16.xpose.msra.mxu0 %v2052
        %2070 = vmatprep.subr.bf16.mxu0 0
        %2071 = vmatpush2.bf16.xpose.msra.mxu0 0
        %2072 = vmatprep.subr.bf16.mxu0 0
        %2073 = vmatpush2.bf16.xpose.msra.mxu0 0
        %2074 = vmatprep.subr.bf16.mxu0 0
        %2075 = vmatpush2.bf16.xpose.msra.mxu0 0
        %2076 = vmatprep.subr.bf16.mxu0 0
        %2077 = vmatpush2.bf16.xpose.msra.mxu0 0
        %2078 = vmatprep.subr.bf16.mxu0 0
        %2079 = vmatpush2.bf16.xpose.msra.mxu0 0
        %2080 = vmatprep.subr.bf16.mxu0 0
        %2081 = vmatpush2.bf16.xpose.msra.mxu0 0
        %2082 = vmatprep.subr.bf16.mxu0 0
        %2083 = vmatpush2.bf16.xpose.msra.mxu0 0
        %2084 = vmatprep.subr.bf16.mxu0 0
        %2085 = vmatpush2.bf16.xpose.msra.mxu0 0
        %2086 = vmatprep.mubr.bf16.mxu0 0
        %2087 = vmatmul.mubr.bf16.gmra.mxu0 %v2049
        %v2088 = vpop.f32.mrf.mxu0
        %v2089 = vadd.f32 0.0, %v2088
        %v2090 = vpop.f32.mrf.mxu0
        %v2091 = vpop.f32.mrf.mxu0
        %v2092 = vpop.f32.mrf.mxu0
        %2093 = vdwg.mxu0
        %2095 = vrot.lane.b32.xlu0 %v1361, 64
        %v2096 = vpop.permute.xlu0 %2095
        %2097 = vrot.lane.b32.xlu0 %v1361, 56
        %v2098 = vpop.permute.xlu0 %2097
        %v2100 = vsel %vm1384, %v2096, 0
        %v2103 = vsel %vm1384, %v2098, 0
        %2105 = vmatprep.subr.bf16.mxu0 0
        %2106 = vmatpush1.bf16.xpose.msra.mxu0 0
        %2107 = vmatprep.subr.bf16.mxu0 0
        %2108 = vmatpush1.bf16.xpose.msra.mxu0 0
        %2109 = vmatprep.subr.bf16.mxu0 0
        %2110 = vmatpush1.bf16.xpose.msra.mxu0 0
        %2111 = vmatprep.subr.bf16.mxu0 0
        %2112 = vmatpush1.bf16.xpose.msra.mxu0 0
        %2113 = vmatprep.subr.bf16.mxu0 0
        %2114 = vmatpush1.bf16.xpose.msra.mxu0 0
        %2115 = vmatprep.subr.bf16.mxu0 0
        %2116 = vmatpush1.bf16.xpose.msra.mxu0 0
        %2117 = vmatprep.subr.bf16.mxu0 0
        %2118 = vmatpush1.bf16.xpose.msra.mxu0 0
        %2119 = vmatprep.subr.bf16.mxu0 0
        %2120 = vmatpush1.bf16.xpose.msra.mxu0 %v2103
        %2121 = vmatprep.subr.bf16.mxu0 0
        %2122 = vmatpush2.bf16.xpose.msra.mxu0 0
        %2123 = vmatprep.subr.bf16.mxu0 0
        %2124 = vmatpush2.bf16.xpose.msra.mxu0 0
        %2125 = vmatprep.subr.bf16.mxu0 0
        %2126 = vmatpush2.bf16.xpose.msra.mxu0 0
        %2127 = vmatprep.subr.bf16.mxu0 0
        %2128 = vmatpush2.bf16.xpose.msra.mxu0 0
        %2129 = vmatprep.subr.bf16.mxu0 0
        %2130 = vmatpush2.bf16.xpose.msra.mxu0 0
        %2131 = vmatprep.subr.bf16.mxu0 0
        %2132 = vmatpush2.bf16.xpose.msra.mxu0 0
        %2133 = vmatprep.subr.bf16.mxu0 0
        %2134 = vmatpush2.bf16.xpose.msra.mxu0 0
        %2135 = vmatprep.subr.bf16.mxu0 0
        %2136 = vmatpush2.bf16.xpose.msra.mxu0 0
        %2137 = vmatprep.mubr.bf16.mxu0 0
        %2138 = vmatmul.mubr.bf16.gmra.mxu0 %v2100
        %v2139 = vpop.f32.mrf.mxu0
        %v2140 = vadd.f32 0.0, %v2139
        %v2141 = vpop.f32.mrf.mxu0
        %v2142 = vpop.f32.mrf.mxu0
        %v2143 = vpop.f32.mrf.mxu0
        %2144 = vdwg.mxu0
        %2146 = vrot.lane.b32.xlu0 %v1362, 64
        %v2147 = vpop.permute.xlu0 %2146
        %2148 = vrot.lane.b32.xlu0 %v1362, 56
        %v2149 = vpop.permute.xlu0 %2148
        %v2151 = vsel %vm1384, %v2147, 0
        %v2154 = vsel %vm1384, %v2149, 0
        %2156 = vmatprep.subr.bf16.mxu0 0
        %2157 = vmatpush1.bf16.xpose.msra.mxu0 0
        %2158 = vmatprep.subr.bf16.mxu0 0
        %2159 = vmatpush1.bf16.xpose.msra.mxu0 0
        %2160 = vmatprep.subr.bf16.mxu0 0
        %2161 = vmatpush1.bf16.xpose.msra.mxu0 0
        %2162 = vmatprep.subr.bf16.mxu0 0
        %2163 = vmatpush1.bf16.xpose.msra.mxu0 0
        %2164 = vmatprep.subr.bf16.mxu0 0
        %2165 = vmatpush1.bf16.xpose.msra.mxu0 0
        %2166 = vmatprep.subr.bf16.mxu0 0
        %2167 = vmatpush1.bf16.xpose.msra.mxu0 0
        %2168 = vmatprep.subr.bf16.mxu0 0
        %2169 = vmatpush1.bf16.xpose.msra.mxu0 0
        %2170 = vmatprep.subr.bf16.mxu0 0
        %2171 = vmatpush1.bf16.xpose.msra.mxu0 %v2154
        %2172 = vmatprep.subr.bf16.mxu0 0
        %2173 = vmatpush2.bf16.xpose.msra.mxu0 0
        %2174 = vmatprep.subr.bf16.mxu0 0
        %2175 = vmatpush2.bf16.xpose.msra.mxu0 0
        %2176 = vmatprep.subr.bf16.mxu0 0
        %2177 = vmatpush2.bf16.xpose.msra.mxu0 0
        %2178 = vmatprep.subr.bf16.mxu0 0
        %2179 = vmatpush2.bf16.xpose.msra.mxu0 0
        %2180 = vmatprep.subr.bf16.mxu0 0
        %2181 = vmatpush2.bf16.xpose.msra.mxu0 0
        %2182 = vmatprep.subr.bf16.mxu0 0
        %2183 = vmatpush2.bf16.xpose.msra.mxu0 0
        %2184 = vmatprep.subr.bf16.mxu0 0
        %2185 = vmatpush2.bf16.xpose.msra.mxu0 0
        %2186 = vmatprep.subr.bf16.mxu0 0
        %2187 = vmatpush2.bf16.xpose.msra.mxu0 0
        %2188 = vmatprep.mubr.bf16.mxu0 0
        %2189 = vmatmul.mubr.bf16.gmra.mxu0 %v2151
        %v2190 = vpop.f32.mrf.mxu0
        %v2191 = vadd.f32 0.0, %v2190
        %v2192 = vpop.f32.mrf.mxu0
        %v2193 = vpop.f32.mrf.mxu0
        %v2194 = vpop.f32.mrf.mxu0
        %2195 = vdwg.mxu0
        %v2197 = vsel %vm1384, %v1363, 0
        %v2200 = vsel %vm1384, %v1371, 0
        %2202 = vmatprep.subr.bf16.mxu0 0
        %2203 = vmatpush1.bf16.xpose.msra.mxu0 0
        %2204 = vmatprep.subr.bf16.mxu0 0
        %2205 = vmatpush1.bf16.xpose.msra.mxu0 0
        %2206 = vmatprep.subr.bf16.mxu0 0
        %2207 = vmatpush1.bf16.xpose.msra.mxu0 0
        %2208 = vmatprep.subr.bf16.mxu0 0
        %2209 = vmatpush1.bf16.xpose.msra.mxu0 0
        %2210 = vmatprep.subr.bf16.mxu0 0
        %2211 = vmatpush1.bf16.xpose.msra.mxu0 0
        %2212 = vmatprep.subr.bf16.mxu0 0
        %2213 = vmatpush1.bf16.xpose.msra.mxu0 0
        %2214 = vmatprep.subr.bf16.mxu0 0
        %2215 = vmatpush1.bf16.xpose.msra.mxu0 0
        %2216 = vmatprep.subr.bf16.mxu0 0
        %2217 = vmatpush1.bf16.xpose.msra.mxu0 %v2200
        %2218 = vmatprep.subr.bf16.mxu0 0
        %2219 = vmatpush2.bf16.xpose.msra.mxu0 0
        %2220 = vmatprep.subr.bf16.mxu0 0
        %2221 = vmatpush2.bf16.xpose.msra.mxu0 0
        %2222 = vmatprep.subr.bf16.mxu0 0
        %2223 = vmatpush2.bf16.xpose.msra.mxu0 0
        %2224 = vmatprep.subr.bf16.mxu0 0
        %2225 = vmatpush2.bf16.xpose.msra.mxu0 0
        %2226 = vmatprep.subr.bf16.mxu0 0
        %2227 = vmatpush2.bf16.xpose.msra.mxu0 0
        %2228 = vmatprep.subr.bf16.mxu0 0
        %2229 = vmatpush2.bf16.xpose.msra.mxu0 0
        %2230 = vmatprep.subr.bf16.mxu0 0
        %2231 = vmatpush2.bf16.xpose.msra.mxu0 0
        %2232 = vmatprep.subr.bf16.mxu0 0
        %2233 = vmatpush2.bf16.xpose.msra.mxu0 0
        %2234 = vmatprep.mubr.bf16.mxu0 0
        %2235 = vmatmul.mubr.bf16.gmra.mxu0 %v2197
        %v2236 = vpop.f32.mrf.mxu0
        %v2237 = vadd.f32 0.0, %v2236
        %v2238 = vpop.f32.mrf.mxu0
        %v2239 = vpop.f32.mrf.mxu0
        %v2240 = vadd.f32 0.0, %v2239
        %v2241 = vpop.f32.mrf.mxu0
        %2242 = vdwg.mxu0
        %v2244 = vsel %vm1384, %v1364, 0
        %v2247 = vsel %vm1384, %v1372, 0
        %2249 = vmatprep.subr.bf16.mxu0 0
        %2250 = vmatpush1.bf16.xpose.msra.mxu0 0
        %2251 = vmatprep.subr.bf16.mxu0 0
        %2252 = vmatpush1.bf16.xpose.msra.mxu0 0
        %2253 = vmatprep.subr.bf16.mxu0 0
        %2254 = vmatpush1.bf16.xpose.msra.mxu0 0
        %2255 = vmatprep.subr.bf16.mxu0 0
        %2256 = vmatpush1.bf16.xpose.msra.mxu0 0
        %2257 = vmatprep.subr.bf16.mxu0 0
        %2258 = vmatpush1.bf16.xpose.msra.mxu0 0
        %2259 = vmatprep.subr.bf16.mxu0 0
        %2260 = vmatpush1.bf16.xpose.msra.mxu0 0
        %2261 = vmatprep.subr.bf16.mxu0 0
        %2262 = vmatpush1.bf16.xpose.msra.mxu0 0
        %2263 = vmatprep.subr.bf16.mxu0 0
        %2264 = vmatpush1.bf16.xpose.msra.mxu0 %v2247
        %2265 = vmatprep.subr.bf16.mxu0 0
        %2266 = vmatpush2.bf16.xpose.msra.mxu0 0
        %2267 = vmatprep.subr.bf16.mxu0 0
        %2268 = vmatpush2.bf16.xpose.msra.mxu0 0
        %2269 = vmatprep.subr.bf16.mxu0 0
        %2270 = vmatpush2.bf16.xpose.msra.mxu0 0
        %2271 = vmatprep.subr.bf16.mxu0 0
        %2272 = vmatpush2.bf16.xpose.msra.mxu0 0
        %2273 = vmatprep.subr.bf16.mxu0 0
        %2274 = vmatpush2.bf16.xpose.msra.mxu0 0
        %2275 = vmatprep.subr.bf16.mxu0 0
        %2276 = vmatpush2.bf16.xpose.msra.mxu0 0
        %2277 = vmatprep.subr.bf16.mxu0 0
        %2278 = vmatpush2.bf16.xpose.msra.mxu0 0
        %2279 = vmatprep.subr.bf16.mxu0 0
        %2280 = vmatpush2.bf16.xpose.msra.mxu0 0
        %2281 = vmatprep.mubr.bf16.mxu0 0
        %2282 = vmatmul.mubr.bf16.gmra.mxu0 %v2244
        %v2283 = vpop.f32.mrf.mxu0
        %v2284 = vadd.f32 0.0, %v2283
        %v2285 = vpop.f32.mrf.mxu0
        %v2286 = vpop.f32.mrf.mxu0
        %v2287 = vadd.f32 0.0, %v2286
        %v2288 = vpop.f32.mrf.mxu0
        %2289 = vdwg.mxu0
        %v2291 = vsel %vm1384, %v1365, 0
        %v2294 = vsel %vm1384, %v1373, 0
        %2296 = vmatprep.subr.bf16.mxu0 0
        %2297 = vmatpush1.bf16.xpose.msra.mxu0 0
        %2298 = vmatprep.subr.bf16.mxu0 0
        %2299 = vmatpush1.bf16.xpose.msra.mxu0 0
        %2300 = vmatprep.subr.bf16.mxu0 0
        %2301 = vmatpush1.bf16.xpose.msra.mxu0 0
        %2302 = vmatprep.subr.bf16.mxu0 0
        %2303 = vmatpush1.bf16.xpose.msra.mxu0 0
        %2304 = vmatprep.subr.bf16.mxu0 0
        %2305 = vmatpush1.bf16.xpose.msra.mxu0 0
        %2306 = vmatprep.subr.bf16.mxu0 0
        %2307 = vmatpush1.bf16.xpose.msra.mxu0 0
        %2308 = vmatprep.subr.bf16.mxu0 0
        %2309 = vmatpush1.bf16.xpose.msra.mxu0 0
        %2310 = vmatprep.subr.bf16.mxu0 0
        %2311 = vmatpush1.bf16.xpose.msra.mxu0 %v2294
        %2312 = vmatprep.subr.bf16.mxu0 0
        %2313 = vmatpush2.bf16.xpose.msra.mxu0 0
        %2314 = vmatprep.subr.bf16.mxu0 0
        %2315 = vmatpush2.bf16.xpose.msra.mxu0 0
        %2316 = vmatprep.subr.bf16.mxu0 0
        %2317 = vmatpush2.bf16.xpose.msra.mxu0 0
        %2318 = vmatprep.subr.bf16.mxu0 0
        %2319 = vmatpush2.bf16.xpose.msra.mxu0 0
        %2320 = vmatprep.subr.bf16.mxu0 0
        %2321 = vmatpush2.bf16.xpose.msra.mxu0 0
        %2322 = vmatprep.subr.bf16.mxu0 0
        %2323 = vmatpush2.bf16.xpose.msra.mxu0 0
        %2324 = vmatprep.subr.bf16.mxu0 0
        %2325 = vmatpush2.bf16.xpose.msra.mxu0 0
        %2326 = vmatprep.subr.bf16.mxu0 0
        %2327 = vmatpush2.bf16.xpose.msra.mxu0 0
        %2328 = vmatprep.mubr.bf16.mxu0 0
        %2329 = vmatmul.mubr.bf16.gmra.mxu0 %v2291
        %v2330 = vpop.f32.mrf.mxu0
        %v2331 = vadd.f32 0.0, %v2330
        %v2332 = vpop.f32.mrf.mxu0
        %v2333 = vpop.f32.mrf.mxu0
        %v2334 = vadd.f32 0.0, %v2333
        %v2335 = vpop.f32.mrf.mxu0
        %2336 = vdwg.mxu0
        %v2338 = vsel %vm1384, %v1366, 0
        %v2341 = vsel %vm1384, %v1374, 0
        %2343 = vmatprep.subr.bf16.mxu0 0
        %2344 = vmatpush1.bf16.xpose.msra.mxu0 0
        %2345 = vmatprep.subr.bf16.mxu0 0
        %2346 = vmatpush1.bf16.xpose.msra.mxu0 0
        %2347 = vmatprep.subr.bf16.mxu0 0
        %2348 = vmatpush1.bf16.xpose.msra.mxu0 0
        %2349 = vmatprep.subr.bf16.mxu0 0
        %2350 = vmatpush1.bf16.xpose.msra.mxu0 0
        %2351 = vmatprep.subr.bf16.mxu0 0
        %2352 = vmatpush1.bf16.xpose.msra.mxu0 0
        %2353 = vmatprep.subr.bf16.mxu0 0
        %2354 = vmatpush1.bf16.xpose.msra.mxu0 0
        %2355 = vmatprep.subr.bf16.mxu0 0
        %2356 = vmatpush1.bf16.xpose.msra.mxu0 0
        %2357 = vmatprep.subr.bf16.mxu0 0
        %2358 = vmatpush1.bf16.xpose.msra.mxu0 %v2341
        %2359 = vmatprep.subr.bf16.mxu0 0
        %2360 = vmatpush2.bf16.xpose.msra.mxu0 0
        %2361 = vmatprep.subr.bf16.mxu0 0
        %2362 = vmatpush2.bf16.xpose.msra.mxu0 0
        %2363 = vmatprep.subr.bf16.mxu0 0
        %2364 = vmatpush2.bf16.xpose.msra.mxu0 0
        %2365 = vmatprep.subr.bf16.mxu0 0
        %2366 = vmatpush2.bf16.xpose.msra.mxu0 0
        %2367 = vmatprep.subr.bf16.mxu0 0
        %2368 = vmatpush2.bf16.xpose.msra.mxu0 0
        %2369 = vmatprep.subr.bf16.mxu0 0
        %2370 = vmatpush2.bf16.xpose.msra.mxu0 0
        %2371 = vmatprep.subr.bf16.mxu0 0
        %2372 = vmatpush2.bf16.xpose.msra.mxu0 0
        %2373 = vmatprep.subr.bf16.mxu0 0
        %2374 = vmatpush2.bf16.xpose.msra.mxu0 0
        %2375 = vmatprep.mubr.bf16.mxu0 0
        %2376 = vmatmul.mubr.bf16.gmra.mxu0 %v2338
        %v2377 = vpop.f32.mrf.mxu0
        %v2378 = vadd.f32 0.0, %v2377
        %v2379 = vpop.f32.mrf.mxu0
        %v2380 = vpop.f32.mrf.mxu0
        %v2381 = vadd.f32 0.0, %v2380
        %v2382 = vpop.f32.mrf.mxu0
        %2383 = vdwg.mxu0
        %v2385 = vsel %vm1384, %v1367, 0
        %v2388 = vsel %vm1384, %v1375, 0
        %2390 = vmatprep.subr.bf16.mxu0 0
        %2391 = vmatpush1.bf16.xpose.msra.mxu0 0
        %2392 = vmatprep.subr.bf16.mxu0 0
        %2393 = vmatpush1.bf16.xpose.msra.mxu0 0
        %2394 = vmatprep.subr.bf16.mxu0 0
        %2395 = vmatpush1.bf16.xpose.msra.mxu0 0
        %2396 = vmatprep.subr.bf16.mxu0 0
        %2397 = vmatpush1.bf16.xpose.msra.mxu0 0
        %2398 = vmatprep.subr.bf16.mxu0 0
        %2399 = vmatpush1.bf16.xpose.msra.mxu0 0
        %2400 = vmatprep.subr.bf16.mxu0 0
        %2401 = vmatpush1.bf16.xpose.msra.mxu0 0
        %2402 = vmatprep.subr.bf16.mxu0 0
        %2403 = vmatpush1.bf16.xpose.msra.mxu0 0
        %2404 = vmatprep.subr.bf16.mxu0 0
        %2405 = vmatpush1.bf16.xpose.msra.mxu0 %v2388
        %2406 = vmatprep.subr.bf16.mxu0 0
        %2407 = vmatpush2.bf16.xpose.msra.mxu0 0
        %2408 = vmatprep.subr.bf16.mxu0 0
        %2409 = vmatpush2.bf16.xpose.msra.mxu0 0
        %2410 = vmatprep.subr.bf16.mxu0 0
        %2411 = vmatpush2.bf16.xpose.msra.mxu0 0
        %2412 = vmatprep.subr.bf16.mxu0 0
        %2413 = vmatpush2.bf16.xpose.msra.mxu0 0
        %2414 = vmatprep.subr.bf16.mxu0 0
        %2415 = vmatpush2.bf16.xpose.msra.mxu0 0
        %2416 = vmatprep.subr.bf16.mxu0 0
        %2417 = vmatpush2.bf16.xpose.msra.mxu0 0
        %2418 = vmatprep.subr.bf16.mxu0 0
        %2419 = vmatpush2.bf16.xpose.msra.mxu0 0
        %2420 = vmatprep.subr.bf16.mxu0 0
        %2421 = vmatpush2.bf16.xpose.msra.mxu0 0
        %2422 = vmatprep.mubr.bf16.mxu0 0
        %2423 = vmatmul.mubr.bf16.gmra.mxu0 %v2385
        %v2424 = vpop.f32.mrf.mxu0
        %v2425 = vadd.f32 0.0, %v2424
        %v2426 = vpop.f32.mrf.mxu0
        %v2427 = vpop.f32.mrf.mxu0
        %v2428 = vadd.f32 0.0, %v2427
        %v2429 = vpop.f32.mrf.mxu0
        %2430 = vdwg.mxu0
        %v2432 = vsel %vm1384, %v1368, 0
        %v2435 = vsel %vm1384, %v1376, 0
        %2437 = vmatprep.subr.bf16.mxu0 0
        %2438 = vmatpush1.bf16.xpose.msra.mxu0 0
        %2439 = vmatprep.subr.bf16.mxu0 0
        %2440 = vmatpush1.bf16.xpose.msra.mxu0 0
        %2441 = vmatprep.subr.bf16.mxu0 0
        %2442 = vmatpush1.bf16.xpose.msra.mxu0 0
        %2443 = vmatprep.subr.bf16.mxu0 0
        %2444 = vmatpush1.bf16.xpose.msra.mxu0 0
        %2445 = vmatprep.subr.bf16.mxu0 0
        %2446 = vmatpush1.bf16.xpose.msra.mxu0 0
        %2447 = vmatprep.subr.bf16.mxu0 0
        %2448 = vmatpush1.bf16.xpose.msra.mxu0 0
        %2449 = vmatprep.subr.bf16.mxu0 0
        %2450 = vmatpush1.bf16.xpose.msra.mxu0 0
        %2451 = vmatprep.subr.bf16.mxu0 0
        %2452 = vmatpush1.bf16.xpose.msra.mxu0 %v2435
        %2453 = vmatprep.subr.bf16.mxu0 0
        %2454 = vmatpush2.bf16.xpose.msra.mxu0 0
        %2455 = vmatprep.subr.bf16.mxu0 0
        %2456 = vmatpush2.bf16.xpose.msra.mxu0 0
        %2457 = vmatprep.subr.bf16.mxu0 0
        %2458 = vmatpush2.bf16.xpose.msra.mxu0 0
        %2459 = vmatprep.subr.bf16.mxu0 0
        %2460 = vmatpush2.bf16.xpose.msra.mxu0 0
        %2461 = vmatprep.subr.bf16.mxu0 0
        %2462 = vmatpush2.bf16.xpose.msra.mxu0 0
        %2463 = vmatprep.subr.bf16.mxu0 0
        %2464 = vmatpush2.bf16.xpose.msra.mxu0 0
        %2465 = vmatprep.subr.bf16.mxu0 0
        %2466 = vmatpush2.bf16.xpose.msra.mxu0 0
        %2467 = vmatprep.subr.bf16.mxu0 0
        %2468 = vmatpush2.bf16.xpose.msra.mxu0 0
        %2469 = vmatprep.mubr.bf16.mxu0 0
        %2470 = vmatmul.mubr.bf16.gmra.mxu0 %v2432
        %v2471 = vpop.f32.mrf.mxu0
        %v2472 = vadd.f32 0.0, %v2471
        %v2473 = vpop.f32.mrf.mxu0
        %v2474 = vpop.f32.mrf.mxu0
        %v2475 = vadd.f32 0.0, %v2474
        %v2476 = vpop.f32.mrf.mxu0
        %2477 = vdwg.mxu0
        %v2479 = vsel %vm1384, %v1369, 0
        %v2482 = vsel %vm1384, %v1377, 0
        %2484 = vmatprep.subr.bf16.mxu0 0
        %2485 = vmatpush1.bf16.xpose.msra.mxu0 0
        %2486 = vmatprep.subr.bf16.mxu0 0
        %2487 = vmatpush1.bf16.xpose.msra.mxu0 0
        %2488 = vmatprep.subr.bf16.mxu0 0
        %2489 = vmatpush1.bf16.xpose.msra.mxu0 0
        %2490 = vmatprep.subr.bf16.mxu0 0
        %2491 = vmatpush1.bf16.xpose.msra.mxu0 0
        %2492 = vmatprep.subr.bf16.mxu0 0
        %2493 = vmatpush1.bf16.xpose.msra.mxu0 0
        %2494 = vmatprep.subr.bf16.mxu0 0
        %2495 = vmatpush1.bf16.xpose.msra.mxu0 0
        %2496 = vmatprep.subr.bf16.mxu0 0
        %2497 = vmatpush1.bf16.xpose.msra.mxu0 0
        %2498 = vmatprep.subr.bf16.mxu0 0
        %2499 = vmatpush1.bf16.xpose.msra.mxu0 %v2482
        %2500 = vmatprep.subr.bf16.mxu0 0
        %2501 = vmatpush2.bf16.xpose.msra.mxu0 0
        %2502 = vmatprep.subr.bf16.mxu0 0
        %2503 = vmatpush2.bf16.xpose.msra.mxu0 0
        %2504 = vmatprep.subr.bf16.mxu0 0
        %2505 = vmatpush2.bf16.xpose.msra.mxu0 0
        %2506 = vmatprep.subr.bf16.mxu0 0
        %2507 = vmatpush2.bf16.xpose.msra.mxu0 0
        %2508 = vmatprep.subr.bf16.mxu0 0
        %2509 = vmatpush2.bf16.xpose.msra.mxu0 0
        %2510 = vmatprep.subr.bf16.mxu0 0
        %2511 = vmatpush2.bf16.xpose.msra.mxu0 0
        %2512 = vmatprep.subr.bf16.mxu0 0
        %2513 = vmatpush2.bf16.xpose.msra.mxu0 0
        %2514 = vmatprep.subr.bf16.mxu0 0
        %2515 = vmatpush2.bf16.xpose.msra.mxu0 0
        %2516 = vmatprep.mubr.bf16.mxu0 0
        %2517 = vmatmul.mubr.bf16.gmra.mxu0 %v2479
        %v2518 = vpop.f32.mrf.mxu0
        %v2519 = vadd.f32 0.0, %v2518
        %v2520 = vpop.f32.mrf.mxu0
        %v2521 = vpop.f32.mrf.mxu0
        %v2522 = vadd.f32 0.0, %v2521
        %v2523 = vpop.f32.mrf.mxu0
        %2524 = vdwg.mxu0
        %v2526 = vsel %vm1384, %v1370, 0
        %v2529 = vsel %vm1384, %v1378, 0
        %2531 = vmatprep.subr.bf16.mxu0 0
        %2532 = vmatpush1.bf16.xpose.msra.mxu0 0
        %2533 = vmatprep.subr.bf16.mxu0 0
        %2534 = vmatpush1.bf16.xpose.msra.mxu0 0
        %2535 = vmatprep.subr.bf16.mxu0 0
        %2536 = vmatpush1.bf16.xpose.msra.mxu0 0
        %2537 = vmatprep.subr.bf16.mxu0 0
        %2538 = vmatpush1.bf16.xpose.msra.mxu0 0
        %2539 = vmatprep.subr.bf16.mxu0 0
        %2540 = vmatpush1.bf16.xpose.msra.mxu0 0
        %2541 = vmatprep.subr.bf16.mxu0 0
        %2542 = vmatpush1.bf16.xpose.msra.mxu0 0
        %2543 = vmatprep.subr.bf16.mxu0 0
        %2544 = vmatpush1.bf16.xpose.msra.mxu0 0
        %2545 = vmatprep.subr.bf16.mxu0 0
        %2546 = vmatpush1.bf16.xpose.msra.mxu0 %v2529
        %2547 = vmatprep.subr.bf16.mxu0 0
        %2548 = vmatpush2.bf16.xpose.msra.mxu0 0
        %2549 = vmatprep.subr.bf16.mxu0 0
        %2550 = vmatpush2.bf16.xpose.msra.mxu0 0
        %2551 = vmatprep.subr.bf16.mxu0 0
        %2552 = vmatpush2.bf16.xpose.msra.mxu0 0
        %2553 = vmatprep.subr.bf16.mxu0 0
        %2554 = vmatpush2.bf16.xpose.msra.mxu0 0
        %2555 = vmatprep.subr.bf16.mxu0 0
        %2556 = vmatpush2.bf16.xpose.msra.mxu0 0
        %2557 = vmatprep.subr.bf16.mxu0 0
        %2558 = vmatpush2.bf16.xpose.msra.mxu0 0
        %2559 = vmatprep.subr.bf16.mxu0 0
        %2560 = vmatpush2.bf16.xpose.msra.mxu0 0
        %2561 = vmatprep.subr.bf16.mxu0 0
        %2562 = vmatpush2.bf16.xpose.msra.mxu0 0
        %2563 = vmatprep.mubr.bf16.mxu0 0
        %2564 = vmatmul.mubr.bf16.gmra.mxu0 %v2526
        %v2565 = vpop.f32.mrf.mxu0
        %v2566 = vadd.f32 0.0, %v2565
        %v2567 = vpop.f32.mrf.mxu0
        %v2568 = vpop.f32.mrf.mxu0
        %v2569 = vadd.f32 0.0, %v2568
        %v2570 = vpop.f32.mrf.mxu0
        %2571 = vdwg.mxu0
        %v2572 = vlaneseq
        %v2573 = vshrl.u32 %v2572, 7
        %v2574 = vadd.s32 %v2573, 8
        %v2575 = vlaneseq
        %v2576 = vand.u32 %v2575, 127
        %vm2577 = vcmp.eq.s32.totalorder %v2573, %v2576
        %vm2578 = vcmp.eq.s32.totalorder %v2574, %v2576
        %v2579 = vsel %vm2577, 1, 0
        %v2580 = vsel %vm2578, 1, 0
        %vm2581 = vcmp.eq.s32.totalorder %v2579, 1
        %vm2582 = vcmp.eq.s32.totalorder %v2580, 1
        %v2583 = vsel %vm2581, -1e+30, %v2237
        %v2584 = vsel %vm2582, -1e+30, %v2240
        %v2585 = vsel %vm2581, -1e+30, %v2284
        %v2586 = vsel %vm2582, -1e+30, %v2287
        %v2587 = vsel %vm2581, -1e+30, %v2331
        %v2588 = vsel %vm2582, -1e+30, %v2334
        %v2589 = vsel %vm2581, -1e+30, %v2378
        %v2590 = vsel %vm2582, -1e+30, %v2381
        %v2591 = vsel %vm2581, -1e+30, %v2425
        %v2592 = vsel %vm2582, -1e+30, %v2428
        %v2593 = vsel %vm2581, -1e+30, %v2472
        %v2594 = vsel %vm2582, -1e+30, %v2475
        %v2595 = vsel %vm2581, -1e+30, %v2519
        %v2596 = vsel %vm2582, -1e+30, %v2522
        %v2597 = vsel %vm2581, -1e+30, %v2566
        %v2598 = vsel %vm2582, -1e+30, %v2569
        %v2599 = vsel %vm1384, %v1426, -inf
        %2600 = vmax.xlane.f32.xlu0 %v2599
        %v2601 = vpop.xlane.xlu0 %2600
        %v2602 = vsel %vm1384, %v1477, -inf
        %2603 = vmax.xlane.f32.xlu0 %v2602
        %v2604 = vpop.xlane.xlu0 %2603
        %v2605 = vsel %vm1384, %v1528, -inf
        %2606 = vmax.xlane.f32.xlu0 %v2605
        %v2607 = vpop.xlane.xlu0 %2606
        %v2608 = vsel %vm1384, %v1579, -inf
        %2609 = vmax.xlane.f32.xlu0 %v2608
        %v2610 = vpop.xlane.xlu0 %2609
        %v2611 = vsel %vm1384, %v1630, -inf
        %2612 = vmax.xlane.f32.xlu0 %v2611
        %v2613 = vpop.xlane.xlu0 %2612
        %v2614 = vsel %vm1384, %v1681, -inf
        %2615 = vmax.xlane.f32.xlu0 %v2614
        %v2616 = vpop.xlane.xlu0 %2615
        %v2617 = vsel %vm1384, %v1732, -inf
        %2618 = vmax.xlane.f32.xlu0 %v2617
        %v2619 = vpop.xlane.xlu0 %2618
        %v2620 = vsel %vm1384, %v1783, -inf
        %2621 = vmax.xlane.f32.xlu0 %v2620
        %v2622 = vpop.xlane.xlu0 %2621
        %v2623 = vsel %vm1384, %v1834, -inf
        %2624 = vmax.xlane.f32.xlu0 %v2623
        %v2625 = vpop.xlane.xlu0 %2624
        %v2626 = vsel %vm1384, %v1885, -inf
        %2627 = vmax.xlane.f32.xlu0 %v2626
        %v2628 = vpop.xlane.xlu0 %2627
        %v2629 = vsel %vm1384, %v1936, -inf
        %2630 = vmax.xlane.f32.xlu0 %v2629
        %v2631 = vpop.xlane.xlu0 %2630
        %v2632 = vsel %vm1384, %v1987, -inf
        %2633 = vmax.xlane.f32.xlu0 %v2632
        %v2634 = vpop.xlane.xlu0 %2633
        %v2635 = vsel %vm1384, %v2038, -inf
        %2636 = vmax.xlane.f32.xlu0 %v2635
        %v2637 = vpop.xlane.xlu0 %2636
        %v2638 = vsel %vm1384, %v2089, -inf
        %2639 = vmax.xlane.f32.xlu0 %v2638
        %v2640 = vpop.xlane.xlu0 %2639
        %v2641 = vsel %vm1384, %v2140, -inf
        %2642 = vmax.xlane.f32.xlu0 %v2641
        %v2643 = vpop.xlane.xlu0 %2642
        %v2644 = vsel %vm1384, %v2191, -inf
        %2645 = vmax.xlane.f32.xlu0 %v2644
        %v2646 = vpop.xlane.xlu0 %2645
        %vm2647 = vcmask 130048
        %v2648 = vsel %vm2647, %v2583, -inf
        %2649 = vmax.xlane.f32.xlu0 %v2648
        %v2650 = vpop.xlane.xlu0 %2649
        %v2651 = vsel %vm2647, %v2584, -inf
        %2652 = vmax.xlane.f32.xlu0 %v2651
        %v2653 = vpop.xlane.xlu0 %2652
        %v2654 = vsel %vm2647, %v2585, -inf
        %2655 = vmax.xlane.f32.xlu0 %v2654
        %v2656 = vpop.xlane.xlu0 %2655
        %v2657 = vsel %vm2647, %v2586, -inf
        %2658 = vmax.xlane.f32.xlu0 %v2657
        %v2659 = vpop.xlane.xlu0 %2658
        %v2660 = vsel %vm2647, %v2587, -inf
        %2661 = vmax.xlane.f32.xlu0 %v2660
        %v2662 = vpop.xlane.xlu0 %2661
        %v2663 = vsel %vm2647, %v2588, -inf
        %2664 = vmax.xlane.f32.xlu0 %v2663
        %v2665 = vpop.xlane.xlu0 %2664
        %v2666 = vsel %vm2647, %v2589, -inf
        %2667 = vmax.xlane.f32.xlu0 %v2666
        %v2668 = vpop.xlane.xlu0 %2667
        %v2669 = vsel %vm2647, %v2590, -inf
        %2670 = vmax.xlane.f32.xlu0 %v2669
        %v2671 = vpop.xlane.xlu0 %2670
        %v2672 = vsel %vm2647, %v2591, -inf
        %2673 = vmax.xlane.f32.xlu0 %v2672
        %v2674 = vpop.xlane.xlu0 %2673
        %v2675 = vsel %vm2647, %v2592, -inf
        %2676 = vmax.xlane.f32.xlu0 %v2675
        %v2677 = vpop.xlane.xlu0 %2676
        %v2678 = vsel %vm2647, %v2593, -inf
        %2679 = vmax.xlane.f32.xlu0 %v2678
        %v2680 = vpop.xlane.xlu0 %2679
        %v2681 = vsel %vm2647, %v2594, -inf
        %2682 = vmax.xlane.f32.xlu0 %v2681
        %v2683 = vpop.xlane.xlu0 %2682
        %v2684 = vsel %vm2647, %v2595, -inf
        %2685 = vmax.xlane.f32.xlu0 %v2684
        %v2686 = vpop.xlane.xlu0 %2685
        %v2687 = vsel %vm2647, %v2596, -inf
        %2688 = vmax.xlane.f32.xlu0 %v2687
        %v2689 = vpop.xlane.xlu0 %2688
        %v2690 = vsel %vm2647, %v2597, -inf
        %2691 = vmax.xlane.f32.xlu0 %v2690
        %v2692 = vpop.xlane.xlu0 %2691
        %v2693 = vsel %vm2647, %v2598, -inf
        %2694 = vmax.xlane.f32.xlu0 %v2693
        %v2695 = vpop.xlane.xlu0 %2694
        %v2712 = vlaneseq
        %v2713 = vshrl.u32 %v2712, 7
        %v2714 = vsub.s32 %v2576, %v2713
        %v2715 = vrot.slane %v2650, %v2714
        %v2716 = vadd.s32 %v2576, 4294967288
        %v2717 = vlaneseq
        %v2718 = vshrl.u32 %v2717, 7
        %v2719 = vsub.s32 %v2716, %v2718
        %v2720 = vrot.slane %v2653, %v2719
        %vm2721 = vcmask 130112
        %v2722 = vsel %vm2721, %v2720, %v2715
        %v2723 = vlaneseq
        %v2724 = vshrl.u32 %v2723, 7
        %v2725 = vsub.s32 %v2576, %v2724
        %v2726 = vrot.slane %v2656, %v2725
        %v2727 = vlaneseq
        %v2728 = vshrl.u32 %v2727, 7
        %v2729 = vsub.s32 %v2716, %v2728
        %v2730 = vrot.slane %v2659, %v2729
        %v2731 = vsel %vm2721, %v2730, %v2726
        %v2732 = vlaneseq
        %v2733 = vshrl.u32 %v2732, 7
        %v2734 = vsub.s32 %v2576, %v2733
        %v2735 = vrot.slane %v2662, %v2734
        %v2736 = vlaneseq
        %v2737 = vshrl.u32 %v2736, 7
        %v2738 = vsub.s32 %v2716, %v2737
        %v2739 = vrot.slane %v2665, %v2738
        %v2740 = vsel %vm2721, %v2739, %v2735
        %v2741 = vlaneseq
        %v2742 = vshrl.u32 %v2741, 7
        %v2743 = vsub.s32 %v2576, %v2742
        %v2744 = vrot.slane %v2668, %v2743
        %v2745 = vlaneseq
        %v2746 = vshrl.u32 %v2745, 7
        %v2747 = vsub.s32 %v2716, %v2746
        %v2748 = vrot.slane %v2671, %v2747
        %v2749 = vsel %vm2721, %v2748, %v2744
        %v2750 = vlaneseq
        %v2751 = vshrl.u32 %v2750, 7
        %v2752 = vsub.s32 %v2576, %v2751
        %v2753 = vrot.slane %v2674, %v2752
        %v2754 = vlaneseq
        %v2755 = vshrl.u32 %v2754, 7
        %v2756 = vsub.s32 %v2716, %v2755
        %v2757 = vrot.slane %v2677, %v2756
        %v2758 = vsel %vm2721, %v2757, %v2753
        %v2759 = vlaneseq
        %v2760 = vshrl.u32 %v2759, 7
        %v2761 = vsub.s32 %v2576, %v2760
        %v2762 = vrot.slane %v2680, %v2761
        %v2763 = vlaneseq
        %v2764 = vshrl.u32 %v2763, 7
        %v2765 = vsub.s32 %v2716, %v2764
        %v2766 = vrot.slane %v2683, %v2765
        %v2767 = vsel %vm2721, %v2766, %v2762
        %v2768 = vlaneseq
        %v2769 = vshrl.u32 %v2768, 7
        %v2770 = vsub.s32 %v2576, %v2769
        %v2771 = vrot.slane %v2686, %v2770
        %v2772 = vlaneseq
        %v2773 = vshrl.u32 %v2772, 7
        %v2774 = vsub.s32 %v2716, %v2773
        %v2775 = vrot.slane %v2689, %v2774
        %v2776 = vsel %vm2721, %v2775, %v2771
        %v2777 = vlaneseq
        %v2778 = vshrl.u32 %v2777, 7
        %v2779 = vsub.s32 %v2576, %v2778
        %v2780 = vrot.slane %v2692, %v2779
        %v2781 = vlaneseq
        %v2782 = vshrl.u32 %v2781, 7
        %v2783 = vsub.s32 %v2716, %v2782
        %v2784 = vrot.slane %v2695, %v2783
        %v2785 = vsel %vm2721, %v2784, %v2780
        %vm2786 = vcmask 1041409
        %v2787 = vsel %vm2786, %v2731, %v2722
        %vm2788 = vcmask 1042434
        %v2789 = vsel %vm2788, %v2740, %v2787
        %vm2790 = vcmask 1043459
        %v2791 = vsel %vm2790, %v2749, %v2789
        %vm2792 = vcmask 1044484
        %v2793 = vsel %vm2792, %v2758, %v2791
        %vm2794 = vcmask 1045509
        %v2795 = vsel %vm2794, %v2767, %v2793
        %vm2796 = vcmask 1046534
        %v2797 = vsel %vm2796, %v2776, %v2795
        %vm2798 = vcmask 1047559
        %v2799 = vsel %vm2798, %v2785, %v2797
        %2801 = vxpose.xlu0.b32.start [1/16] %v2799, 128
        %2802 = vxpose.xlu0.b32.cont [2/16] 0.0, 128
        %2803 = vxpose.xlu0.b32.cont [3/16] 0.0, 128
        %2804 = vxpose.xlu0.b32.cont [4/16] 0.0, 128
        %2805 = vxpose.xlu0.b32.cont [5/16] 0.0, 128
        %2806 = vxpose.xlu0.b32.cont [6/16] 0.0, 128
        %2807 = vxpose.xlu0.b32.cont [7/16] 0.0, 128
        %2808 = vxpose.xlu0.b32.cont [8/16] 0.0, 128
        %2809 = vxpose.xlu0.b32.cont [9/16] 0.0, 128
        %2810 = vxpose.xlu0.b32.cont [10/16] 0.0, 128
        %2811 = vxpose.xlu0.b32.cont [11/16] 0.0, 128
        %2812 = vxpose.xlu0.b32.cont [12/16] 0.0, 128
        %2813 = vxpose.xlu0.b32.cont [13/16] 0.0, 128
        %2814 = vxpose.xlu0.b32.cont [14/16] 0.0, 128
        %2815 = vxpose.xlu0.b32.cont [15/16] 0.0, 128
        %2816 = vxpose.xlu0.b32.end [16/16] 0.0, 128
        %v2817 = vpop.trf.xlu0
        %v2818 = vpop.trf.xlu0
        %v2819 = vpop.trf.xlu0
        %v2820 = vpop.trf.xlu0
        %v2821 = vpop.trf.xlu0
        %v2822 = vpop.trf.xlu0
        %v2823 = vpop.trf.xlu0
        %v2824 = vpop.trf.xlu0
        %v2825 = vpop.trf.xlu0
        %v2826 = vpop.trf.xlu0
        %v2827 = vpop.trf.xlu0
        %v2828 = vpop.trf.xlu0
        %v2829 = vpop.trf.xlu0
        %v2830 = vpop.trf.xlu0
        %v2831 = vpop.trf.xlu0
        %v2832 = vpop.trf.xlu0
        %v2835 = vlaneseq
        %v2836 = vshrl.u32 %v2835, 7
        %v2837 = vsub.s32 0, %v2836
        %v2838 = vrot.slane %v2817, %v2837
        %2840 = vbcast.lane.b32.xlu0 %v2838, 256
        %v2841 = vpop.permute.xlu0 %2840
        %v2842 = vlaneseq
        %v2843 = vshrl.u32 %v2842, 7
        %v2844 = vsub.s32 1, %v2843
        %v2845 = vrot.slane %v2817, %v2844
        %2847 = vbcast.lane.b32.xlu0 %v2845, 256
        %v2848 = vpop.permute.xlu0 %2847
        %v2849 = vlaneseq
        %v2850 = vshrl.u32 %v2849, 7
        %v2851 = vsub.s32 2, %v2850
        %v2852 = vrot.slane %v2817, %v2851
        %2854 = vbcast.lane.b32.xlu0 %v2852, 256
        %v2855 = vpop.permute.xlu0 %2854
        %v2856 = vlaneseq
        %v2857 = vshrl.u32 %v2856, 7
        %v2858 = vsub.s32 3, %v2857
        %v2859 = vrot.slane %v2817, %v2858
        %2861 = vbcast.lane.b32.xlu0 %v2859, 256
        %v2862 = vpop.permute.xlu0 %2861
        %v2863 = vlaneseq
        %v2864 = vshrl.u32 %v2863, 7
        %v2865 = vsub.s32 4, %v2864
        %v2866 = vrot.slane %v2817, %v2865
        %2868 = vbcast.lane.b32.xlu0 %v2866, 256
        %v2869 = vpop.permute.xlu0 %2868
        %v2870 = vlaneseq
        %v2871 = vshrl.u32 %v2870, 7
        %v2872 = vsub.s32 5, %v2871
        %v2873 = vrot.slane %v2817, %v2872
        %2875 = vbcast.lane.b32.xlu0 %v2873, 256
        %v2876 = vpop.permute.xlu0 %2875
        %v2877 = vlaneseq
        %v2878 = vshrl.u32 %v2877, 7
        %v2879 = vsub.s32 6, %v2878
        %v2880 = vrot.slane %v2817, %v2879
        %2882 = vbcast.lane.b32.xlu0 %v2880, 256
        %v2883 = vpop.permute.xlu0 %2882
        %v2884 = vlaneseq
        %v2885 = vshrl.u32 %v2884, 7
        %v2886 = vsub.s32 7, %v2885
        %v2887 = vrot.slane %v2817, %v2886
        %2889 = vbcast.lane.b32.xlu0 %v2887, 256
        %v2890 = vpop.permute.xlu0 %2889
        %v2891 = vlaneseq
        %v2892 = vshrl.u32 %v2891, 7
        %v2893 = vsub.s32 0, %v2892
        %v2894 = vrot.slane %v2818, %v2893
        %2896 = vbcast.lane.b32.xlu0 %v2894, 256
        %v2897 = vpop.permute.xlu0 %2896
        %v2898 = vlaneseq
        %v2899 = vshrl.u32 %v2898, 7
        %v2900 = vsub.s32 1, %v2899
        %v2901 = vrot.slane %v2818, %v2900
        %2903 = vbcast.lane.b32.xlu0 %v2901, 256
        %v2904 = vpop.permute.xlu0 %2903
        %v2905 = vlaneseq
        %v2906 = vshrl.u32 %v2905, 7
        %v2907 = vsub.s32 2, %v2906
        %v2908 = vrot.slane %v2818, %v2907
        %2910 = vbcast.lane.b32.xlu0 %v2908, 256
        %v2911 = vpop.permute.xlu0 %2910
        %v2912 = vlaneseq
        %v2913 = vshrl.u32 %v2912, 7
        %v2914 = vsub.s32 3, %v2913
        %v2915 = vrot.slane %v2818, %v2914
        %2917 = vbcast.lane.b32.xlu0 %v2915, 256
        %v2918 = vpop.permute.xlu0 %2917
        %v2919 = vlaneseq
        %v2920 = vshrl.u32 %v2919, 7
        %v2921 = vsub.s32 4, %v2920
        %v2922 = vrot.slane %v2818, %v2921
        %2924 = vbcast.lane.b32.xlu0 %v2922, 256
        %v2925 = vpop.permute.xlu0 %2924
        %v2926 = vlaneseq
        %v2927 = vshrl.u32 %v2926, 7
        %v2928 = vsub.s32 5, %v2927
        %v2929 = vrot.slane %v2818, %v2928
        %2931 = vbcast.lane.b32.xlu0 %v2929, 256
        %v2932 = vpop.permute.xlu0 %2931
        %v2933 = vlaneseq
        %v2934 = vshrl.u32 %v2933, 7
        %v2935 = vsub.s32 6, %v2934
        %v2936 = vrot.slane %v2818, %v2935
        %2938 = vbcast.lane.b32.xlu0 %v2936, 256
        %v2939 = vpop.permute.xlu0 %2938
        %v2940 = vlaneseq
        %v2941 = vshrl.u32 %v2940, 7
        %v2942 = vsub.s32 7, %v2941
        %v2943 = vrot.slane %v2818, %v2942
        %2945 = vbcast.lane.b32.xlu0 %v2943, 256
        %v2946 = vpop.permute.xlu0 %2945
        %v2963 = vmax.f32 %v2601, %v2841
        %v2964 = vmax.f32 %v2604, %v2848
        %v2965 = vmax.f32 %v2607, %v2855
        %v2966 = vmax.f32 %v2610, %v2862
        %v2967 = vmax.f32 %v2613, %v2869
        %v2968 = vmax.f32 %v2616, %v2876
        %v2969 = vmax.f32 %v2619, %v2883
        %v2970 = vmax.f32 %v2622, %v2890
        %v2971 = vmax.f32 %v2625, %v2897
        %v2972 = vmax.f32 %v2628, %v2904
        %v2973 = vmax.f32 %v2631, %v2911
        %v2974 = vmax.f32 %v2634, %v2918
        %v2975 = vmax.f32 %v2637, %v2925
        %v2976 = vmax.f32 %v2640, %v2932
        %v2977 = vmax.f32 %v2643, %v2939
        %v2978 = vmax.f32 %v2646, %v2946
        %2980 = vset.pattern.permute.xlu0 0
        %2981 = vperm.xlu0 %2980, %v2963
        %v2982 = vpop.permute.xlu0 %2981
        %2985 = vset.pattern.permute.xlu0 0
        %2986 = vperm.xlu0 %2985, %v2964
        %v2987 = vpop.permute.xlu0 %2986
        %2990 = vset.pattern.permute.xlu0 0
        %2991 = vperm.xlu0 %2990, %v2965
        %v2992 = vpop.permute.xlu0 %2991
        %2995 = vset.pattern.permute.xlu0 0
        %2996 = vperm.xlu0 %2995, %v2966
        %v2997 = vpop.permute.xlu0 %2996
        %3000 = vset.pattern.permute.xlu0 0
        %3001 = vperm.xlu0 %3000, %v2967
        %v3002 = vpop.permute.xlu0 %3001
        %3005 = vset.pattern.permute.xlu0 0
        %3006 = vperm.xlu0 %3005, %v2968
        %v3007 = vpop.permute.xlu0 %3006
        %3010 = vset.pattern.permute.xlu0 0
        %3011 = vperm.xlu0 %3010, %v2969
        %v3012 = vpop.permute.xlu0 %3011
        %3015 = vset.pattern.permute.xlu0 0
        %3016 = vperm.xlu0 %3015, %v2970
        %v3017 = vpop.permute.xlu0 %3016
        %3020 = vset.pattern.permute.xlu0 0
        %3021 = vperm.xlu0 %3020, %v2971
        %v3022 = vpop.permute.xlu0 %3021
        %3025 = vset.pattern.permute.xlu0 0
        %3026 = vperm.xlu0 %3025, %v2972
        %v3027 = vpop.permute.xlu0 %3026
        %3030 = vset.pattern.permute.xlu0 0
        %3031 = vperm.xlu0 %3030, %v2973
        %v3032 = vpop.permute.xlu0 %3031
        %3035 = vset.pattern.permute.xlu0 0
        %3036 = vperm.xlu0 %3035, %v2974
        %v3037 = vpop.permute.xlu0 %3036
        %3040 = vset.pattern.permute.xlu0 0
        %3041 = vperm.xlu0 %3040, %v2975
        %v3042 = vpop.permute.xlu0 %3041
        %3045 = vset.pattern.permute.xlu0 0
        %3046 = vperm.xlu0 %3045, %v2976
        %v3047 = vpop.permute.xlu0 %3046
        %3050 = vset.pattern.permute.xlu0 0
        %3051 = vperm.xlu0 %3050, %v2977
        %v3052 = vpop.permute.xlu0 %3051
        %3055 = vset.pattern.permute.xlu0 0
        %3056 = vperm.xlu0 %3055, %v2978
        %v3057 = vpop.permute.xlu0 %3056
        %v3059 = vsub.f32 %v1426, %v2982
        %v3060 = vsub.f32 %v1477, %v2987
        %v3061 = vsub.f32 %v1528, %v2992
        %v3062 = vsub.f32 %v1579, %v2997
        %v3063 = vsub.f32 %v1630, %v3002
        %v3064 = vsub.f32 %v1681, %v3007
        %v3065 = vsub.f32 %v1732, %v3012
        %v3066 = vsub.f32 %v1783, %v3017
        %v3067 = vsub.f32 %v1834, %v3022
        %v3068 = vsub.f32 %v1885, %v3027
        %v3069 = vsub.f32 %v1936, %v3032
        %v3070 = vsub.f32 %v1987, %v3037
        %v3071 = vsub.f32 %v2038, %v3042
        %v3072 = vsub.f32 %v2089, %v3047
        %v3073 = vsub.f32 %v2140, %v3052
        %v3074 = vsub.f32 %v2191, %v3057
        %v3075 = vmul.f32 %v3059, 1.442695
        %v3076 = vpow.pop %v3075
        %v3077 = vmul.f32 %v3060, 1.442695
        %v3078 = vpow.pop %v3077
        %v3079 = vmul.f32 %v3061, 1.442695
        %v3080 = vpow.pop %v3079
        %v3081 = vmul.f32 %v3062, 1.442695
        %v3082 = vpow.pop %v3081
        %v3083 = vmul.f32 %v3063, 1.442695
        %v3084 = vpow.pop %v3083
        %v3085 = vmul.f32 %v3064, 1.442695
        %v3086 = vpow.pop %v3085
        %v3087 = vmul.f32 %v3065, 1.442695
        %v3088 = vpow.pop %v3087
        %v3089 = vmul.f32 %v3066, 1.442695
        %v3090 = vpow.pop %v3089
        %v3091 = vmul.f32 %v3067, 1.442695
        %v3092 = vpow.pop %v3091
        %v3093 = vmul.f32 %v3068, 1.442695
        %v3094 = vpow.pop %v3093
        %v3095 = vmul.f32 %v3069, 1.442695
        %v3096 = vpow.pop %v3095
        %v3097 = vmul.f32 %v3070, 1.442695
        %v3098 = vpow.pop %v3097
        %v3099 = vmul.f32 %v3071, 1.442695
        %v3100 = vpow.pop %v3099
        %v3101 = vmul.f32 %v3072, 1.442695
        %v3102 = vpow.pop %v3101
        %v3103 = vmul.f32 %v3073, 1.442695
        %v3104 = vpow.pop %v3103
        %v3105 = vmul.f32 %v3074, 1.442695
        %v3106 = vpow.pop %v3105
        %v3107 = vlaneseq
        %v3108 = vshrl.u32 %v3107, 7
        %v3109 = vsub.s32 %v2576, %v3108
        %v3110 = vrot.slane %v2982, %v3109
        %v3111 = vlaneseq
        %v3112 = vshrl.u32 %v3111, 7
        %v3113 = vsub.s32 %v2576, %v3112
        %v3114 = vrot.slane %v2987, %v3113
        %v3115 = vlaneseq
        %v3116 = vshrl.u32 %v3115, 7
        %v3117 = vsub.s32 %v2576, %v3116
        %v3118 = vrot.slane %v2992, %v3117
        %v3119 = vlaneseq
        %v3120 = vshrl.u32 %v3119, 7
        %v3121 = vsub.s32 %v2576, %v3120
        %v3122 = vrot.slane %v2997, %v3121
        %v3123 = vlaneseq
        %v3124 = vshrl.u32 %v3123, 7
        %v3125 = vsub.s32 %v2576, %v3124
        %v3126 = vrot.slane %v3002, %v3125
        %v3127 = vlaneseq
        %v3128 = vshrl.u32 %v3127, 7
        %v3129 = vsub.s32 %v2576, %v3128
        %v3130 = vrot.slane %v3007, %v3129
        %v3131 = vlaneseq
        %v3132 = vshrl.u32 %v3131, 7
        %v3133 = vsub.s32 %v2576, %v3132
        %v3134 = vrot.slane %v3012, %v3133
        %v3135 = vlaneseq
        %v3136 = vshrl.u32 %v3135, 7
        %v3137 = vsub.s32 %v2576, %v3136
        %v3138 = vrot.slane %v3017, %v3137
        %v3139 = vlaneseq
        %v3140 = vshrl.u32 %v3139, 7
        %v3141 = vsub.s32 %v2576, %v3140
        %v3142 = vrot.slane %v3022, %v3141
        %v3143 = vlaneseq
        %v3144 = vshrl.u32 %v3143, 7
        %v3145 = vsub.s32 %v2576, %v3144
        %v3146 = vrot.slane %v3027, %v3145
        %v3147 = vlaneseq
        %v3148 = vshrl.u32 %v3147, 7
        %v3149 = vsub.s32 %v2576, %v3148
        %v3150 = vrot.slane %v3032, %v3149
        %v3151 = vlaneseq
        %v3152 = vshrl.u32 %v3151, 7
        %v3153 = vsub.s32 %v2576, %v3152
        %v3154 = vrot.slane %v3037, %v3153
        %v3155 = vlaneseq
        %v3156 = vshrl.u32 %v3155, 7
        %v3157 = vsub.s32 %v2576, %v3156
        %v3158 = vrot.slane %v3042, %v3157
        %v3159 = vlaneseq
        %v3160 = vshrl.u32 %v3159, 7
        %v3161 = vsub.s32 %v2576, %v3160
        %v3162 = vrot.slane %v3047, %v3161
        %v3163 = vlaneseq
        %v3164 = vshrl.u32 %v3163, 7
        %v3165 = vsub.s32 %v2576, %v3164
        %v3166 = vrot.slane %v3052, %v3165
        %v3167 = vlaneseq
        %v3168 = vshrl.u32 %v3167, 7
        %v3169 = vsub.s32 %v2576, %v3168
        %v3170 = vrot.slane %v3057, %v3169
        %v3171 = vsel %vm2786, %v3114, %v3110
        %v3172 = vsel %vm2788, %v3118, %v3171
        %v3173 = vsel %vm2790, %v3122, %v3172
        %v3174 = vsel %vm2792, %v3126, %v3173
        %v3175 = vsel %vm2794, %v3130, %v3174
        %v3176 = vsel %vm2796, %v3134, %v3175
        %v3177 = vsel %vm2798, %v3138, %v3176
        %v3178 = vsel %vm2786, %v3146, %v3142
        %v3179 = vsel %vm2788, %v3150, %v3178
        %v3180 = vsel %vm2790, %v3154, %v3179
        %v3181 = vsel %vm2792, %v3158, %v3180
        %v3182 = vsel %vm2794, %v3162, %v3181
        %v3183 = vsel %vm2796, %v3166, %v3182
        %v3184 = vsel %vm2798, %v3170, %v3183
        %3187 = vxpose.xlu0.b32.start [1/16] %v3177, 128
        %3188 = vxpose.xlu0.b32.cont [2/16] %v3184, 128
        %3189 = vxpose.xlu0.b32.cont [3/16] 0.0, 128
        %3190 = vxpose.xlu0.b32.cont [4/16] 0.0, 128
        %3191 = vxpose.xlu0.b32.cont [5/16] 0.0, 128
        %3192 = vxpose.xlu0.b32.cont [6/16] 0.0, 128
        %3193 = vxpose.xlu0.b32.cont [7/16] 0.0, 128
        %3194 = vxpose.xlu0.b32.cont [8/16] 0.0, 128
        %3195 = vxpose.xlu0.b32.cont [9/16] 0.0, 128
        %3196 = vxpose.xlu0.b32.cont [10/16] 0.0, 128
        %3197 = vxpose.xlu0.b32.cont [11/16] 0.0, 128
        %3198 = vxpose.xlu0.b32.cont [12/16] 0.0, 128
        %3199 = vxpose.xlu0.b32.cont [13/16] 0.0, 128
        %3200 = vxpose.xlu0.b32.cont [14/16] 0.0, 128
        %3201 = vxpose.xlu0.b32.cont [15/16] 0.0, 128
        %3202 = vxpose.xlu0.b32.end [16/16] 0.0, 128
        %v3203 = vpop.trf.xlu0
        %v3204 = vpop.trf.xlu0
        %v3205 = vpop.trf.xlu0
        %v3206 = vpop.trf.xlu0
        %v3207 = vpop.trf.xlu0
        %v3208 = vpop.trf.xlu0
        %v3209 = vpop.trf.xlu0
        %v3210 = vpop.trf.xlu0
        %v3211 = vpop.trf.xlu0
        %v3212 = vpop.trf.xlu0
        %v3213 = vpop.trf.xlu0
        %v3214 = vpop.trf.xlu0
        %v3215 = vpop.trf.xlu0
        %v3216 = vpop.trf.xlu0
        %v3217 = vpop.trf.xlu0
        %v3218 = vpop.trf.xlu0
        %v3219 = vlaneseq
        %v3220 = vshrl.u32 %v3219, 7
        %v3221 = vsub.s32 0, %v3220
        %v3222 = vrot.slane %v3203, %v3221
        %3224 = vbcast.lane.b32.xlu0 %v3222, 256
        %v3225 = vpop.permute.xlu0 %3224
        %s3227 = sor.u32 256, 8
        %3228 = vbcast.lane.b32.xlu0 %v3222, %s3227
        %v3229 = vpop.permute.xlu0 %3228
        %v3230 = vlaneseq
        %v3231 = vshrl.u32 %v3230, 7
        %v3232 = vsub.s32 1, %v3231
        %v3233 = vrot.slane %v3203, %v3232
        %3235 = vbcast.lane.b32.xlu0 %v3233, 256
        %v3236 = vpop.permute.xlu0 %3235
        %s3238 = sor.u32 256, 8
        %3239 = vbcast.lane.b32.xlu0 %v3233, %s3238
        %v3240 = vpop.permute.xlu0 %3239
        %v3241 = vlaneseq
        %v3242 = vshrl.u32 %v3241, 7
        %v3243 = vsub.s32 2, %v3242
        %v3244 = vrot.slane %v3203, %v3243
        %3246 = vbcast.lane.b32.xlu0 %v3244, 256
        %v3247 = vpop.permute.xlu0 %3246
        %s3249 = sor.u32 256, 8
        %3250 = vbcast.lane.b32.xlu0 %v3244, %s3249
        %v3251 = vpop.permute.xlu0 %3250
        %v3252 = vlaneseq
        %v3253 = vshrl.u32 %v3252, 7
        %v3254 = vsub.s32 3, %v3253
        %v3255 = vrot.slane %v3203, %v3254
        %3257 = vbcast.lane.b32.xlu0 %v3255, 256
        %v3258 = vpop.permute.xlu0 %3257
        %s3260 = sor.u32 256, 8
        %3261 = vbcast.lane.b32.xlu0 %v3255, %s3260
        %v3262 = vpop.permute.xlu0 %3261
        %v3263 = vlaneseq
        %v3264 = vshrl.u32 %v3263, 7
        %v3265 = vsub.s32 4, %v3264
        %v3266 = vrot.slane %v3203, %v3265
        %3268 = vbcast.lane.b32.xlu0 %v3266, 256
        %v3269 = vpop.permute.xlu0 %3268
        %s3271 = sor.u32 256, 8
        %3272 = vbcast.lane.b32.xlu0 %v3266, %s3271
        %v3273 = vpop.permute.xlu0 %3272
        %v3274 = vlaneseq
        %v3275 = vshrl.u32 %v3274, 7
        %v3276 = vsub.s32 5, %v3275
        %v3277 = vrot.slane %v3203, %v3276
        %3279 = vbcast.lane.b32.xlu0 %v3277, 256
        %v3280 = vpop.permute.xlu0 %3279
        %s3282 = sor.u32 256, 8
        %3283 = vbcast.lane.b32.xlu0 %v3277, %s3282
        %v3284 = vpop.permute.xlu0 %3283
        %v3285 = vlaneseq
        %v3286 = vshrl.u32 %v3285, 7
        %v3287 = vsub.s32 6, %v3286
        %v3288 = vrot.slane %v3203, %v3287
        %3290 = vbcast.lane.b32.xlu0 %v3288, 256
        %v3291 = vpop.permute.xlu0 %3290
        %s3293 = sor.u32 256, 8
        %3294 = vbcast.lane.b32.xlu0 %v3288, %s3293
        %v3295 = vpop.permute.xlu0 %3294
        %v3296 = vlaneseq
        %v3297 = vshrl.u32 %v3296, 7
        %v3298 = vsub.s32 7, %v3297
        %v3299 = vrot.slane %v3203, %v3298
        %3301 = vbcast.lane.b32.xlu0 %v3299, 256
        %v3302 = vpop.permute.xlu0 %3301
        %s3304 = sor.u32 256, 8
        %3305 = vbcast.lane.b32.xlu0 %v3299, %s3304
        %v3306 = vpop.permute.xlu0 %3305
        %v3307 = vsub.f32 %v2583, %v3225
        %v3308 = vsub.f32 %v2584, %v3229
        %v3309 = vsub.f32 %v2585, %v3236
        %v3310 = vsub.f32 %v2586, %v3240
        %v3311 = vsub.f32 %v2587, %v3247
        %v3312 = vsub.f32 %v2588, %v3251
        %v3313 = vsub.f32 %v2589, %v3258
        %v3314 = vsub.f32 %v2590, %v3262
        %v3315 = vsub.f32 %v2591, %v3269
        %v3316 = vsub.f32 %v2592, %v3273
        %v3317 = vsub.f32 %v2593, %v3280
        %v3318 = vsub.f32 %v2594, %v3284
        %v3319 = vsub.f32 %v2595, %v3291
        %v3320 = vsub.f32 %v2596, %v3295
        %v3321 = vsub.f32 %v2597, %v3302
        %v3322 = vsub.f32 %v2598, %v3306
        %v3323 = vmul.f32 %v3307, 1.442695
        %v3324 = vpow.pop %v3323
        %v3325 = vmul.f32 %v3308, 1.442695
        %v3326 = vpow.pop %v3325
        %v3327 = vmul.f32 %v3309, 1.442695
        %v3328 = vpow.pop %v3327
        %v3329 = vmul.f32 %v3310, 1.442695
        %v3330 = vpow.pop %v3329
        %v3331 = vmul.f32 %v3311, 1.442695
        %v3332 = vpow.pop %v3331
        %v3333 = vmul.f32 %v3312, 1.442695
        %v3334 = vpow.pop %v3333
        %v3335 = vmul.f32 %v3313, 1.442695
        %v3336 = vpow.pop %v3335
        %v3337 = vmul.f32 %v3314, 1.442695
        %v3338 = vpow.pop %v3337
        %v3339 = vmul.f32 %v3315, 1.442695
        %v3340 = vpow.pop %v3339
        %v3341 = vmul.f32 %v3316, 1.442695
        %v3342 = vpow.pop %v3341
        %v3343 = vmul.f32 %v3317, 1.442695
        %v3344 = vpow.pop %v3343
        %v3345 = vmul.f32 %v3318, 1.442695
        %v3346 = vpow.pop %v3345
        %v3347 = vmul.f32 %v3319, 1.442695
        %v3348 = vpow.pop %v3347
        %v3349 = vmul.f32 %v3320, 1.442695
        %v3350 = vpow.pop %v3349
        %v3351 = vmul.f32 %v3321, 1.442695
        %v3352 = vpow.pop %v3351
        %v3353 = vmul.f32 %v3322, 1.442695
        %v3354 = vpow.pop %v3353
        %v3355 = vsel %vm1384, %v3076, 0.0
        %3356 = vadd.xlane.f32.xlu0 %v3355
        %v3357 = vpop.xlane.xlu0 %3356
        %v3358 = vsel %vm1384, %v3078, 0.0
        %3359 = vadd.xlane.f32.xlu0 %v3358
        %v3360 = vpop.xlane.xlu0 %3359
        %v3361 = vsel %vm1384, %v3080, 0.0
        %3362 = vadd.xlane.f32.xlu0 %v3361
        %v3363 = vpop.xlane.xlu0 %3362
        %v3364 = vsel %vm1384, %v3082, 0.0
        %3365 = vadd.xlane.f32.xlu0 %v3364
        %v3366 = vpop.xlane.xlu0 %3365
        %v3367 = vsel %vm1384, %v3084, 0.0
        %3368 = vadd.xlane.f32.xlu0 %v3367
        %v3369 = vpop.xlane.xlu0 %3368
        %v3370 = vsel %vm1384, %v3086, 0.0
        %3371 = vadd.xlane.f32.xlu0 %v3370
        %v3372 = vpop.xlane.xlu0 %3371
        %v3373 = vsel %vm1384, %v3088, 0.0
        %3374 = vadd.xlane.f32.xlu0 %v3373
        %v3375 = vpop.xlane.xlu0 %3374
        %v3376 = vsel %vm1384, %v3090, 0.0
        %3377 = vadd.xlane.f32.xlu0 %v3376
        %v3378 = vpop.xlane.xlu0 %3377
        %v3379 = vsel %vm1384, %v3092, 0.0
        %3380 = vadd.xlane.f32.xlu0 %v3379
        %v3381 = vpop.xlane.xlu0 %3380
        %v3382 = vsel %vm1384, %v3094, 0.0
        %3383 = vadd.xlane.f32.xlu0 %v3382
        %v3384 = vpop.xlane.xlu0 %3383
        %v3385 = vsel %vm1384, %v3096, 0.0
        %3386 = vadd.xlane.f32.xlu0 %v3385
        %v3387 = vpop.xlane.xlu0 %3386
        %v3388 = vsel %vm1384, %v3098, 0.0
        %3389 = vadd.xlane.f32.xlu0 %v3388
        %v3390 = vpop.xlane.xlu0 %3389
        %v3391 = vsel %vm1384, %v3100, 0.0
        %3392 = vadd.xlane.f32.xlu0 %v3391
        %v3393 = vpop.xlane.xlu0 %3392
        %v3394 = vsel %vm1384, %v3102, 0.0
        %3395 = vadd.xlane.f32.xlu0 %v3394
        %v3396 = vpop.xlane.xlu0 %3395
        %v3397 = vsel %vm1384, %v3104, 0.0
        %3398 = vadd.xlane.f32.xlu0 %v3397
        %v3399 = vpop.xlane.xlu0 %3398
        %v3400 = vsel %vm1384, %v3106, 0.0
        %3401 = vadd.xlane.f32.xlu0 %v3400
        %v3402 = vpop.xlane.xlu0 %3401
        %v3403 = vsel %vm2647, %v3324, 0.0
        %3404 = vadd.xlane.f32.xlu0 %v3403
        %v3405 = vpop.xlane.xlu0 %3404
        %v3406 = vsel %vm2647, %v3326, 0.0
        %3407 = vadd.xlane.f32.xlu0 %v3406
        %v3408 = vpop.xlane.xlu0 %3407
        %v3409 = vsel %vm2647, %v3328, 0.0
        %3410 = vadd.xlane.f32.xlu0 %v3409
        %v3411 = vpop.xlane.xlu0 %3410
        %v3412 = vsel %vm2647, %v3330, 0.0
        %3413 = vadd.xlane.f32.xlu0 %v3412
        %v3414 = vpop.xlane.xlu0 %3413
        %v3415 = vsel %vm2647, %v3332, 0.0
        %3416 = vadd.xlane.f32.xlu0 %v3415
        %v3417 = vpop.xlane.xlu0 %3416
        %v3418 = vsel %vm2647, %v3334, 0.0
        %3419 = vadd.xlane.f32.xlu0 %v3418
        %v3420 = vpop.xlane.xlu0 %3419
        %v3421 = vsel %vm2647, %v3336, 0.0
        %3422 = vadd.xlane.f32.xlu0 %v3421
        %v3423 = vpop.xlane.xlu0 %3422
        %v3424 = vsel %vm2647, %v3338, 0.0
        %3425 = vadd.xlane.f32.xlu0 %v3424
        %v3426 = vpop.xlane.xlu0 %3425
        %v3427 = vsel %vm2647, %v3340, 0.0
        %3428 = vadd.xlane.f32.xlu0 %v3427
        %v3429 = vpop.xlane.xlu0 %3428
        %v3430 = vsel %vm2647, %v3342, 0.0
        %3431 = vadd.xlane.f32.xlu0 %v3430
        %v3432 = vpop.xlane.xlu0 %3431
        %v3433 = vsel %vm2647, %v3344, 0.0
        %3434 = vadd.xlane.f32.xlu0 %v3433
        %v3435 = vpop.xlane.xlu0 %3434
        %v3436 = vsel %vm2647, %v3346, 0.0
        %3437 = vadd.xlane.f32.xlu0 %v3436
        %v3438 = vpop.xlane.xlu0 %3437
        %v3439 = vsel %vm2647, %v3348, 0.0
        %3440 = vadd.xlane.f32.xlu0 %v3439
        %v3441 = vpop.xlane.xlu0 %3440
        %v3442 = vsel %vm2647, %v3350, 0.0
        %3443 = vadd.xlane.f32.xlu0 %v3442
        %v3444 = vpop.xlane.xlu0 %3443
        %v3445 = vsel %vm2647, %v3352, 0.0
        %3446 = vadd.xlane.f32.xlu0 %v3445
        %v3447 = vpop.xlane.xlu0 %3446
        %v3448 = vsel %vm2647, %v3354, 0.0
        %3449 = vadd.xlane.f32.xlu0 %v3448
        %v3450 = vpop.xlane.xlu0 %3449
        %v3467 = vlaneseq
        %v3468 = vshrl.u32 %v3467, 7
        %v3469 = vsub.s32 %v2576, %v3468
        %v3470 = vrot.slane %v3405, %v3469
        %v3471 = vlaneseq
        %v3472 = vshrl.u32 %v3471, 7
        %v3473 = vsub.s32 %v2716, %v3472
        %v3474 = vrot.slane %v3408, %v3473
        %v3475 = vsel %vm2721, %v3474, %v3470
        %v3476 = vlaneseq
        %v3477 = vshrl.u32 %v3476, 7
        %v3478 = vsub.s32 %v2576, %v3477
        %v3479 = vrot.slane %v3411, %v3478
        %v3480 = vlaneseq
        %v3481 = vshrl.u32 %v3480, 7
        %v3482 = vsub.s32 %v2716, %v3481
        %v3483 = vrot.slane %v3414, %v3482
        %v3484 = vsel %vm2721, %v3483, %v3479
        %v3485 = vlaneseq
        %v3486 = vshrl.u32 %v3485, 7
        %v3487 = vsub.s32 %v2576, %v3486
        %v3488 = vrot.slane %v3417, %v3487
        %v3489 = vlaneseq
        %v3490 = vshrl.u32 %v3489, 7
        %v3491 = vsub.s32 %v2716, %v3490
        %v3492 = vrot.slane %v3420, %v3491
        %v3493 = vsel %vm2721, %v3492, %v3488
        %v3494 = vlaneseq
        %v3495 = vshrl.u32 %v3494, 7
        %v3496 = vsub.s32 %v2576, %v3495
        %v3497 = vrot.slane %v3423, %v3496
        %v3498 = vlaneseq
        %v3499 = vshrl.u32 %v3498, 7
        %v3500 = vsub.s32 %v2716, %v3499
        %v3501 = vrot.slane %v3426, %v3500
        %v3502 = vsel %vm2721, %v3501, %v3497
        %v3503 = vlaneseq
        %v3504 = vshrl.u32 %v3503, 7
        %v3505 = vsub.s32 %v2576, %v3504
        %v3506 = vrot.slane %v3429, %v3505
        %v3507 = vlaneseq
        %v3508 = vshrl.u32 %v3507, 7
        %v3509 = vsub.s32 %v2716, %v3508
        %v3510 = vrot.slane %v3432, %v3509
        %v3511 = vsel %vm2721, %v3510, %v3506
        %v3512 = vlaneseq
        %v3513 = vshrl.u32 %v3512, 7
        %v3514 = vsub.s32 %v2576, %v3513
        %v3515 = vrot.slane %v3435, %v3514
        %v3516 = vlaneseq
        %v3517 = vshrl.u32 %v3516, 7
        %v3518 = vsub.s32 %v2716, %v3517
        %v3519 = vrot.slane %v3438, %v3518
        %v3520 = vsel %vm2721, %v3519, %v3515
        %v3521 = vlaneseq
        %v3522 = vshrl.u32 %v3521, 7
        %v3523 = vsub.s32 %v2576, %v3522
        %v3524 = vrot.slane %v3441, %v3523
        %v3525 = vlaneseq
        %v3526 = vshrl.u32 %v3525, 7
        %v3527 = vsub.s32 %v2716, %v3526
        %v3528 = vrot.slane %v3444, %v3527
        %v3529 = vsel %vm2721, %v3528, %v3524
        %v3530 = vlaneseq
        %v3531 = vshrl.u32 %v3530, 7
        %v3532 = vsub.s32 %v2576, %v3531
        %v3533 = vrot.slane %v3447, %v3532
        %v3534 = vlaneseq
        %v3535 = vshrl.u32 %v3534, 7
        %v3536 = vsub.s32 %v2716, %v3535
        %v3537 = vrot.slane %v3450, %v3536
        %v3538 = vsel %vm2721, %v3537, %v3533
        %v3539 = vsel %vm2786, %v3484, %v3475
        %v3540 = vsel %vm2788, %v3493, %v3539
        %v3541 = vsel %vm2790, %v3502, %v3540
        %v3542 = vsel %vm2792, %v3511, %v3541
        %v3543 = vsel %vm2794, %v3520, %v3542
        %v3544 = vsel %vm2796, %v3529, %v3543
        %v3545 = vsel %vm2798, %v3538, %v3544
        %3547 = vxpose.xlu0.b32.start [1/16] %v3545, 128
        %3548 = vxpose.xlu0.b32.cont [2/16] 0.0, 128
        %3549 = vxpose.xlu0.b32.cont [3/16] 0.0, 128
        %3550 = vxpose.xlu0.b32.cont [4/16] 0.0, 128
        %3551 = vxpose.xlu0.b32.cont [5/16] 0.0, 128
        %3552 = vxpose.xlu0.b32.cont [6/16] 0.0, 128
        %3553 = vxpose.xlu0.b32.cont [7/16] 0.0, 128
        %3554 = vxpose.xlu0.b32.cont [8/16] 0.0, 128
        %3555 = vxpose.xlu0.b32.cont [9/16] 0.0, 128
        %3556 = vxpose.xlu0.b32.cont [10/16] 0.0, 128
        %3557 = vxpose.xlu0.b32.cont [11/16] 0.0, 128
        %3558 = vxpose.xlu0.b32.cont [12/16] 0.0, 128
        %3559 = vxpose.xlu0.b32.cont [13/16] 0.0, 128
        %3560 = vxpose.xlu0.b32.cont [14/16] 0.0, 128
        %3561 = vxpose.xlu0.b32.cont [15/16] 0.0, 128
        %3562 = vxpose.xlu0.b32.end [16/16] 0.0, 128
        %v3563 = vpop.trf.xlu0
        %v3564 = vpop.trf.xlu0
        %v3565 = vpop.trf.xlu0
        %v3566 = vpop.trf.xlu0
        %v3567 = vpop.trf.xlu0
        %v3568 = vpop.trf.xlu0
        %v3569 = vpop.trf.xlu0
        %v3570 = vpop.trf.xlu0
        %v3571 = vpop.trf.xlu0
        %v3572 = vpop.trf.xlu0
        %v3573 = vpop.trf.xlu0
        %v3574 = vpop.trf.xlu0
        %v3575 = vpop.trf.xlu0
        %v3576 = vpop.trf.xlu0
        %v3577 = vpop.trf.xlu0
        %v3578 = vpop.trf.xlu0
        %v3581 = vlaneseq
        %v3582 = vshrl.u32 %v3581, 7
        %v3583 = vsub.s32 0, %v3582
        %v3584 = vrot.slane %v3563, %v3583
        %3586 = vbcast.lane.b32.xlu0 %v3584, 256
        %v3587 = vpop.permute.xlu0 %3586
        %v3588 = vlaneseq
        %v3589 = vshrl.u32 %v3588, 7
        %v3590 = vsub.s32 1, %v3589
        %v3591 = vrot.slane %v3563, %v3590
        %3593 = vbcast.lane.b32.xlu0 %v3591, 256
        %v3594 = vpop.permute.xlu0 %3593
        %v3595 = vlaneseq
        %v3596 = vshrl.u32 %v3595, 7
        %v3597 = vsub.s32 2, %v3596
        %v3598 = vrot.slane %v3563, %v3597
        %3600 = vbcast.lane.b32.xlu0 %v3598, 256
        %v3601 = vpop.permute.xlu0 %3600
        %v3602 = vlaneseq
        %v3603 = vshrl.u32 %v3602, 7
        %v3604 = vsub.s32 3, %v3603
        %v3605 = vrot.slane %v3563, %v3604
        %3607 = vbcast.lane.b32.xlu0 %v3605, 256
        %v3608 = vpop.permute.xlu0 %3607
        %v3609 = vlaneseq
        %v3610 = vshrl.u32 %v3609, 7
        %v3611 = vsub.s32 4, %v3610
        %v3612 = vrot.slane %v3563, %v3611
        %3614 = vbcast.lane.b32.xlu0 %v3612, 256
        %v3615 = vpop.permute.xlu0 %3614
        %v3616 = vlaneseq
        %v3617 = vshrl.u32 %v3616, 7
        %v3618 = vsub.s32 5, %v3617
        %v3619 = vrot.slane %v3563, %v3618
        %3621 = vbcast.lane.b32.xlu0 %v3619, 256
        %v3622 = vpop.permute.xlu0 %3621
        %v3623 = vlaneseq
        %v3624 = vshrl.u32 %v3623, 7
        %v3625 = vsub.s32 6, %v3624
        %v3626 = vrot.slane %v3563, %v3625
        %3628 = vbcast.lane.b32.xlu0 %v3626, 256
        %v3629 = vpop.permute.xlu0 %3628
        %v3630 = vlaneseq
        %v3631 = vshrl.u32 %v3630, 7
        %v3632 = vsub.s32 7, %v3631
        %v3633 = vrot.slane %v3563, %v3632
        %3635 = vbcast.lane.b32.xlu0 %v3633, 256
        %v3636 = vpop.permute.xlu0 %3635
        %v3637 = vlaneseq
        %v3638 = vshrl.u32 %v3637, 7
        %v3639 = vsub.s32 0, %v3638
        %v3640 = vrot.slane %v3564, %v3639
        %3642 = vbcast.lane.b32.xlu0 %v3640, 256
        %v3643 = vpop.permute.xlu0 %3642
        %v3644 = vlaneseq
        %v3645 = vshrl.u32 %v3644, 7
        %v3646 = vsub.s32 1, %v3645
        %v3647 = vrot.slane %v3564, %v3646
        %3649 = vbcast.lane.b32.xlu0 %v3647, 256
        %v3650 = vpop.permute.xlu0 %3649
        %v3651 = vlaneseq
        %v3652 = vshrl.u32 %v3651, 7
        %v3653 = vsub.s32 2, %v3652
        %v3654 = vrot.slane %v3564, %v3653
        %3656 = vbcast.lane.b32.xlu0 %v3654, 256
        %v3657 = vpop.permute.xlu0 %3656
        %v3658 = vlaneseq
        %v3659 = vshrl.u32 %v3658, 7
        %v3660 = vsub.s32 3, %v3659
        %v3661 = vrot.slane %v3564, %v3660
        %3663 = vbcast.lane.b32.xlu0 %v3661, 256
        %v3664 = vpop.permute.xlu0 %3663
        %v3665 = vlaneseq
        %v3666 = vshrl.u32 %v3665, 7
        %v3667 = vsub.s32 4, %v3666
        %v3668 = vrot.slane %v3564, %v3667
        %3670 = vbcast.lane.b32.xlu0 %v3668, 256
        %v3671 = vpop.permute.xlu0 %3670
        %v3672 = vlaneseq
        %v3673 = vshrl.u32 %v3672, 7
        %v3674 = vsub.s32 5, %v3673
        %v3675 = vrot.slane %v3564, %v3674
        %3677 = vbcast.lane.b32.xlu0 %v3675, 256
        %v3678 = vpop.permute.xlu0 %3677
        %v3679 = vlaneseq
        %v3680 = vshrl.u32 %v3679, 7
        %v3681 = vsub.s32 6, %v3680
        %v3682 = vrot.slane %v3564, %v3681
        %3684 = vbcast.lane.b32.xlu0 %v3682, 256
        %v3685 = vpop.permute.xlu0 %3684
        %v3686 = vlaneseq
        %v3687 = vshrl.u32 %v3686, 7
        %v3688 = vsub.s32 7, %v3687
        %v3689 = vrot.slane %v3564, %v3688
        %3691 = vbcast.lane.b32.xlu0 %v3689, 256
        %v3692 = vpop.permute.xlu0 %3691
        %v3709 = vadd.f32 %v3357, %v3587
        %v3710 = vadd.f32 %v3360, %v3594
        %v3711 = vadd.f32 %v3363, %v3601
        %v3712 = vadd.f32 %v3366, %v3608
        %v3713 = vadd.f32 %v3369, %v3615
        %v3714 = vadd.f32 %v3372, %v3622
        %v3715 = vadd.f32 %v3375, %v3629
        %v3716 = vadd.f32 %v3378, %v3636
        %v3717 = vadd.f32 %v3381, %v3643
        %v3718 = vadd.f32 %v3384, %v3650
        %v3719 = vadd.f32 %v3387, %v3657
        %v3720 = vadd.f32 %v3390, %v3664
        %v3721 = vadd.f32 %v3393, %v3671
        %v3722 = vadd.f32 %v3396, %v3678
        %v3723 = vadd.f32 %v3399, %v3685
        %v3724 = vadd.f32 %v3402, %v3692
        %v3725 = vrcp.pop %v3709
        %v3726 = vrcp.pop %v3710
        %v3727 = vrcp.pop %v3711
        %v3728 = vrcp.pop %v3712
        %v3729 = vrcp.pop %v3713
        %v3730 = vrcp.pop %v3714
        %v3731 = vrcp.pop %v3715
        %v3732 = vrcp.pop %v3716
        %v3733 = vrcp.pop %v3717
        %v3734 = vrcp.pop %v3718
        %v3735 = vrcp.pop %v3719
        %v3736 = vrcp.pop %v3720
        %v3737 = vrcp.pop %v3721
        %v3738 = vrcp.pop %v3722
        %v3739 = vrcp.pop %v3723
        %v3740 = vrcp.pop %v3724
        %v3741 = vpack.c.bf16 %v3076, %v3076
        %v3742 = vpack.c.bf16 %v3078, %v3078
        %v3743 = vpack.c.bf16 %v3080, %v3080
        %v3744 = vpack.c.bf16 %v3082, %v3082
        %v3745 = vpack.c.bf16 %v3084, %v3084
        %v3746 = vpack.c.bf16 %v3086, %v3086
        %v3747 = vpack.c.bf16 %v3088, %v3088
        %v3748 = vpack.c.bf16 %v3090, %v3090
        %v3749 = vpack.c.bf16 %v3092, %v3092
        %v3750 = vpack.c.bf16 %v3094, %v3094
        %v3751 = vpack.c.bf16 %v3096, %v3096
        %v3752 = vpack.c.bf16 %v3098, %v3098
        %v3753 = vpack.c.bf16 %v3100, %v3100
        %v3754 = vpack.c.bf16 %v3102, %v3102
        %v3755 = vpack.c.bf16 %v3104, %v3104
        %v3756 = vpack.c.bf16 %v3106, %v3106
        %v3757 = vpack.c.bf16 %v3326, %v3324
        %v3758 = vpack.c.bf16 %v3330, %v3328
        %v3759 = vpack.c.bf16 %v3334, %v3332
        %v3760 = vpack.c.bf16 %v3338, %v3336
        %v3761 = vpack.c.bf16 %v3342, %v3340
        %v3762 = vpack.c.bf16 %v3346, %v3344
        %v3763 = vpack.c.bf16 %v3350, %v3348
        %v3764 = vpack.c.bf16 %v3354, %v3352
        %v3765 = vpack.c.bf16 %v1339, %v1203
        %v3766 = vpack.c.bf16 %v1340, %v1204
        %v3767 = vpack.c.bf16 %v1341, %v1205
        %v3768 = vpack.c.bf16 %v1342, %v1206
        %v3769 = vpack.c.bf16 %v1343, %v1207
        %v3770 = vpack.c.bf16 %v1344, %v1208
        %v3771 = vpack.c.bf16 %v1345, %v1209
        %v3772 = vpack.c.bf16 %v1346, %v1210
        %v3774 = vsel %vm2647, %v3757, 0
        %3776 = vmatprep.subr.bf16.mxu0 0
        %3777 = vmatpush1.bf16.msra.mxu0 0
        %3778 = vmatprep.subr.bf16.mxu0 0
        %3779 = vmatpush1.bf16.msra.mxu0 0
        %3780 = vmatprep.subr.bf16.mxu0 0
        %3781 = vmatpush1.bf16.msra.mxu0 0
        %3782 = vmatprep.subr.bf16.mxu0 0
        %3783 = vmatpush1.bf16.msra.mxu0 0
        %3784 = vmatprep.subr.bf16.mxu0 0
        %3785 = vmatpush1.bf16.msra.mxu0 0
        %3786 = vmatprep.subr.bf16.mxu0 0
        %3787 = vmatpush1.bf16.msra.mxu0 0
        %3788 = vmatprep.subr.bf16.mxu0 0
        %3789 = vmatpush1.bf16.msra.mxu0 0
        %3790 = vmatprep.subr.bf16.mxu0 0
        %3791 = vmatpush1.bf16.msra.mxu0 %v3765
        %3792 = vmatprep.subr.bf16.mxu0 0
        %3793 = vmatpush2.bf16.msra.mxu0 0
        %3794 = vmatprep.subr.bf16.mxu0 0
        %3795 = vmatpush2.bf16.msra.mxu0 0
        %3796 = vmatprep.subr.bf16.mxu0 0
        %3797 = vmatpush2.bf16.msra.mxu0 0
        %3798 = vmatprep.subr.bf16.mxu0 0
        %3799 = vmatpush2.bf16.msra.mxu0 0
        %3800 = vmatprep.subr.bf16.mxu0 0
        %3801 = vmatpush2.bf16.msra.mxu0 0
        %3802 = vmatprep.subr.bf16.mxu0 0
        %3803 = vmatpush2.bf16.msra.mxu0 0
        %3804 = vmatprep.subr.bf16.mxu0 0
        %3805 = vmatpush2.bf16.msra.mxu0 0
        %3806 = vmatprep.subr.bf16.mxu0 0
        %3807 = vmatpush2.bf16.msra.mxu0 0
        %3808 = vmatprep.mubr.bf16.mxu0 0
        %3809 = vmatmul.mubr.bf16.gmra.mxu0 %v3774
        %v3810 = vpop.f32.mrf.mxu0
        %v3811 = vadd.f32 0.0, %v3810
        %v3812 = vpop.f32.mrf.mxu0
        %v3813 = vpop.f32.mrf.mxu0
        %v3814 = vadd.f32 0.0, %v3813
        %v3815 = vpop.f32.mrf.mxu0
        %3816 = vdwg.mxu0
        %v3818 = vsel %vm2647, %v3758, 0
        %3820 = vmatprep.subr.bf16.mxu0 0
        %3821 = vmatpush1.bf16.msra.mxu0 0
        %3822 = vmatprep.subr.bf16.mxu0 0
        %3823 = vmatpush1.bf16.msra.mxu0 0
        %3824 = vmatprep.subr.bf16.mxu0 0
        %3825 = vmatpush1.bf16.msra.mxu0 0
        %3826 = vmatprep.subr.bf16.mxu0 0
        %3827 = vmatpush1.bf16.msra.mxu0 0
        %3828 = vmatprep.subr.bf16.mxu0 0
        %3829 = vmatpush1.bf16.msra.mxu0 0
        %3830 = vmatprep.subr.bf16.mxu0 0
        %3831 = vmatpush1.bf16.msra.mxu0 0
        %3832 = vmatprep.subr.bf16.mxu0 0
        %3833 = vmatpush1.bf16.msra.mxu0 0
        %3834 = vmatprep.subr.bf16.mxu0 0
        %3835 = vmatpush1.bf16.msra.mxu0 %v3766
        %3836 = vmatprep.subr.bf16.mxu0 0
        %3837 = vmatpush2.bf16.msra.mxu0 0
        %3838 = vmatprep.subr.bf16.mxu0 0
        %3839 = vmatpush2.bf16.msra.mxu0 0
        %3840 = vmatprep.subr.bf16.mxu0 0
        %3841 = vmatpush2.bf16.msra.mxu0 0
        %3842 = vmatprep.subr.bf16.mxu0 0
        %3843 = vmatpush2.bf16.msra.mxu0 0
        %3844 = vmatprep.subr.bf16.mxu0 0
        %3845 = vmatpush2.bf16.msra.mxu0 0
        %3846 = vmatprep.subr.bf16.mxu0 0
        %3847 = vmatpush2.bf16.msra.mxu0 0
        %3848 = vmatprep.subr.bf16.mxu0 0
        %3849 = vmatpush2.bf16.msra.mxu0 0
        %3850 = vmatprep.subr.bf16.mxu0 0
        %3851 = vmatpush2.bf16.msra.mxu0 0
        %3852 = vmatprep.mubr.bf16.mxu0 0
        %3853 = vmatmul.mubr.bf16.gmra.mxu0 %v3818
        %v3854 = vpop.f32.mrf.mxu0
        %v3855 = vadd.f32 0.0, %v3854
        %v3856 = vpop.f32.mrf.mxu0
        %v3857 = vpop.f32.mrf.mxu0
        %v3858 = vadd.f32 0.0, %v3857
        %v3859 = vpop.f32.mrf.mxu0
        %3860 = vdwg.mxu0
        %v3862 = vsel %vm2647, %v3759, 0
        %3864 = vmatprep.subr.bf16.mxu0 0
        %3865 = vmatpush1.bf16.msra.mxu0 0
        %3866 = vmatprep.subr.bf16.mxu0 0
        %3867 = vmatpush1.bf16.msra.mxu0 0
        %3868 = vmatprep.subr.bf16.mxu0 0
        %3869 = vmatpush1.bf16.msra.mxu0 0
        %3870 = vmatprep.subr.bf16.mxu0 0
        %3871 = vmatpush1.bf16.msra.mxu0 0
        %3872 = vmatprep.subr.bf16.mxu0 0
        %3873 = vmatpush1.bf16.msra.mxu0 0
        %3874 = vmatprep.subr.bf16.mxu0 0
        %3875 = vmatpush1.bf16.msra.mxu0 0
        %3876 = vmatprep.subr.bf16.mxu0 0
        %3877 = vmatpush1.bf16.msra.mxu0 0
        %3878 = vmatprep.subr.bf16.mxu0 0
        %3879 = vmatpush1.bf16.msra.mxu0 %v3767
        %3880 = vmatprep.subr.bf16.mxu0 0
        %3881 = vmatpush2.bf16.msra.mxu0 0
        %3882 = vmatprep.subr.bf16.mxu0 0
        %3883 = vmatpush2.bf16.msra.mxu0 0
        %3884 = vmatprep.subr.bf16.mxu0 0
        %3885 = vmatpush2.bf16.msra.mxu0 0
        %3886 = vmatprep.subr.bf16.mxu0 0
        %3887 = vmatpush2.bf16.msra.mxu0 0
        %3888 = vmatprep.subr.bf16.mxu0 0
        %3889 = vmatpush2.bf16.msra.mxu0 0
        %3890 = vmatprep.subr.bf16.mxu0 0
        %3891 = vmatpush2.bf16.msra.mxu0 0
        %3892 = vmatprep.subr.bf16.mxu0 0
        %3893 = vmatpush2.bf16.msra.mxu0 0
        %3894 = vmatprep.subr.bf16.mxu0 0
        %3895 = vmatpush2.bf16.msra.mxu0 0
        %3896 = vmatprep.mubr.bf16.mxu0 0
        %3897 = vmatmul.mubr.bf16.gmra.mxu0 %v3862
        %v3898 = vpop.f32.mrf.mxu0
        %v3899 = vadd.f32 0.0, %v3898
        %v3900 = vpop.f32.mrf.mxu0
        %v3901 = vpop.f32.mrf.mxu0
        %v3902 = vadd.f32 0.0, %v3901
        %v3903 = vpop.f32.mrf.mxu0
        %3904 = vdwg.mxu0
        %v3906 = vsel %vm2647, %v3760, 0
        %3908 = vmatprep.subr.bf16.mxu0 0
        %3909 = vmatpush1.bf16.msra.mxu0 0
        %3910 = vmatprep.subr.bf16.mxu0 0
        %3911 = vmatpush1.bf16.msra.mxu0 0
        %3912 = vmatprep.subr.bf16.mxu0 0
        %3913 = vmatpush1.bf16.msra.mxu0 0
        %3914 = vmatprep.subr.bf16.mxu0 0
        %3915 = vmatpush1.bf16.msra.mxu0 0
        %3916 = vmatprep.subr.bf16.mxu0 0
        %3917 = vmatpush1.bf16.msra.mxu0 0
        %3918 = vmatprep.subr.bf16.mxu0 0
        %3919 = vmatpush1.bf16.msra.mxu0 0
        %3920 = vmatprep.subr.bf16.mxu0 0
        %3921 = vmatpush1.bf16.msra.mxu0 0
        %3922 = vmatprep.subr.bf16.mxu0 0
        %3923 = vmatpush1.bf16.msra.mxu0 %v3768
        %3924 = vmatprep.subr.bf16.mxu0 0
        %3925 = vmatpush2.bf16.msra.mxu0 0
        %3926 = vmatprep.subr.bf16.mxu0 0
        %3927 = vmatpush2.bf16.msra.mxu0 0
        %3928 = vmatprep.subr.bf16.mxu0 0
        %3929 = vmatpush2.bf16.msra.mxu0 0
        %3930 = vmatprep.subr.bf16.mxu0 0
        %3931 = vmatpush2.bf16.msra.mxu0 0
        %3932 = vmatprep.subr.bf16.mxu0 0
        %3933 = vmatpush2.bf16.msra.mxu0 0
        %3934 = vmatprep.subr.bf16.mxu0 0
        %3935 = vmatpush2.bf16.msra.mxu0 0
        %3936 = vmatprep.subr.bf16.mxu0 0
        %3937 = vmatpush2.bf16.msra.mxu0 0
        %3938 = vmatprep.subr.bf16.mxu0 0
        %3939 = vmatpush2.bf16.msra.mxu0 0
        %3940 = vmatprep.mubr.bf16.mxu0 0
        %3941 = vmatmul.mubr.bf16.gmra.mxu0 %v3906
        %v3942 = vpop.f32.mrf.mxu0
        %v3943 = vadd.f32 0.0, %v3942
        %v3944 = vpop.f32.mrf.mxu0
        %v3945 = vpop.f32.mrf.mxu0
        %v3946 = vadd.f32 0.0, %v3945
        %v3947 = vpop.f32.mrf.mxu0
        %3948 = vdwg.mxu0
        %v3950 = vsel %vm2647, %v3761, 0
        %3952 = vmatprep.subr.bf16.mxu0 0
        %3953 = vmatpush1.bf16.msra.mxu0 0
        %3954 = vmatprep.subr.bf16.mxu0 0
        %3955 = vmatpush1.bf16.msra.mxu0 0
        %3956 = vmatprep.subr.bf16.mxu0 0
        %3957 = vmatpush1.bf16.msra.mxu0 0
        %3958 = vmatprep.subr.bf16.mxu0 0
        %3959 = vmatpush1.bf16.msra.mxu0 0
        %3960 = vmatprep.subr.bf16.mxu0 0
        %3961 = vmatpush1.bf16.msra.mxu0 0
        %3962 = vmatprep.subr.bf16.mxu0 0
        %3963 = vmatpush1.bf16.msra.mxu0 0
        %3964 = vmatprep.subr.bf16.mxu0 0
        %3965 = vmatpush1.bf16.msra.mxu0 0
        %3966 = vmatprep.subr.bf16.mxu0 0
        %3967 = vmatpush1.bf16.msra.mxu0 %v3769
        %3968 = vmatprep.subr.bf16.mxu0 0
        %3969 = vmatpush2.bf16.msra.mxu0 0
        %3970 = vmatprep.subr.bf16.mxu0 0
        %3971 = vmatpush2.bf16.msra.mxu0 0
        %3972 = vmatprep.subr.bf16.mxu0 0
        %3973 = vmatpush2.bf16.msra.mxu0 0
        %3974 = vmatprep.subr.bf16.mxu0 0
        %3975 = vmatpush2.bf16.msra.mxu0 0
        %3976 = vmatprep.subr.bf16.mxu0 0
        %3977 = vmatpush2.bf16.msra.mxu0 0
        %3978 = vmatprep.subr.bf16.mxu0 0
        %3979 = vmatpush2.bf16.msra.mxu0 0
        %3980 = vmatprep.subr.bf16.mxu0 0
        %3981 = vmatpush2.bf16.msra.mxu0 0
        %3982 = vmatprep.subr.bf16.mxu0 0
        %3983 = vmatpush2.bf16.msra.mxu0 0
        %3984 = vmatprep.mubr.bf16.mxu0 0
        %3985 = vmatmul.mubr.bf16.gmra.mxu0 %v3950
        %v3986 = vpop.f32.mrf.mxu0
        %v3987 = vadd.f32 0.0, %v3986
        %v3988 = vpop.f32.mrf.mxu0
        %v3989 = vpop.f32.mrf.mxu0
        %v3990 = vadd.f32 0.0, %v3989
        %v3991 = vpop.f32.mrf.mxu0
        %3992 = vdwg.mxu0
        %v3994 = vsel %vm2647, %v3762, 0
        %3996 = vmatprep.subr.bf16.mxu0 0
        %3997 = vmatpush1.bf16.msra.mxu0 0
        %3998 = vmatprep.subr.bf16.mxu0 0
        %3999 = vmatpush1.bf16.msra.mxu0 0
        %4000 = vmatprep.subr.bf16.mxu0 0
        %4001 = vmatpush1.bf16.msra.mxu0 0
        %4002 = vmatprep.subr.bf16.mxu0 0
        %4003 = vmatpush1.bf16.msra.mxu0 0
        %4004 = vmatprep.subr.bf16.mxu0 0
        %4005 = vmatpush1.bf16.msra.mxu0 0
        %4006 = vmatprep.subr.bf16.mxu0 0
        %4007 = vmatpush1.bf16.msra.mxu0 0
        %4008 = vmatprep.subr.bf16.mxu0 0
        %4009 = vmatpush1.bf16.msra.mxu0 0
        %4010 = vmatprep.subr.bf16.mxu0 0
        %4011 = vmatpush1.bf16.msra.mxu0 %v3770
        %4012 = vmatprep.subr.bf16.mxu0 0
        %4013 = vmatpush2.bf16.msra.mxu0 0
        %4014 = vmatprep.subr.bf16.mxu0 0
        %4015 = vmatpush2.bf16.msra.mxu0 0
        %4016 = vmatprep.subr.bf16.mxu0 0
        %4017 = vmatpush2.bf16.msra.mxu0 0
        %4018 = vmatprep.subr.bf16.mxu0 0
        %4019 = vmatpush2.bf16.msra.mxu0 0
        %4020 = vmatprep.subr.bf16.mxu0 0
        %4021 = vmatpush2.bf16.msra.mxu0 0
        %4022 = vmatprep.subr.bf16.mxu0 0
        %4023 = vmatpush2.bf16.msra.mxu0 0
        %4024 = vmatprep.subr.bf16.mxu0 0
        %4025 = vmatpush2.bf16.msra.mxu0 0
        %4026 = vmatprep.subr.bf16.mxu0 0
        %4027 = vmatpush2.bf16.msra.mxu0 0
        %4028 = vmatprep.mubr.bf16.mxu0 0
        %4029 = vmatmul.mubr.bf16.gmra.mxu0 %v3994
        %v4030 = vpop.f32.mrf.mxu0
        %v4031 = vadd.f32 0.0, %v4030
        %v4032 = vpop.f32.mrf.mxu0
        %v4033 = vpop.f32.mrf.mxu0
        %v4034 = vadd.f32 0.0, %v4033
        %v4035 = vpop.f32.mrf.mxu0
        %4036 = vdwg.mxu0
        %v4038 = vsel %vm2647, %v3763, 0
        %4040 = vmatprep.subr.bf16.mxu0 0
        %4041 = vmatpush1.bf16.msra.mxu0 0
        %4042 = vmatprep.subr.bf16.mxu0 0
        %4043 = vmatpush1.bf16.msra.mxu0 0
        %4044 = vmatprep.subr.bf16.mxu0 0
        %4045 = vmatpush1.bf16.msra.mxu0 0
        %4046 = vmatprep.subr.bf16.mxu0 0
        %4047 = vmatpush1.bf16.msra.mxu0 0
        %4048 = vmatprep.subr.bf16.mxu0 0
        %4049 = vmatpush1.bf16.msra.mxu0 0
        %4050 = vmatprep.subr.bf16.mxu0 0
        %4051 = vmatpush1.bf16.msra.mxu0 0
        %4052 = vmatprep.subr.bf16.mxu0 0
        %4053 = vmatpush1.bf16.msra.mxu0 0
        %4054 = vmatprep.subr.bf16.mxu0 0
        %4055 = vmatpush1.bf16.msra.mxu0 %v3771
        %4056 = vmatprep.subr.bf16.mxu0 0
        %4057 = vmatpush2.bf16.msra.mxu0 0
        %4058 = vmatprep.subr.bf16.mxu0 0
        %4059 = vmatpush2.bf16.msra.mxu0 0
        %4060 = vmatprep.subr.bf16.mxu0 0
        %4061 = vmatpush2.bf16.msra.mxu0 0
        %4062 = vmatprep.subr.bf16.mxu0 0
        %4063 = vmatpush2.bf16.msra.mxu0 0
        %4064 = vmatprep.subr.bf16.mxu0 0
        %4065 = vmatpush2.bf16.msra.mxu0 0
        %4066 = vmatprep.subr.bf16.mxu0 0
        %4067 = vmatpush2.bf16.msra.mxu0 0
        %4068 = vmatprep.subr.bf16.mxu0 0
        %4069 = vmatpush2.bf16.msra.mxu0 0
        %4070 = vmatprep.subr.bf16.mxu0 0
        %4071 = vmatpush2.bf16.msra.mxu0 0
        %4072 = vmatprep.mubr.bf16.mxu0 0
        %4073 = vmatmul.mubr.bf16.gmra.mxu0 %v4038
        %v4074 = vpop.f32.mrf.mxu0
        %v4075 = vadd.f32 0.0, %v4074
        %v4076 = vpop.f32.mrf.mxu0
        %v4077 = vpop.f32.mrf.mxu0
        %v4078 = vadd.f32 0.0, %v4077
        %v4079 = vpop.f32.mrf.mxu0
        %4080 = vdwg.mxu0
        %v4082 = vsel %vm2647, %v3764, 0
        %4084 = vmatprep.subr.bf16.mxu0 0
        %4085 = vmatpush1.bf16.msra.mxu0 0
        %4086 = vmatprep.subr.bf16.mxu0 0
        %4087 = vmatpush1.bf16.msra.mxu0 0
        %4088 = vmatprep.subr.bf16.mxu0 0
        %4089 = vmatpush1.bf16.msra.mxu0 0
        %4090 = vmatprep.subr.bf16.mxu0 0
        %4091 = vmatpush1.bf16.msra.mxu0 0
        %4092 = vmatprep.subr.bf16.mxu0 0
        %4093 = vmatpush1.bf16.msra.mxu0 0
        %4094 = vmatprep.subr.bf16.mxu0 0
        %4095 = vmatpush1.bf16.msra.mxu0 0
        %4096 = vmatprep.subr.bf16.mxu0 0
        %4097 = vmatpush1.bf16.msra.mxu0 0
        %4098 = vmatprep.subr.bf16.mxu0 0
        %4099 = vmatpush1.bf16.msra.mxu0 %v3772
        %4100 = vmatprep.subr.bf16.mxu0 0
        %4101 = vmatpush2.bf16.msra.mxu0 0
        %4102 = vmatprep.subr.bf16.mxu0 0
        %4103 = vmatpush2.bf16.msra.mxu0 0
        %4104 = vmatprep.subr.bf16.mxu0 0
        %4105 = vmatpush2.bf16.msra.mxu0 0
        %4106 = vmatprep.subr.bf16.mxu0 0
        %4107 = vmatpush2.bf16.msra.mxu0 0
        %4108 = vmatprep.subr.bf16.mxu0 0
        %4109 = vmatpush2.bf16.msra.mxu0 0
        %4110 = vmatprep.subr.bf16.mxu0 0
        %4111 = vmatpush2.bf16.msra.mxu0 0
        %4112 = vmatprep.subr.bf16.mxu0 0
        %4113 = vmatpush2.bf16.msra.mxu0 0
        %4114 = vmatprep.subr.bf16.mxu0 0
        %4115 = vmatpush2.bf16.msra.mxu0 0
        %4116 = vmatprep.mubr.bf16.mxu0 0
        %4117 = vmatmul.mubr.bf16.gmra.mxu0 %v4082
        %v4118 = vpop.f32.mrf.mxu0
        %v4119 = vadd.f32 0.0, %v4118
        %v4120 = vpop.f32.mrf.mxu0
        %v4121 = vpop.f32.mrf.mxu0
        %v4122 = vadd.f32 0.0, %v4121
        %v4123 = vpop.f32.mrf.mxu0
        %4124 = vdwg.mxu0
        %v4125 = vcombine.low %v3811, %v3899
        %v4126 = vcombine.high %v3811, %v3899
        %v4128 = vunpack.c.l.s4 1983009808
        %v4129 = vunpack.c.0.s8 %v4128
        %v4130 = vlaneseq
        %v4131 = vshrl.u32 %v4130, 7
        %v4132 = vsub.s32 %v4129, %v4131
        %v4133 = vrot.slane %v4125, %v4132
        %v4135 = vunpack.c.l.s4 1983009808
        %v4136 = vunpack.c.0.s8 %v4135
        %v4137 = vlaneseq
        %v4138 = vshrl.u32 %v4137, 7
        %v4139 = vsub.s32 %v4136, %v4138
        %v4140 = vrot.slane %v4126, %v4139
        %v4141 = vcombine.low %v3855, %v3943
        %v4142 = vcombine.high %v3855, %v3943
        %v4144 = vunpack.c.l.s4 1983009808
        %v4145 = vunpack.c.0.s8 %v4144
        %v4146 = vlaneseq
        %v4147 = vshrl.u32 %v4146, 7
        %v4148 = vsub.s32 %v4145, %v4147
        %v4149 = vrot.slane %v4141, %v4148
        %v4151 = vunpack.c.l.s4 1983009808
        %v4152 = vunpack.c.0.s8 %v4151
        %v4153 = vlaneseq
        %v4154 = vshrl.u32 %v4153, 7
        %v4155 = vsub.s32 %v4152, %v4154
        %v4156 = vrot.slane %v4142, %v4155
        %v4157 = vcombine.low %v3987, %v4075
        %v4158 = vcombine.high %v3987, %v4075
        %v4160 = vunpack.c.l.s4 1983009808
        %v4161 = vunpack.c.0.s8 %v4160
        %v4162 = vlaneseq
        %v4163 = vshrl.u32 %v4162, 7
        %v4164 = vsub.s32 %v4161, %v4163
        %v4165 = vrot.slane %v4157, %v4164
        %v4167 = vunpack.c.l.s4 1983009808
        %v4168 = vunpack.c.0.s8 %v4167
        %v4169 = vlaneseq
        %v4170 = vshrl.u32 %v4169, 7
        %v4171 = vsub.s32 %v4168, %v4170
        %v4172 = vrot.slane %v4158, %v4171
        %v4173 = vcombine.low %v4031, %v4119
        %v4174 = vcombine.high %v4031, %v4119
        %v4176 = vunpack.c.l.s4 1983009808
        %v4177 = vunpack.c.0.s8 %v4176
        %v4178 = vlaneseq
        %v4179 = vshrl.u32 %v4178, 7
        %v4180 = vsub.s32 %v4177, %v4179
        %v4181 = vrot.slane %v4173, %v4180
        %v4183 = vunpack.c.l.s4 1983009808
        %v4184 = vunpack.c.0.s8 %v4183
        %v4185 = vlaneseq
        %v4186 = vshrl.u32 %v4185, 7
        %v4187 = vsub.s32 %v4184, %v4186
        %v4188 = vrot.slane %v4174, %v4187
        %v4189 = vcombine.low %v4133, %v4149
        %v4190 = vcombine.high %v4133, %v4149
        %v4192 = vunpack.c.l.s4 1934713408
        %v4193 = vunpack.c.0.s8 %v4192
        %v4194 = vlaneseq
        %v4195 = vshrl.u32 %v4194, 7
        %v4196 = vsub.s32 %v4193, %v4195
        %v4197 = vrot.slane %v4189, %v4196
        %v4199 = vunpack.c.l.s4 1934713408
        %v4200 = vunpack.c.0.s8 %v4199
        %v4201 = vlaneseq
        %v4202 = vshrl.u32 %v4201, 7
        %v4203 = vsub.s32 %v4200, %v4202
        %v4204 = vrot.slane %v4190, %v4203
        %v4205 = vcombine.low %v4140, %v4156
        %v4206 = vcombine.high %v4140, %v4156
        %v4208 = vunpack.c.l.s4 1934713408
        %v4209 = vunpack.c.0.s8 %v4208
        %v4210 = vlaneseq
        %v4211 = vshrl.u32 %v4210, 7
        %v4212 = vsub.s32 %v4209, %v4211
        %v4213 = vrot.slane %v4205, %v4212
        %v4215 = vunpack.c.l.s4 1934713408
        %v4216 = vunpack.c.0.s8 %v4215
        %v4217 = vlaneseq
        %v4218 = vshrl.u32 %v4217, 7
        %v4219 = vsub.s32 %v4216, %v4218
        %v4220 = vrot.slane %v4206, %v4219
        %v4221 = vcombine.low %v4165, %v4181
        %v4222 = vcombine.high %v4165, %v4181
        %v4224 = vunpack.c.l.s4 1934713408
        %v4225 = vunpack.c.0.s8 %v4224
        %v4226 = vlaneseq
        %v4227 = vshrl.u32 %v4226, 7
        %v4228 = vsub.s32 %v4225, %v4227
        %v4229 = vrot.slane %v4221, %v4228
        %v4231 = vunpack.c.l.s4 1934713408
        %v4232 = vunpack.c.0.s8 %v4231
        %v4233 = vlaneseq
        %v4234 = vshrl.u32 %v4233, 7
        %v4235 = vsub.s32 %v4232, %v4234
        %v4236 = vrot.slane %v4222, %v4235
        %v4237 = vcombine.low %v4172, %v4188
        %v4238 = vcombine.high %v4172, %v4188
        %v4240 = vunpack.c.l.s4 1934713408
        %v4241 = vunpack.c.0.s8 %v4240
        %v4242 = vlaneseq
        %v4243 = vshrl.u32 %v4242, 7
        %v4244 = vsub.s32 %v4241, %v4243
        %v4245 = vrot.slane %v4237, %v4244
        %v4247 = vunpack.c.l.s4 1934713408
        %v4248 = vunpack.c.0.s8 %v4247
        %v4249 = vlaneseq
        %v4250 = vshrl.u32 %v4249, 7
        %v4251 = vsub.s32 %v4248, %v4250
        %v4252 = vrot.slane %v4238, %v4251
        %v4253 = vcombine.low %v4197, %v4229
        %v4254 = vcombine.high %v4197, %v4229
        %v4255 = vcombine.low %v4204, %v4236
        %v4256 = vcombine.high %v4204, %v4236
        %v4257 = vcombine.low %v4213, %v4245
        %v4258 = vcombine.high %v4213, %v4245
        %v4259 = vcombine.low %v4220, %v4252
        %v4260 = vcombine.high %v4220, %v4252
        %v4261 = vcombine.low %v3814, %v3902
        %v4262 = vcombine.high %v3814, %v3902
        %v4264 = vunpack.c.l.s4 1983009808
        %v4265 = vunpack.c.0.s8 %v4264
        %v4266 = vlaneseq
        %v4267 = vshrl.u32 %v4266, 7
        %v4268 = vsub.s32 %v4265, %v4267
        %v4269 = vrot.slane %v4261, %v4268
        %v4271 = vunpack.c.l.s4 1983009808
        %v4272 = vunpack.c.0.s8 %v4271
        %v4273 = vlaneseq
        %v4274 = vshrl.u32 %v4273, 7
        %v4275 = vsub.s32 %v4272, %v4274
        %v4276 = vrot.slane %v4262, %v4275
        %v4277 = vcombine.low %v3858, %v3946
        %v4278 = vcombine.high %v3858, %v3946
        %v4280 = vunpack.c.l.s4 1983009808
        %v4281 = vunpack.c.0.s8 %v4280
        %v4282 = vlaneseq
        %v4283 = vshrl.u32 %v4282, 7
        %v4284 = vsub.s32 %v4281, %v4283
        %v4285 = vrot.slane %v4277, %v4284
        %v4287 = vunpack.c.l.s4 1983009808
        %v4288 = vunpack.c.0.s8 %v4287
        %v4289 = vlaneseq
        %v4290 = vshrl.u32 %v4289, 7
        %v4291 = vsub.s32 %v4288, %v4290
        %v4292 = vrot.slane %v4278, %v4291
        %v4293 = vcombine.low %v3990, %v4078
        %v4294 = vcombine.high %v3990, %v4078
        %v4296 = vunpack.c.l.s4 1983009808
        %v4297 = vunpack.c.0.s8 %v4296
        %v4298 = vlaneseq
        %v4299 = vshrl.u32 %v4298, 7
        %v4300 = vsub.s32 %v4297, %v4299
        %v4301 = vrot.slane %v4293, %v4300
        %v4303 = vunpack.c.l.s4 1983009808
        %v4304 = vunpack.c.0.s8 %v4303
        %v4305 = vlaneseq
        %v4306 = vshrl.u32 %v4305, 7
        %v4307 = vsub.s32 %v4304, %v4306
        %v4308 = vrot.slane %v4294, %v4307
        %v4309 = vcombine.low %v4034, %v4122
        %v4310 = vcombine.high %v4034, %v4122
        %v4312 = vunpack.c.l.s4 1983009808
        %v4313 = vunpack.c.0.s8 %v4312
        %v4314 = vlaneseq
        %v4315 = vshrl.u32 %v4314, 7
        %v4316 = vsub.s32 %v4313, %v4315
        %v4317 = vrot.slane %v4309, %v4316
        %v4319 = vunpack.c.l.s4 1983009808
        %v4320 = vunpack.c.0.s8 %v4319
        %v4321 = vlaneseq
        %v4322 = vshrl.u32 %v4321, 7
        %v4323 = vsub.s32 %v4320, %v4322
        %v4324 = vrot.slane %v4310, %v4323
        %v4325 = vcombine.low %v4269, %v4285
        %v4326 = vcombine.high %v4269, %v4285
        %v4328 = vunpack.c.l.s4 1934713408
        %v4329 = vunpack.c.0.s8 %v4328
        %v4330 = vlaneseq
        %v4331 = vshrl.u32 %v4330, 7
        %v4332 = vsub.s32 %v4329, %v4331
        %v4333 = vrot.slane %v4325, %v4332
        %v4335 = vunpack.c.l.s4 1934713408
        %v4336 = vunpack.c.0.s8 %v4335
        %v4337 = vlaneseq
        %v4338 = vshrl.u32 %v4337, 7
        %v4339 = vsub.s32 %v4336, %v4338
        %v4340 = vrot.slane %v4326, %v4339
        %v4341 = vcombine.low %v4276, %v4292
        %v4342 = vcombine.high %v4276, %v4292
        %v4344 = vunpack.c.l.s4 1934713408
        %v4345 = vunpack.c.0.s8 %v4344
        %v4346 = vlaneseq
        %v4347 = vshrl.u32 %v4346, 7
        %v4348 = vsub.s32 %v4345, %v4347
        %v4349 = vrot.slane %v4341, %v4348
        %v4351 = vunpack.c.l.s4 1934713408
        %v4352 = vunpack.c.0.s8 %v4351
        %v4353 = vlaneseq
        %v4354 = vshrl.u32 %v4353, 7
        %v4355 = vsub.s32 %v4352, %v4354
        %v4356 = vrot.slane %v4342, %v4355
        %v4357 = vcombine.low %v4301, %v4317
        %v4358 = vcombine.high %v4301, %v4317
        %v4360 = vunpack.c.l.s4 1934713408
        %v4361 = vunpack.c.0.s8 %v4360
        %v4362 = vlaneseq
        %v4363 = vshrl.u32 %v4362, 7
        %v4364 = vsub.s32 %v4361, %v4363
        %v4365 = vrot.slane %v4357, %v4364
        %v4367 = vunpack.c.l.s4 1934713408
        %v4368 = vunpack.c.0.s8 %v4367
        %v4369 = vlaneseq
        %v4370 = vshrl.u32 %v4369, 7
        %v4371 = vsub.s32 %v4368, %v4370
        %v4372 = vrot.slane %v4358, %v4371
        %v4373 = vcombine.low %v4308, %v4324
        %v4374 = vcombine.high %v4308, %v4324
        %v4376 = vunpack.c.l.s4 1934713408
        %v4377 = vunpack.c.0.s8 %v4376
        %v4378 = vlaneseq
        %v4379 = vshrl.u32 %v4378, 7
        %v4380 = vsub.s32 %v4377, %v4379
        %v4381 = vrot.slane %v4373, %v4380
        %v4383 = vunpack.c.l.s4 1934713408
        %v4384 = vunpack.c.0.s8 %v4383
        %v4385 = vlaneseq
        %v4386 = vshrl.u32 %v4385, 7
        %v4387 = vsub.s32 %v4384, %v4386
        %v4388 = vrot.slane %v4374, %v4387
        %v4389 = vcombine.low %v4333, %v4365
        %v4390 = vcombine.high %v4333, %v4365
        %v4391 = vcombine.low %v4340, %v4372
        %v4392 = vcombine.high %v4340, %v4372
        %v4393 = vcombine.low %v4349, %v4381
        %v4394 = vcombine.high %v4349, %v4381
        %v4395 = vcombine.low %v4356, %v4388
        %v4396 = vcombine.high %v4356, %v4388
        %v4398 = vsel %vm1384, %v3741, 0
        %vm4400 = vcmask 1043456
        %v4402 = vsel %vm4400, %v1347, 0
        %4404 = vmatprep.subr.bf16.mxu0 0
        %4405 = vmatpush1.bf16.msra.mxu0 0
        %4406 = vmatprep.subr.bf16.mxu0 0
        %4407 = vmatpush1.bf16.msra.mxu0 0
        %4408 = vmatprep.subr.bf16.mxu0 0
        %4409 = vmatpush1.bf16.msra.mxu0 0
        %4410 = vmatprep.subr.bf16.mxu0 0
        %4411 = vmatpush1.bf16.msra.mxu0 0
        %4412 = vmatprep.subr.bf16.mxu0 0
        %4413 = vmatpush1.bf16.msra.mxu0 0
        %4414 = vmatprep.subr.bf16.mxu0 0
        %4415 = vmatpush1.bf16.msra.mxu0 0
        %4416 = vmatprep.subr.bf16.mxu0 0
        %4417 = vmatpush1.bf16.msra.mxu0 0
        %4418 = vmatprep.subr.bf16.mxu0 0
        %4419 = vmatpush1.bf16.msra.mxu0 %v4402
        %4420 = vmatprep.subr.bf16.mxu0 0
        %4421 = vmatpush2.bf16.msra.mxu0 0
        %4422 = vmatprep.subr.bf16.mxu0 0
        %4423 = vmatpush2.bf16.msra.mxu0 0
        %4424 = vmatprep.subr.bf16.mxu0 0
        %4425 = vmatpush2.bf16.msra.mxu0 0
        %4426 = vmatprep.subr.bf16.mxu0 0
        %4427 = vmatpush2.bf16.msra.mxu0 0
        %4428 = vmatprep.subr.bf16.mxu0 0
        %4429 = vmatpush2.bf16.msra.mxu0 0
        %4430 = vmatprep.subr.bf16.mxu0 0
        %4431 = vmatpush2.bf16.msra.mxu0 0
        %4432 = vmatprep.subr.bf16.mxu0 0
        %4433 = vmatpush2.bf16.msra.mxu0 0
        %4434 = vmatprep.subr.bf16.mxu0 0
        %4435 = vmatpush2.bf16.msra.mxu0 0
        %4436 = vmatprep.mubr.bf16.mxu0 0
        %4437 = vmatmul.mubr.bf16.gmra.mxu0 %v4398
        %v4438 = vpop.f32.mrf.mxu0
        %v4439 = vadd.f32 %v4253, %v4438
        %v4440 = vpop.f32.mrf.mxu0
        %v4441 = vpop.f32.mrf.mxu0
        %v4442 = vpop.f32.mrf.mxu0
        %4443 = vdwg.mxu0
        %v4445 = vsel %vm1384, %v3742, 0
        %v4448 = vsel %vm4400, %v1348, 0
        %4450 = vmatprep.subr.bf16.mxu0 0
        %4451 = vmatpush1.bf16.msra.mxu0 0
        %4452 = vmatprep.subr.bf16.mxu0 0
        %4453 = vmatpush1.bf16.msra.mxu0 0
        %4454 = vmatprep.subr.bf16.mxu0 0
        %4455 = vmatpush1.bf16.msra.mxu0 0
        %4456 = vmatprep.subr.bf16.mxu0 0
        %4457 = vmatpush1.bf16.msra.mxu0 0
        %4458 = vmatprep.subr.bf16.mxu0 0
        %4459 = vmatpush1.bf16.msra.mxu0 0
        %4460 = vmatprep.subr.bf16.mxu0 0
        %4461 = vmatpush1.bf16.msra.mxu0 0
        %4462 = vmatprep.subr.bf16.mxu0 0
        %4463 = vmatpush1.bf16.msra.mxu0 0
        %4464 = vmatprep.subr.bf16.mxu0 0
        %4465 = vmatpush1.bf16.msra.mxu0 %v4448
        %4466 = vmatprep.subr.bf16.mxu0 0
        %4467 = vmatpush2.bf16.msra.mxu0 0
        %4468 = vmatprep.subr.bf16.mxu0 0
        %4469 = vmatpush2.bf16.msra.mxu0 0
        %4470 = vmatprep.subr.bf16.mxu0 0
        %4471 = vmatpush2.bf16.msra.mxu0 0
        %4472 = vmatprep.subr.bf16.mxu0 0
        %4473 = vmatpush2.bf16.msra.mxu0 0
        %4474 = vmatprep.subr.bf16.mxu0 0
        %4475 = vmatpush2.bf16.msra.mxu0 0
        %4476 = vmatprep.subr.bf16.mxu0 0
        %4477 = vmatpush2.bf16.msra.mxu0 0
        %4478 = vmatprep.subr.bf16.mxu0 0
        %4479 = vmatpush2.bf16.msra.mxu0 0
        %4480 = vmatprep.subr.bf16.mxu0 0
        %4481 = vmatpush2.bf16.msra.mxu0 0
        %4482 = vmatprep.mubr.bf16.mxu0 0
        %4483 = vmatmul.mubr.bf16.gmra.mxu0 %v4445
        %v4484 = vpop.f32.mrf.mxu0
        %v4485 = vadd.f32 %v4254, %v4484
        %v4486 = vpop.f32.mrf.mxu0
        %v4487 = vpop.f32.mrf.mxu0
        %v4488 = vpop.f32.mrf.mxu0
        %4489 = vdwg.mxu0
        %v4491 = vsel %vm1384, %v3743, 0
        %v4494 = vsel %vm4400, %v1349, 0
        %4496 = vmatprep.subr.bf16.mxu0 0
        %4497 = vmatpush1.bf16.msra.mxu0 0
        %4498 = vmatprep.subr.bf16.mxu0 0
        %4499 = vmatpush1.bf16.msra.mxu0 0
        %4500 = vmatprep.subr.bf16.mxu0 0
        %4501 = vmatpush1.bf16.msra.mxu0 0
        %4502 = vmatprep.subr.bf16.mxu0 0
        %4503 = vmatpush1.bf16.msra.mxu0 0
        %4504 = vmatprep.subr.bf16.mxu0 0
        %4505 = vmatpush1.bf16.msra.mxu0 0
        %4506 = vmatprep.subr.bf16.mxu0 0
        %4507 = vmatpush1.bf16.msra.mxu0 0
        %4508 = vmatprep.subr.bf16.mxu0 0
        %4509 = vmatpush1.bf16.msra.mxu0 0
        %4510 = vmatprep.subr.bf16.mxu0 0
        %4511 = vmatpush1.bf16.msra.mxu0 %v4494
        %4512 = vmatprep.subr.bf16.mxu0 0
        %4513 = vmatpush2.bf16.msra.mxu0 0
        %4514 = vmatprep.subr.bf16.mxu0 0
        %4515 = vmatpush2.bf16.msra.mxu0 0
        %4516 = vmatprep.subr.bf16.mxu0 0
        %4517 = vmatpush2.bf16.msra.mxu0 0
        %4518 = vmatprep.subr.bf16.mxu0 0
        %4519 = vmatpush2.bf16.msra.mxu0 0
        %4520 = vmatprep.subr.bf16.mxu0 0
        %4521 = vmatpush2.bf16.msra.mxu0 0
        %4522 = vmatprep.subr.bf16.mxu0 0
        %4523 = vmatpush2.bf16.msra.mxu0 0
        %4524 = vmatprep.subr.bf16.mxu0 0
        %4525 = vmatpush2.bf16.msra.mxu0 0
        %4526 = vmatprep.subr.bf16.mxu0 0
        %4527 = vmatpush2.bf16.msra.mxu0 0
        %4528 = vmatprep.mubr.bf16.mxu0 0
        %4529 = vmatmul.mubr.bf16.gmra.mxu0 %v4491
        %v4530 = vpop.f32.mrf.mxu0
        %v4531 = vadd.f32 %v4255, %v4530
        %v4532 = vpop.f32.mrf.mxu0
        %v4533 = vpop.f32.mrf.mxu0
        %v4534 = vpop.f32.mrf.mxu0
        %4535 = vdwg.mxu0
        %v4537 = vsel %vm1384, %v3744, 0
        %v4540 = vsel %vm4400, %v1350, 0
        %4542 = vmatprep.subr.bf16.mxu0 0
        %4543 = vmatpush1.bf16.msra.mxu0 0
        %4544 = vmatprep.subr.bf16.mxu0 0
        %4545 = vmatpush1.bf16.msra.mxu0 0
        %4546 = vmatprep.subr.bf16.mxu0 0
        %4547 = vmatpush1.bf16.msra.mxu0 0
        %4548 = vmatprep.subr.bf16.mxu0 0
        %4549 = vmatpush1.bf16.msra.mxu0 0
        %4550 = vmatprep.subr.bf16.mxu0 0
        %4551 = vmatpush1.bf16.msra.mxu0 0
        %4552 = vmatprep.subr.bf16.mxu0 0
        %4553 = vmatpush1.bf16.msra.mxu0 0
        %4554 = vmatprep.subr.bf16.mxu0 0
        %4555 = vmatpush1.bf16.msra.mxu0 0
        %4556 = vmatprep.subr.bf16.mxu0 0
        %4557 = vmatpush1.bf16.msra.mxu0 %v4540
        %4558 = vmatprep.subr.bf16.mxu0 0
        %4559 = vmatpush2.bf16.msra.mxu0 0
        %4560 = vmatprep.subr.bf16.mxu0 0
        %4561 = vmatpush2.bf16.msra.mxu0 0
        %4562 = vmatprep.subr.bf16.mxu0 0
        %4563 = vmatpush2.bf16.msra.mxu0 0
        %4564 = vmatprep.subr.bf16.mxu0 0
        %4565 = vmatpush2.bf16.msra.mxu0 0
        %4566 = vmatprep.subr.bf16.mxu0 0
        %4567 = vmatpush2.bf16.msra.mxu0 0
        %4568 = vmatprep.subr.bf16.mxu0 0
        %4569 = vmatpush2.bf16.msra.mxu0 0
        %4570 = vmatprep.subr.bf16.mxu0 0
        %4571 = vmatpush2.bf16.msra.mxu0 0
        %4572 = vmatprep.subr.bf16.mxu0 0
        %4573 = vmatpush2.bf16.msra.mxu0 0
        %4574 = vmatprep.mubr.bf16.mxu0 0
        %4575 = vmatmul.mubr.bf16.gmra.mxu0 %v4537
        %v4576 = vpop.f32.mrf.mxu0
        %v4577 = vadd.f32 %v4256, %v4576
        %v4578 = vpop.f32.mrf.mxu0
        %v4579 = vpop.f32.mrf.mxu0
        %v4580 = vpop.f32.mrf.mxu0
        %4581 = vdwg.mxu0
        %v4583 = vsel %vm1384, %v3745, 0
        %v4586 = vsel %vm4400, %v1351, 0
        %4588 = vmatprep.subr.bf16.mxu0 0
        %4589 = vmatpush1.bf16.msra.mxu0 0
        %4590 = vmatprep.subr.bf16.mxu0 0
        %4591 = vmatpush1.bf16.msra.mxu0 0
        %4592 = vmatprep.subr.bf16.mxu0 0
        %4593 = vmatpush1.bf16.msra.mxu0 0
        %4594 = vmatprep.subr.bf16.mxu0 0
        %4595 = vmatpush1.bf16.msra.mxu0 0
        %4596 = vmatprep.subr.bf16.mxu0 0
        %4597 = vmatpush1.bf16.msra.mxu0 0
        %4598 = vmatprep.subr.bf16.mxu0 0
        %4599 = vmatpush1.bf16.msra.mxu0 0
        %4600 = vmatprep.subr.bf16.mxu0 0
        %4601 = vmatpush1.bf16.msra.mxu0 0
        %4602 = vmatprep.subr.bf16.mxu0 0
        %4603 = vmatpush1.bf16.msra.mxu0 %v4586
        %4604 = vmatprep.subr.bf16.mxu0 0
        %4605 = vmatpush2.bf16.msra.mxu0 0
        %4606 = vmatprep.subr.bf16.mxu0 0
        %4607 = vmatpush2.bf16.msra.mxu0 0
        %4608 = vmatprep.subr.bf16.mxu0 0
        %4609 = vmatpush2.bf16.msra.mxu0 0
        %4610 = vmatprep.subr.bf16.mxu0 0
        %4611 = vmatpush2.bf16.msra.mxu0 0
        %4612 = vmatprep.subr.bf16.mxu0 0
        %4613 = vmatpush2.bf16.msra.mxu0 0
        %4614 = vmatprep.subr.bf16.mxu0 0
        %4615 = vmatpush2.bf16.msra.mxu0 0
        %4616 = vmatprep.subr.bf16.mxu0 0
        %4617 = vmatpush2.bf16.msra.mxu0 0
        %4618 = vmatprep.subr.bf16.mxu0 0
        %4619 = vmatpush2.bf16.msra.mxu0 0
        %4620 = vmatprep.mubr.bf16.mxu0 0
        %4621 = vmatmul.mubr.bf16.gmra.mxu0 %v4583
        %v4622 = vpop.f32.mrf.mxu0
        %v4623 = vadd.f32 %v4257, %v4622
        %v4624 = vpop.f32.mrf.mxu0
        %v4625 = vpop.f32.mrf.mxu0
        %v4626 = vpop.f32.mrf.mxu0
        %4627 = vdwg.mxu0
        %v4629 = vsel %vm1384, %v3746, 0
        %v4632 = vsel %vm4400, %v1352, 0
        %4634 = vmatprep.subr.bf16.mxu0 0
        %4635 = vmatpush1.bf16.msra.mxu0 0
        %4636 = vmatprep.subr.bf16.mxu0 0
        %4637 = vmatpush1.bf16.msra.mxu0 0
        %4638 = vmatprep.subr.bf16.mxu0 0
        %4639 = vmatpush1.bf16.msra.mxu0 0
        %4640 = vmatprep.subr.bf16.mxu0 0
        %4641 = vmatpush1.bf16.msra.mxu0 0
        %4642 = vmatprep.subr.bf16.mxu0 0
        %4643 = vmatpush1.bf16.msra.mxu0 0
        %4644 = vmatprep.subr.bf16.mxu0 0
        %4645 = vmatpush1.bf16.msra.mxu0 0
        %4646 = vmatprep.subr.bf16.mxu0 0
        %4647 = vmatpush1.bf16.msra.mxu0 0
        %4648 = vmatprep.subr.bf16.mxu0 0
        %4649 = vmatpush1.bf16.msra.mxu0 %v4632
        %4650 = vmatprep.subr.bf16.mxu0 0
        %4651 = vmatpush2.bf16.msra.mxu0 0
        %4652 = vmatprep.subr.bf16.mxu0 0
        %4653 = vmatpush2.bf16.msra.mxu0 0
        %4654 = vmatprep.subr.bf16.mxu0 0
        %4655 = vmatpush2.bf16.msra.mxu0 0
        %4656 = vmatprep.subr.bf16.mxu0 0
        %4657 = vmatpush2.bf16.msra.mxu0 0
        %4658 = vmatprep.subr.bf16.mxu0 0
        %4659 = vmatpush2.bf16.msra.mxu0 0
        %4660 = vmatprep.subr.bf16.mxu0 0
        %4661 = vmatpush2.bf16.msra.mxu0 0
        %4662 = vmatprep.subr.bf16.mxu0 0
        %4663 = vmatpush2.bf16.msra.mxu0 0
        %4664 = vmatprep.subr.bf16.mxu0 0
        %4665 = vmatpush2.bf16.msra.mxu0 0
        %4666 = vmatprep.mubr.bf16.mxu0 0
        %4667 = vmatmul.mubr.bf16.gmra.mxu0 %v4629
        %v4668 = vpop.f32.mrf.mxu0
        %v4669 = vadd.f32 %v4258, %v4668
        %v4670 = vpop.f32.mrf.mxu0
        %v4671 = vpop.f32.mrf.mxu0
        %v4672 = vpop.f32.mrf.mxu0
        %4673 = vdwg.mxu0
        %v4675 = vsel %vm1384, %v3747, 0
        %v4678 = vsel %vm4400, %v1353, 0
        %4680 = vmatprep.subr.bf16.mxu0 0
        %4681 = vmatpush1.bf16.msra.mxu0 0
        %4682 = vmatprep.subr.bf16.mxu0 0
        %4683 = vmatpush1.bf16.msra.mxu0 0
        %4684 = vmatprep.subr.bf16.mxu0 0
        %4685 = vmatpush1.bf16.msra.mxu0 0
        %4686 = vmatprep.subr.bf16.mxu0 0
        %4687 = vmatpush1.bf16.msra.mxu0 0
        %4688 = vmatprep.subr.bf16.mxu0 0
        %4689 = vmatpush1.bf16.msra.mxu0 0
        %4690 = vmatprep.subr.bf16.mxu0 0
        %4691 = vmatpush1.bf16.msra.mxu0 0
        %4692 = vmatprep.subr.bf16.mxu0 0
        %4693 = vmatpush1.bf16.msra.mxu0 0
        %4694 = vmatprep.subr.bf16.mxu0 0
        %4695 = vmatpush1.bf16.msra.mxu0 %v4678
        %4696 = vmatprep.subr.bf16.mxu0 0
        %4697 = vmatpush2.bf16.msra.mxu0 0
        %4698 = vmatprep.subr.bf16.mxu0 0
        %4699 = vmatpush2.bf16.msra.mxu0 0
        %4700 = vmatprep.subr.bf16.mxu0 0
        %4701 = vmatpush2.bf16.msra.mxu0 0
        %4702 = vmatprep.subr.bf16.mxu0 0
        %4703 = vmatpush2.bf16.msra.mxu0 0
        %4704 = vmatprep.subr.bf16.mxu0 0
        %4705 = vmatpush2.bf16.msra.mxu0 0
        %4706 = vmatprep.subr.bf16.mxu0 0
        %4707 = vmatpush2.bf16.msra.mxu0 0
        %4708 = vmatprep.subr.bf16.mxu0 0
        %4709 = vmatpush2.bf16.msra.mxu0 0
        %4710 = vmatprep.subr.bf16.mxu0 0
        %4711 = vmatpush2.bf16.msra.mxu0 0
        %4712 = vmatprep.mubr.bf16.mxu0 0
        %4713 = vmatmul.mubr.bf16.gmra.mxu0 %v4675
        %v4714 = vpop.f32.mrf.mxu0
        %v4715 = vadd.f32 %v4259, %v4714
        %v4716 = vpop.f32.mrf.mxu0
        %v4717 = vpop.f32.mrf.mxu0
        %v4718 = vpop.f32.mrf.mxu0
        %4719 = vdwg.mxu0
        %v4721 = vsel %vm1384, %v3748, 0
        %v4724 = vsel %vm4400, %v1354, 0
        %4726 = vmatprep.subr.bf16.mxu0 0
        %4727 = vmatpush1.bf16.msra.mxu0 0
        %4728 = vmatprep.subr.bf16.mxu0 0
        %4729 = vmatpush1.bf16.msra.mxu0 0
        %4730 = vmatprep.subr.bf16.mxu0 0
        %4731 = vmatpush1.bf16.msra.mxu0 0
        %4732 = vmatprep.subr.bf16.mxu0 0
        %4733 = vmatpush1.bf16.msra.mxu0 0
        %4734 = vmatprep.subr.bf16.mxu0 0
        %4735 = vmatpush1.bf16.msra.mxu0 0
        %4736 = vmatprep.subr.bf16.mxu0 0
        %4737 = vmatpush1.bf16.msra.mxu0 0
        %4738 = vmatprep.subr.bf16.mxu0 0
        %4739 = vmatpush1.bf16.msra.mxu0 0
        %4740 = vmatprep.subr.bf16.mxu0 0
        %4741 = vmatpush1.bf16.msra.mxu0 %v4724
        %4742 = vmatprep.subr.bf16.mxu0 0
        %4743 = vmatpush2.bf16.msra.mxu0 0
        %4744 = vmatprep.subr.bf16.mxu0 0
        %4745 = vmatpush2.bf16.msra.mxu0 0
        %4746 = vmatprep.subr.bf16.mxu0 0
        %4747 = vmatpush2.bf16.msra.mxu0 0
        %4748 = vmatprep.subr.bf16.mxu0 0
        %4749 = vmatpush2.bf16.msra.mxu0 0
        %4750 = vmatprep.subr.bf16.mxu0 0
        %4751 = vmatpush2.bf16.msra.mxu0 0
        %4752 = vmatprep.subr.bf16.mxu0 0
        %4753 = vmatpush2.bf16.msra.mxu0 0
        %4754 = vmatprep.subr.bf16.mxu0 0
        %4755 = vmatpush2.bf16.msra.mxu0 0
        %4756 = vmatprep.subr.bf16.mxu0 0
        %4757 = vmatpush2.bf16.msra.mxu0 0
        %4758 = vmatprep.mubr.bf16.mxu0 0
        %4759 = vmatmul.mubr.bf16.gmra.mxu0 %v4721
        %v4760 = vpop.f32.mrf.mxu0
        %v4761 = vadd.f32 %v4260, %v4760
        %v4762 = vpop.f32.mrf.mxu0
        %v4763 = vpop.f32.mrf.mxu0
        %v4764 = vpop.f32.mrf.mxu0
        %4765 = vdwg.mxu0
        %v4767 = vsel %vm1384, %v3749, 0
        %v4770 = vsel %vm4400, %v1355, 0
        %4772 = vmatprep.subr.bf16.mxu0 0
        %4773 = vmatpush1.bf16.msra.mxu0 0
        %4774 = vmatprep.subr.bf16.mxu0 0
        %4775 = vmatpush1.bf16.msra.mxu0 0
        %4776 = vmatprep.subr.bf16.mxu0 0
        %4777 = vmatpush1.bf16.msra.mxu0 0
        %4778 = vmatprep.subr.bf16.mxu0 0
        %4779 = vmatpush1.bf16.msra.mxu0 0
        %4780 = vmatprep.subr.bf16.mxu0 0
        %4781 = vmatpush1.bf16.msra.mxu0 0
        %4782 = vmatprep.subr.bf16.mxu0 0
        %4783 = vmatpush1.bf16.msra.mxu0 0
        %4784 = vmatprep.subr.bf16.mxu0 0
        %4785 = vmatpush1.bf16.msra.mxu0 0
        %4786 = vmatprep.subr.bf16.mxu0 0
        %4787 = vmatpush1.bf16.msra.mxu0 %v4770
        %4788 = vmatprep.subr.bf16.mxu0 0
        %4789 = vmatpush2.bf16.msra.mxu0 0
        %4790 = vmatprep.subr.bf16.mxu0 0
        %4791 = vmatpush2.bf16.msra.mxu0 0
        %4792 = vmatprep.subr.bf16.mxu0 0
        %4793 = vmatpush2.bf16.msra.mxu0 0
        %4794 = vmatprep.subr.bf16.mxu0 0
        %4795 = vmatpush2.bf16.msra.mxu0 0
        %4796 = vmatprep.subr.bf16.mxu0 0
        %4797 = vmatpush2.bf16.msra.mxu0 0
        %4798 = vmatprep.subr.bf16.mxu0 0
        %4799 = vmatpush2.bf16.msra.mxu0 0
        %4800 = vmatprep.subr.bf16.mxu0 0
        %4801 = vmatpush2.bf16.msra.mxu0 0
        %4802 = vmatprep.subr.bf16.mxu0 0
        %4803 = vmatpush2.bf16.msra.mxu0 0
        %4804 = vmatprep.mubr.bf16.mxu0 0
        %4805 = vmatmul.mubr.bf16.gmra.mxu0 %v4767
        %v4806 = vpop.f32.mrf.mxu0
        %v4807 = vadd.f32 %v4389, %v4806
        %v4808 = vpop.f32.mrf.mxu0
        %v4809 = vpop.f32.mrf.mxu0
        %v4810 = vpop.f32.mrf.mxu0
        %4811 = vdwg.mxu0
        %v4813 = vsel %vm1384, %v3750, 0
        %v4816 = vsel %vm4400, %v1356, 0
        %4818 = vmatprep.subr.bf16.mxu0 0
        %4819 = vmatpush1.bf16.msra.mxu0 0
        %4820 = vmatprep.subr.bf16.mxu0 0
        %4821 = vmatpush1.bf16.msra.mxu0 0
        %4822 = vmatprep.subr.bf16.mxu0 0
        %4823 = vmatpush1.bf16.msra.mxu0 0
        %4824 = vmatprep.subr.bf16.mxu0 0
        %4825 = vmatpush1.bf16.msra.mxu0 0
        %4826 = vmatprep.subr.bf16.mxu0 0
        %4827 = vmatpush1.bf16.msra.mxu0 0
        %4828 = vmatprep.subr.bf16.mxu0 0
        %4829 = vmatpush1.bf16.msra.mxu0 0
        %4830 = vmatprep.subr.bf16.mxu0 0
        %4831 = vmatpush1.bf16.msra.mxu0 0
        %4832 = vmatprep.subr.bf16.mxu0 0
        %4833 = vmatpush1.bf16.msra.mxu0 %v4816
        %4834 = vmatprep.subr.bf16.mxu0 0
        %4835 = vmatpush2.bf16.msra.mxu0 0
        %4836 = vmatprep.subr.bf16.mxu0 0
        %4837 = vmatpush2.bf16.msra.mxu0 0
        %4838 = vmatprep.subr.bf16.mxu0 0
        %4839 = vmatpush2.bf16.msra.mxu0 0
        %4840 = vmatprep.subr.bf16.mxu0 0
        %4841 = vmatpush2.bf16.msra.mxu0 0
        %4842 = vmatprep.subr.bf16.mxu0 0
        %4843 = vmatpush2.bf16.msra.mxu0 0
        %4844 = vmatprep.subr.bf16.mxu0 0
        %4845 = vmatpush2.bf16.msra.mxu0 0
        %4846 = vmatprep.subr.bf16.mxu0 0
        %4847 = vmatpush2.bf16.msra.mxu0 0
        %4848 = vmatprep.subr.bf16.mxu0 0
        %4849 = vmatpush2.bf16.msra.mxu0 0
        %4850 = vmatprep.mubr.bf16.mxu0 0
        %4851 = vmatmul.mubr.bf16.gmra.mxu0 %v4813
        %v4852 = vpop.f32.mrf.mxu0
        %v4853 = vadd.f32 %v4390, %v4852
        %v4854 = vpop.f32.mrf.mxu0
        %v4855 = vpop.f32.mrf.mxu0
        %v4856 = vpop.f32.mrf.mxu0
        %4857 = vdwg.mxu0
        %v4859 = vsel %vm1384, %v3751, 0
        %v4862 = vsel %vm4400, %v1357, 0
        %4864 = vmatprep.subr.bf16.mxu0 0
        %4865 = vmatpush1.bf16.msra.mxu0 0
        %4866 = vmatprep.subr.bf16.mxu0 0
        %4867 = vmatpush1.bf16.msra.mxu0 0
        %4868 = vmatprep.subr.bf16.mxu0 0
        %4869 = vmatpush1.bf16.msra.mxu0 0
        %4870 = vmatprep.subr.bf16.mxu0 0
        %4871 = vmatpush1.bf16.msra.mxu0 0
        %4872 = vmatprep.subr.bf16.mxu0 0
        %4873 = vmatpush1.bf16.msra.mxu0 0
        %4874 = vmatprep.subr.bf16.mxu0 0
        %4875 = vmatpush1.bf16.msra.mxu0 0
        %4876 = vmatprep.subr.bf16.mxu0 0
        %4877 = vmatpush1.bf16.msra.mxu0 0
        %4878 = vmatprep.subr.bf16.mxu0 0
        %4879 = vmatpush1.bf16.msra.mxu0 %v4862
        %4880 = vmatprep.subr.bf16.mxu0 0
        %4881 = vmatpush2.bf16.msra.mxu0 0
        %4882 = vmatprep.subr.bf16.mxu0 0
        %4883 = vmatpush2.bf16.msra.mxu0 0
        %4884 = vmatprep.subr.bf16.mxu0 0
        %4885 = vmatpush2.bf16.msra.mxu0 0
        %4886 = vmatprep.subr.bf16.mxu0 0
        %4887 = vmatpush2.bf16.msra.mxu0 0
        %4888 = vmatprep.subr.bf16.mxu0 0
        %4889 = vmatpush2.bf16.msra.mxu0 0
        %4890 = vmatprep.subr.bf16.mxu0 0
        %4891 = vmatpush2.bf16.msra.mxu0 0
        %4892 = vmatprep.subr.bf16.mxu0 0
        %4893 = vmatpush2.bf16.msra.mxu0 0
        %4894 = vmatprep.subr.bf16.mxu0 0
        %4895 = vmatpush2.bf16.msra.mxu0 0
        %4896 = vmatprep.mubr.bf16.mxu0 0
        %4897 = vmatmul.mubr.bf16.gmra.mxu0 %v4859
        %v4898 = vpop.f32.mrf.mxu0
        %v4899 = vadd.f32 %v4391, %v4898
        %v4900 = vpop.f32.mrf.mxu0
        %v4901 = vpop.f32.mrf.mxu0
        %v4902 = vpop.f32.mrf.mxu0
        %4903 = vdwg.mxu0
        %v4905 = vsel %vm1384, %v3752, 0
        %v4908 = vsel %vm4400, %v1358, 0
        %4910 = vmatprep.subr.bf16.mxu0 0
        %4911 = vmatpush1.bf16.msra.mxu0 0
        %4912 = vmatprep.subr.bf16.mxu0 0
        %4913 = vmatpush1.bf16.msra.mxu0 0
        %4914 = vmatprep.subr.bf16.mxu0 0
        %4915 = vmatpush1.bf16.msra.mxu0 0
        %4916 = vmatprep.subr.bf16.mxu0 0
        %4917 = vmatpush1.bf16.msra.mxu0 0
        %4918 = vmatprep.subr.bf16.mxu0 0
        %4919 = vmatpush1.bf16.msra.mxu0 0
        %4920 = vmatprep.subr.bf16.mxu0 0
        %4921 = vmatpush1.bf16.msra.mxu0 0
        %4922 = vmatprep.subr.bf16.mxu0 0
        %4923 = vmatpush1.bf16.msra.mxu0 0
        %4924 = vmatprep.subr.bf16.mxu0 0
        %4925 = vmatpush1.bf16.msra.mxu0 %v4908
        %4926 = vmatprep.subr.bf16.mxu0 0
        %4927 = vmatpush2.bf16.msra.mxu0 0
        %4928 = vmatprep.subr.bf16.mxu0 0
        %4929 = vmatpush2.bf16.msra.mxu0 0
        %4930 = vmatprep.subr.bf16.mxu0 0
        %4931 = vmatpush2.bf16.msra.mxu0 0
        %4932 = vmatprep.subr.bf16.mxu0 0
        %4933 = vmatpush2.bf16.msra.mxu0 0
        %4934 = vmatprep.subr.bf16.mxu0 0
        %4935 = vmatpush2.bf16.msra.mxu0 0
        %4936 = vmatprep.subr.bf16.mxu0 0
        %4937 = vmatpush2.bf16.msra.mxu0 0
        %4938 = vmatprep.subr.bf16.mxu0 0
        %4939 = vmatpush2.bf16.msra.mxu0 0
        %4940 = vmatprep.subr.bf16.mxu0 0
        %4941 = vmatpush2.bf16.msra.mxu0 0
        %4942 = vmatprep.mubr.bf16.mxu0 0
        %4943 = vmatmul.mubr.bf16.gmra.mxu0 %v4905
        %v4944 = vpop.f32.mrf.mxu0
        %v4945 = vadd.f32 %v4392, %v4944
        %v4946 = vpop.f32.mrf.mxu0
        %v4947 = vpop.f32.mrf.mxu0
        %v4948 = vpop.f32.mrf.mxu0
        %4949 = vdwg.mxu0
        %v4951 = vsel %vm1384, %v3753, 0
        %v4954 = vsel %vm4400, %v1359, 0
        %4956 = vmatprep.subr.bf16.mxu0 0
        %4957 = vmatpush1.bf16.msra.mxu0 0
        %4958 = vmatprep.subr.bf16.mxu0 0
        %4959 = vmatpush1.bf16.msra.mxu0 0
        %4960 = vmatprep.subr.bf16.mxu0 0
        %4961 = vmatpush1.bf16.msra.mxu0 0
        %4962 = vmatprep.subr.bf16.mxu0 0
        %4963 = vmatpush1.bf16.msra.mxu0 0
        %4964 = vmatprep.subr.bf16.mxu0 0
        %4965 = vmatpush1.bf16.msra.mxu0 0
        %4966 = vmatprep.subr.bf16.mxu0 0
        %4967 = vmatpush1.bf16.msra.mxu0 0
        %4968 = vmatprep.subr.bf16.mxu0 0
        %4969 = vmatpush1.bf16.msra.mxu0 0
        %4970 = vmatprep.subr.bf16.mxu0 0
        %4971 = vmatpush1.bf16.msra.mxu0 %v4954
        %4972 = vmatprep.subr.bf16.mxu0 0
        %4973 = vmatpush2.bf16.msra.mxu0 0
        %4974 = vmatprep.subr.bf16.mxu0 0
        %4975 = vmatpush2.bf16.msra.mxu0 0
        %4976 = vmatprep.subr.bf16.mxu0 0
        %4977 = vmatpush2.bf16.msra.mxu0 0
        %4978 = vmatprep.subr.bf16.mxu0 0
        %4979 = vmatpush2.bf16.msra.mxu0 0
        %4980 = vmatprep.subr.bf16.mxu0 0
        %4981 = vmatpush2.bf16.msra.mxu0 0
        %4982 = vmatprep.subr.bf16.mxu0 0
        %4983 = vmatpush2.bf16.msra.mxu0 0
        %4984 = vmatprep.subr.bf16.mxu0 0
        %4985 = vmatpush2.bf16.msra.mxu0 0
        %4986 = vmatprep.subr.bf16.mxu0 0
        %4987 = vmatpush2.bf16.msra.mxu0 0
        %4988 = vmatprep.mubr.bf16.mxu0 0
        %4989 = vmatmul.mubr.bf16.gmra.mxu0 %v4951
        %v4990 = vpop.f32.mrf.mxu0
        %v4991 = vadd.f32 %v4393, %v4990
        %v4992 = vpop.f32.mrf.mxu0
        %v4993 = vpop.f32.mrf.mxu0
        %v4994 = vpop.f32.mrf.mxu0
        %4995 = vdwg.mxu0
        %v4997 = vsel %vm1384, %v3754, 0
        %v5000 = vsel %vm4400, %v1360, 0
        %5002 = vmatprep.subr.bf16.mxu0 0
        %5003 = vmatpush1.bf16.msra.mxu0 0
        %5004 = vmatprep.subr.bf16.mxu0 0
        %5005 = vmatpush1.bf16.msra.mxu0 0
        %5006 = vmatprep.subr.bf16.mxu0 0
        %5007 = vmatpush1.bf16.msra.mxu0 0
        %5008 = vmatprep.subr.bf16.mxu0 0
        %5009 = vmatpush1.bf16.msra.mxu0 0
        %5010 = vmatprep.subr.bf16.mxu0 0
        %5011 = vmatpush1.bf16.msra.mxu0 0
        %5012 = vmatprep.subr.bf16.mxu0 0
        %5013 = vmatpush1.bf16.msra.mxu0 0
        %5014 = vmatprep.subr.bf16.mxu0 0
        %5015 = vmatpush1.bf16.msra.mxu0 0
        %5016 = vmatprep.subr.bf16.mxu0 0
        %5017 = vmatpush1.bf16.msra.mxu0 %v5000
        %5018 = vmatprep.subr.bf16.mxu0 0
        %5019 = vmatpush2.bf16.msra.mxu0 0
        %5020 = vmatprep.subr.bf16.mxu0 0
        %5021 = vmatpush2.bf16.msra.mxu0 0
        %5022 = vmatprep.subr.bf16.mxu0 0
        %5023 = vmatpush2.bf16.msra.mxu0 0
        %5024 = vmatprep.subr.bf16.mxu0 0
        %5025 = vmatpush2.bf16.msra.mxu0 0
        %5026 = vmatprep.subr.bf16.mxu0 0
        %5027 = vmatpush2.bf16.msra.mxu0 0
        %5028 = vmatprep.subr.bf16.mxu0 0
        %5029 = vmatpush2.bf16.msra.mxu0 0
        %5030 = vmatprep.subr.bf16.mxu0 0
        %5031 = vmatpush2.bf16.msra.mxu0 0
        %5032 = vmatprep.subr.bf16.mxu0 0
        %5033 = vmatpush2.bf16.msra.mxu0 0
        %5034 = vmatprep.mubr.bf16.mxu0 0
        %5035 = vmatmul.mubr.bf16.gmra.mxu0 %v4997
        %v5036 = vpop.f32.mrf.mxu0
        %v5037 = vadd.f32 %v4394, %v5036
        %v5038 = vpop.f32.mrf.mxu0
        %v5039 = vpop.f32.mrf.mxu0
        %v5040 = vpop.f32.mrf.mxu0
        %5041 = vdwg.mxu0
        %v5043 = vsel %vm1384, %v3755, 0
        %v5046 = vsel %vm4400, %v1361, 0
        %5048 = vmatprep.subr.bf16.mxu0 0
        %5049 = vmatpush1.bf16.msra.mxu0 0
        %5050 = vmatprep.subr.bf16.mxu0 0
        %5051 = vmatpush1.bf16.msra.mxu0 0
        %5052 = vmatprep.subr.bf16.mxu0 0
        %5053 = vmatpush1.bf16.msra.mxu0 0
        %5054 = vmatprep.subr.bf16.mxu0 0
        %5055 = vmatpush1.bf16.msra.mxu0 0
        %5056 = vmatprep.subr.bf16.mxu0 0
        %5057 = vmatpush1.bf16.msra.mxu0 0
        %5058 = vmatprep.subr.bf16.mxu0 0
        %5059 = vmatpush1.bf16.msra.mxu0 0
        %5060 = vmatprep.subr.bf16.mxu0 0
        %5061 = vmatpush1.bf16.msra.mxu0 0
        %5062 = vmatprep.subr.bf16.mxu0 0
        %5063 = vmatpush1.bf16.msra.mxu0 %v5046
        %5064 = vmatprep.subr.bf16.mxu0 0
        %5065 = vmatpush2.bf16.msra.mxu0 0
        %5066 = vmatprep.subr.bf16.mxu0 0
        %5067 = vmatpush2.bf16.msra.mxu0 0
        %5068 = vmatprep.subr.bf16.mxu0 0
        %5069 = vmatpush2.bf16.msra.mxu0 0
        %5070 = vmatprep.subr.bf16.mxu0 0
        %5071 = vmatpush2.bf16.msra.mxu0 0
        %5072 = vmatprep.subr.bf16.mxu0 0
        %5073 = vmatpush2.bf16.msra.mxu0 0
        %5074 = vmatprep.subr.bf16.mxu0 0
        %5075 = vmatpush2.bf16.msra.mxu0 0
        %5076 = vmatprep.subr.bf16.mxu0 0
        %5077 = vmatpush2.bf16.msra.mxu0 0
        %5078 = vmatprep.subr.bf16.mxu0 0
        %5079 = vmatpush2.bf16.msra.mxu0 0
        %5080 = vmatprep.mubr.bf16.mxu0 0
        %5081 = vmatmul.mubr.bf16.gmra.mxu0 %v5043
        %v5082 = vpop.f32.mrf.mxu0
        %v5083 = vadd.f32 %v4395, %v5082
        %v5084 = vpop.f32.mrf.mxu0
        %v5085 = vpop.f32.mrf.mxu0
        %v5086 = vpop.f32.mrf.mxu0
        %5087 = vdwg.mxu0
        %v5089 = vsel %vm1384, %v3756, 0
        %v5092 = vsel %vm4400, %v1362, 0
        %5094 = vmatprep.subr.bf16.mxu0 0
        %5095 = vmatpush1.bf16.msra.mxu0 0
        %5096 = vmatprep.subr.bf16.mxu0 0
        %5097 = vmatpush1.bf16.msra.mxu0 0
        %5098 = vmatprep.subr.bf16.mxu0 0
        %5099 = vmatpush1.bf16.msra.mxu0 0
        %5100 = vmatprep.subr.bf16.mxu0 0
        %5101 = vmatpush1.bf16.msra.mxu0 0
        %5102 = vmatprep.subr.bf16.mxu0 0
        %5103 = vmatpush1.bf16.msra.mxu0 0
        %5104 = vmatprep.subr.bf16.mxu0 0
        %5105 = vmatpush1.bf16.msra.mxu0 0
        %5106 = vmatprep.subr.bf16.mxu0 0
        %5107 = vmatpush1.bf16.msra.mxu0 0
        %5108 = vmatprep.subr.bf16.mxu0 0
        %5109 = vmatpush1.bf16.msra.mxu0 %v5092
        %5110 = vmatprep.subr.bf16.mxu0 0
        %5111 = vmatpush2.bf16.msra.mxu0 0
        %5112 = vmatprep.subr.bf16.mxu0 0
        %5113 = vmatpush2.bf16.msra.mxu0 0
        %5114 = vmatprep.subr.bf16.mxu0 0
        %5115 = vmatpush2.bf16.msra.mxu0 0
        %5116 = vmatprep.subr.bf16.mxu0 0
        %5117 = vmatpush2.bf16.msra.mxu0 0
        %5118 = vmatprep.subr.bf16.mxu0 0
        %5119 = vmatpush2.bf16.msra.mxu0 0
        %5120 = vmatprep.subr.bf16.mxu0 0
        %5121 = vmatpush2.bf16.msra.mxu0 0
        %5122 = vmatprep.subr.bf16.mxu0 0
        %5123 = vmatpush2.bf16.msra.mxu0 0
        %5124 = vmatprep.subr.bf16.mxu0 0
        %5125 = vmatpush2.bf16.msra.mxu0 0
        %5126 = vmatprep.mubr.bf16.mxu0 0
        %5127 = vmatmul.mubr.bf16.gmra.mxu0 %v5089
        %v5128 = vpop.f32.mrf.mxu0
        %v5129 = vadd.f32 %v4396, %v5128
        %v5130 = vpop.f32.mrf.mxu0
        %v5131 = vpop.f32.mrf.mxu0
        %v5132 = vpop.f32.mrf.mxu0
        %5133 = vdwg.mxu0
        %5135 = vset.pattern.permute.xlu0 0
        %5136 = vperm.xlu0 %5135, %v3725
        %v5137 = vpop.permute.xlu0 %5136
        %5140 = vset.pattern.permute.xlu0 0
        %5141 = vperm.xlu0 %5140, %v3726
        %v5142 = vpop.permute.xlu0 %5141
        %5145 = vset.pattern.permute.xlu0 0
        %5146 = vperm.xlu0 %5145, %v3727
        %v5147 = vpop.permute.xlu0 %5146
        %5150 = vset.pattern.permute.xlu0 0
        %5151 = vperm.xlu0 %5150, %v3728
        %v5152 = vpop.permute.xlu0 %5151
        %5155 = vset.pattern.permute.xlu0 0
        %5156 = vperm.xlu0 %5155, %v3729
        %v5157 = vpop.permute.xlu0 %5156
        %5160 = vset.pattern.permute.xlu0 0
        %5161 = vperm.xlu0 %5160, %v3730
        %v5162 = vpop.permute.xlu0 %5161
        %5165 = vset.pattern.permute.xlu0 0
        %5166 = vperm.xlu0 %5165, %v3731
        %v5167 = vpop.permute.xlu0 %5166
        %5170 = vset.pattern.permute.xlu0 0
        %5171 = vperm.xlu0 %5170, %v3732
        %v5172 = vpop.permute.xlu0 %5171
        %5175 = vset.pattern.permute.xlu0 0
        %5176 = vperm.xlu0 %5175, %v3733
        %v5177 = vpop.permute.xlu0 %5176
        %5180 = vset.pattern.permute.xlu0 0
        %5181 = vperm.xlu0 %5180, %v3734
        %v5182 = vpop.permute.xlu0 %5181
        %5185 = vset.pattern.permute.xlu0 0
        %5186 = vperm.xlu0 %5185, %v3735
        %v5187 = vpop.permute.xlu0 %5186
        %5190 = vset.pattern.permute.xlu0 0
        %5191 = vperm.xlu0 %5190, %v3736
        %v5192 = vpop.permute.xlu0 %5191
        %5195 = vset.pattern.permute.xlu0 0
        %5196 = vperm.xlu0 %5195, %v3737
        %v5197 = vpop.permute.xlu0 %5196
        %5200 = vset.pattern.permute.xlu0 0
        %5201 = vperm.xlu0 %5200, %v3738
        %v5202 = vpop.permute.xlu0 %5201
        %5205 = vset.pattern.permute.xlu0 0
        %5206 = vperm.xlu0 %5205, %v3739
        %v5207 = vpop.permute.xlu0 %5206
        %5210 = vset.pattern.permute.xlu0 0
        %5211 = vperm.xlu0 %5210, %v3740
        %v5212 = vpop.permute.xlu0 %5211
        %v5214 = vmul.f32 %v4439, %v5137
        %v5215 = vmul.f32 %v4485, %v5142
        %v5216 = vmul.f32 %v4531, %v5147
        %v5217 = vmul.f32 %v4577, %v5152
        %v5218 = vmul.f32 %v4623, %v5157
        %v5219 = vmul.f32 %v4669, %v5162
        %v5220 = vmul.f32 %v4715, %v5167
        %v5221 = vmul.f32 %v4761, %v5172
        %v5222 = vmul.f32 %v4807, %v5177
        %v5223 = vmul.f32 %v4853, %v5182
        %v5224 = vmul.f32 %v4899, %v5187
        %v5225 = vmul.f32 %v4945, %v5192
        %v5226 = vmul.f32 %v4991, %v5197
        %v5227 = vmul.f32 %v5037, %v5202
        %v5228 = vmul.f32 %v5083, %v5207
        %v5229 = vmul.f32 %v5129, %v5212
        %v5230 = vstv %s249
        %v5231 = vmul.f32 %v5230, %v5214
        %v5232 = vmul.f32 %v5230, %v5215
        %v5233 = vmul.f32 %v5230, %v5216
        %v5234 = vmul.f32 %v5230, %v5217
        %v5235 = vmul.f32 %v5230, %v5218
        %v5236 = vmul.f32 %v5230, %v5219
        %v5237 = vmul.f32 %v5230, %v5220
        %v5238 = vmul.f32 %v5230, %v5221
        %v5239 = vmul.f32 %v5230, %v5222
        %v5240 = vmul.f32 %v5230, %v5223
        %v5241 = vmul.f32 %v5230, %v5224
        %v5242 = vmul.f32 %v5230, %v5225
        %v5243 = vmul.f32 %v5230, %v5226
        %v5244 = vmul.f32 %v5230, %v5227
        %v5245 = vmul.f32 %v5230, %v5228
        %v5246 = vmul.f32 %v5230, %v5229
        %v5247 = vadd.f32 %v5231, %v233
        %v5248 = vadd.f32 %v5232, %v234
        %v5249 = vadd.f32 %v5233, %v235
        %v5250 = vadd.f32 %v5234, %v236
        %v5251 = vadd.f32 %v5235, %v237
        %v5252 = vadd.f32 %v5236, %v238
        %v5253 = vadd.f32 %v5237, %v239
        %v5254 = vadd.f32 %v5238, %v240
        %v5255 = vadd.f32 %v5239, %v241
        %v5256 = vadd.f32 %v5240, %v242
        %v5257 = vadd.f32 %v5241, %v243
        %v5258 = vadd.f32 %v5242, %v244
        %v5259 = vadd.f32 %v5243, %v245
        %v5260 = vadd.f32 %v5244, %v246
        %v5261 = vadd.f32 %v5245, %v247
        %v5262 = vadd.f32 %v5246, %v248
        %5263 = vst.msk [vmem:[%s231] sm:$0xff] %vm297, %v5247
        %5264 = vst.msk [vmem:[%s231 + $0x8] sm:$0xff] %vm297, %v5248
        %5265 = vst.msk [vmem:[%s231 + $0x10] sm:$0xff] %vm297, %v5249
        %5266 = vst.msk [vmem:[%s231 + $0x18] sm:$0xff] %vm297, %v5250
        %5267 = vst.msk [vmem:[%s231 + $0x20] sm:$0xff] %vm297, %v5251
        %5268 = vst.msk [vmem:[%s231 + $0x28] sm:$0xff] %vm297, %v5252
        %5269 = vst.msk [vmem:[%s231 + $0x30] sm:$0xff] %vm297, %v5253
        %5270 = vst.msk [vmem:[%s231 + $0x38] sm:$0xff] %vm297, %v5254
        %5271 = vst.msk [vmem:[%s231 + $0x40] sm:$0xff] %vm297, %v5255
        %5272 = vst.msk [vmem:[%s231 + $0x48] sm:$0xff] %vm297, %v5256
        %5273 = vst.msk [vmem:[%s231 + $0x50] sm:$0xff] %vm297, %v5257
        %5274 = vst.msk [vmem:[%s231 + $0x58] sm:$0xff] %vm297, %v5258
        %5275 = vst.msk [vmem:[%s231 + $0x60] sm:$0xff] %vm297, %v5259
        %5276 = vst.msk [vmem:[%s231 + $0x68] sm:$0xff] %vm297, %v5260
        %5277 = vst.msk [vmem:[%s231 + $0x70] sm:$0xff] %vm297, %v5261
        %5278 = vst.msk [vmem:[%s231 + $0x78] sm:$0xff] %vm297, %v5262
        %s5279 = sand.u32 %s120, 1
        %s5280 = scalar_lea.sflag [#allocation5], %s5279
        %s5281 = sand.u32 %s120, 1
        %s5282 = smul.addr %s5281, 128
        %s5283 = scalar_lea.vmem [#allocation8], %s5282
        // Predicated region
        $region45: #{tpu_custom_call.1} parent=35 // pred_check
          %p5284 = pneg %p130
        $region46: #{tpu_custom_call.1} parent=35 // pred_check_branch
          %5286 = sbr.rel (%p5284) target = $region48
        $region47: #{tpu_custom_call.1} parent=35 // pred_region
          %s5288 = ssub.s32 2048, 2048
          %5289 = vsyncadd %s5280, %s5288
          %s5290 = smul.addr %s23, 16
          %s5291 = smul.addr %s5290, 128
          %s5292 = scalar_lea.hbm %s4, %s5291
          %s5293 = sshll.u32 %s5283, 4
          %s5294 = int_to_ptr.vmem [resolvable:$true] %s5293
          %5299 = dma.vmem_to_hbm [thread:$0]  %s5294, 2048, %s5292, %s5280, 128, 128, 8
        $region48: #{tpu_custom_call.1} parent=35 // pred_fallthru
          _
      $region36: #{tpu_custom_call.1} parent=5 // pred_fallthru
        _
      %p5300 = scmp.le.s32.totalorder 2, %s18
      // Predicated region
      $region49: #{tpu_custom_call.1} parent=5 // pred_check
        %p5301 = pneg %p5300
      $region50: #{tpu_custom_call.1} parent=5 // pred_check_branch
        %5303 = sbr.rel (%p5301) target = $region52
      $region51: #{tpu_custom_call.1} parent=5 // pred_region
        %s5304 = ssub.s32 %s18, 2
        // Predicated region
        $region53: #{tpu_custom_call.1} parent=51 // pred_check
          %p5305 = pneg %p136
        $region54: #{tpu_custom_call.1} parent=51 // pred_check_branch
          %5307 = sbr.rel (%p5305) target = $region56
        $region55: #{tpu_custom_call.1} parent=51 // pred_region
          %s5308 = sand.u32 %s121, 1
          %s5309 = scalar_lea.sflag [#allocation5], %s5308
          %s5310 = sand.u32 %s121, 1
          %s5311 = smul.addr %s5310, 128
          %s5312 = scalar_lea.vmem [#allocation8], %s5311
          %5313 = dma.done %s5309, 2048
        $region56: #{tpu_custom_call.1} parent=51 // pred_fallthru
          _
      $region52: #{tpu_custom_call.1} parent=5 // pred_fallthru
        _
    $region6: #{tpu_custom_call.1} parent=1 // loop_footer
      %s22 = sadd.s32 1, %s18
    $region7: #{tpu_custom_call.1} parent=1 // loop_footer_branch
      %17 = sbr.rel target = $region3
    $region8: #{tpu_custom_call.1} parent=1 // loop_exit
      _
    %5314 = vsyncpa [#allocation4], 1
    %s5315 = scalar_lea.sflag [#allocation4], 1
    %5316 = vsyncpa %s5315, 1
    %5317 = vsyncpa [#allocation7], 1
    %5318 = vsyncpa [#allocation5], 1
    %s5319 = scalar_lea.sflag [#allocation5], 1
    %5320 = vsyncpa %s5319, 1

</llo_original>
